<compile_context>
chip_gen: v5e
topology: v5e:2x2
jax: 0.10.0
libtpu: 0.0.40
codegen_flags: <defaults>
</compile_context>

<pallas_src>
import functools

import jax
import jax.numpy as jnp
from jax.experimental import pallas as pl
from jax.experimental.pallas import tpu as pltpu

LANE = 128


def make_basic_block_kernel(H, W, Cp):
    HW = H * W

    def kernel(xpad_ref, x_ref, w1_ref, w2_ref,
               s1_ref, b1_ref, s2_ref, b2_ref,
               o_ref, cols_ref, mid_ref):
        # ---------------- conv1: im2col (lane-aligned column writes) ----------------
        for kh in range(3):
            for kw in range(3):
                tap = kh * 3 + kw
                patch = xpad_ref[0, kh:kh + H, kw:kw + W, :]          # (H, W, Cp)
                cols_ref[:, tap * Cp:(tap + 1) * Cp] = patch.reshape(HW, Cp)

        # ---- conv1 as ONE deep-K MXU matmul, folded BN + ReLU in fp32 ----
        acc1 = jnp.dot(cols_ref[...], w1_ref[...],
                       preferred_element_type=jnp.float32)            # (HW, Cp) fp32
        out1 = jnp.maximum(acc1 * s1_ref[...] + b1_ref[...], 0.0)

        # ---- stage out1 into the padded scratch for conv2 ----
        # Zero ONLY the 1-pixel border (cheap); the interior is fully
        # overwritten below, so no stale data can leak between grid steps.
        zrow = jnp.zeros((W + 2, Cp), mid_ref.dtype)
        mid_ref[0] = zrow
        mid_ref[H + 1] = zrow
        zcol = jnp.zeros((H + 2, 1, Cp), mid_ref.dtype)
        mid_ref[:, 0:1, :] = zcol
        mid_ref[:, W + 1:W + 2, :] = zcol
        mid_ref[1:H + 1, 1:W + 1, :] = out1.reshape(H, W, Cp).astype(mid_ref.dtype)

        # ---------------- conv2: im2col ----------------
        for kh in range(3):
            for kw in range(3):
                tap = kh * 3 + kw
                patch = mid_ref[kh:kh + H, kw:kw + W, :]               # (H, W, Cp)
                cols_ref[:, tap * Cp:(tap + 1) * Cp] = patch.reshape(HW, Cp)

        # ---- conv2 matmul + BN2 + residual add + ReLU; lane-dense store ----
        acc2 = jnp.dot(cols_ref[...], w2_ref[...],
                       preferred_element_type=jnp.float32)
        out2 = acc2 * s2_ref[...] + b2_ref[...]
        residual = x_ref[0].reshape(HW, Cp).astype(jnp.float32)       # Cin == Cout
        o_ref[0] = jnp.maximum(out2 + residual, 0.0).astype(o_ref.dtype)

    return kernel


@functools.partial(jax.jit, static_argnames=("compute_dtype",))
def basic_block_forward(x_nchw, w1, w2, g1, beta1, m1, v1, g2, beta2, m2, v2,
                        compute_dtype=jnp.float32):
    """BasicBlock forward.  x_nchw: (N, C, H, W) fp32 (PyTorch layout).

    w1: (3,3,Cin,Cout) HWIO, w2: (3,3,Cout,Cout).  compute_dtype=jnp.bfloat16
    is the v6e/v7x fast path (bf16 operands, fp32 accumulation)."""
    eps = 1e-5
    N, C, H, W = x_nchw.shape
    Cout = w1.shape[-1]
    assert C == Cout, "downsample=None requires inplanes == planes"
    assert w2.shape == (3, 3, Cout, Cout)

    # Pad channels up to a lane multiple so every in-kernel tile is lane-dense.
    Cp = -(-C // LANE) * LANE
    pc = Cp - C

    # ---- glue (plain JAX): layout, channel/spatial padding, BN folding ----
    x = jnp.transpose(x_nchw, (0, 2, 3, 1)).astype(compute_dtype)      # NHWC
    x = jnp.pad(x, ((0, 0), (0, 0), (0, 0), (0, pc)))                  # channel pad
    xpad = jnp.pad(x, ((0, 0), (1, 1), (1, 1), (0, 0)))                # spatial pad

    # Weights: pad channels, flatten (3,3,Cp,Cp) -> (9*Cp, Cp) to pair with
    # the im2col column ordering (tap-major, channel-minor).
    w1f = jnp.pad(w1, ((0, 0), (0, 0), (0, pc), (0, pc))).astype(compute_dtype)
    w1f = w1f.reshape(9 * Cp, Cp)
    w2f = jnp.pad(w2, ((0, 0), (0, 0), (0, pc), (0, pc))).astype(compute_dtype)
    w2f = w2f.reshape(9 * Cp, Cp)

    def fold_bn(g, beta, m, v):
        s = g / jnp.sqrt(v + eps)
        b = beta - m * s
        s = jnp.pad(s, (0, pc)).reshape(1, Cp).astype(jnp.float32)
        b = jnp.pad(b, (0, pc)).reshape(1, Cp).astype(jnp.float32)
        return s, b

    s1, b1 = fold_bn(g1, beta1, m1, v1)
    s2, b2 = fold_bn(g2, beta2, m2, v2)

    kernel = make_basic_block_kernel(H, W, Cp)

    out_flat = pl.pallas_call(
        kernel,
        out_shape=jax.ShapeDtypeStruct((N, H * W, Cp), jnp.float32),
        grid_spec=pltpu.PrefetchScalarGridSpec(
            num_scalar_prefetch=0,
            grid=(N,),
            in_specs=[
                pl.BlockSpec((1, H + 2, W + 2, Cp), lambda n: (n, 0, 0, 0)),  # xpad
                pl.BlockSpec((1, H, W, Cp), lambda n: (n, 0, 0, 0)),          # residual
                pl.BlockSpec((9 * Cp, Cp), lambda n: (0, 0)),                 # w1 flat
                pl.BlockSpec((9 * Cp, Cp), lambda n: (0, 0)),                 # w2 flat
                pl.BlockSpec((1, Cp), lambda n: (0, 0)),                      # scale1
                pl.BlockSpec((1, Cp), lambda n: (0, 0)),                      # bias1
                pl.BlockSpec((1, Cp), lambda n: (0, 0)),                      # scale2
                pl.BlockSpec((1, Cp), lambda n: (0, 0)),                      # bias2
            ],
            out_specs=pl.BlockSpec((1, H * W, Cp), lambda n: (n, 0, 0)),
            scratch_shapes=[
                pltpu.VMEM((H * W, 9 * Cp), compute_dtype),      # im2col columns
                pltpu.VMEM((H + 2, W + 2, Cp), compute_dtype),   # padded conv1 output
            ],
        ),
        # Batch axis is "parallel" -> megacore split on v7x.
        # TODO(synk): for small/odd N on v7x add a second parallel axis over
        #             H-row tiles; set vmem_limit_bytes when scaling H/W/C.
        compiler_params=pltpu.CompilerParams(
            dimension_semantics=("parallel",)),
    )(xpad, x, w1f, w2f, s1, b1, s2, b2)

    out = out_flat[:, :, :C].reshape(N, H, W, C)                      # drop channel pad
    return jnp.transpose(out, (0, 3, 1, 2))                           # back to NCHW


def reference_forward(x_nchw, w1, w2, g1, beta1, m1, v1, g2, beta2, m2, v2,
                      compute_dtype=jnp.float32):
    """Pure-JAX reference matching PyTorch eval-mode BasicBlock."""
    eps = 1e-5
    x = jnp.transpose(x_nchw, (0, 2, 3, 1)).astype(compute_dtype)

    def conv3x3(inp, w):
        return jax.lax.conv_general_dilated(
            inp.astype(compute_dtype), w.astype(compute_dtype),
            window_strides=(1, 1), padding=((1, 1), (1, 1)),
            dimension_numbers=("NHWC", "HWIO", "NHWC"),
            preferred_element_type=jnp.float32)

    def bn(inp, g, b, m, v):
        return (inp - m) / jnp.sqrt(v + eps) * g + b

    out = conv3x3(x, w1)
    out = jnp.maximum(bn(out, g1, beta1, m1, v1), 0.0)
    out = conv3x3(out, w2)
    out = bn(out, g2, beta2, m2, v2)
    out = jnp.maximum(out + x.astype(jnp.float32), 0.0)
    return jnp.transpose(out, (0, 3, 1, 2))


if __name__ == "__main__":
    # Small deterministic config: inplanes = planes = 4, stride = 1, relu.
    N, C, H, W = 2, 4, 16, 16
    planes = 4

    key = jax.random.PRNGKey(0)
    k_x, k_w1, k_w2, k_g1, k_b1, k_m1, k_g2, k_b2, k_m2 = jax.random.split(key, 9)

    x = jax.random.normal(k_x, (N, C, H, W), jnp.float32)
    w1 = jax.random.normal(k_w1, (3, 3, C, planes), jnp.float32) * 0.1      # HWIO
    w2 = jax.random.normal(k_w2, (3, 3, planes, planes), jnp.float32) * 0.1

    # BatchNorm (eval mode) parameters / running stats.
    g1 = 1.0 + 0.1 * jax.random.normal(k_g1, (planes,), jnp.float32)
    beta1 = 0.1 * jax.random.normal(k_b1, (planes,), jnp.float32)
    m1 = 0.05 * jax.random.normal(k_m1, (planes,), jnp.float32)
    v1 = 1.0 + 0.1 * jnp.abs(jax.random.normal(k_m1, (planes,), jnp.float32))
    g2 = 1.0 + 0.1 * jax.random.normal(k_g2, (planes,), jnp.float32)
    beta2 = 0.1 * jax.random.normal(k_b2, (planes,), jnp.float32)
    m2 = 0.05 * jax.random.normal(k_m2, (planes,), jnp.float32)
    v2 = 1.0 + 0.1 * jnp.abs(jax.random.normal(k_m2, (planes,), jnp.float32))

    # ---- fp32 path (exact check) ----
    out = basic_block_forward(x, w1, w2, g1, beta1, m1, v1, g2, beta2, m2, v2)
    out = jax.block_until_ready(out)
    ref = reference_forward(x, w1, w2, g1, beta1, m1, v1, g2, beta2, m2, v2)
    ref = jax.block_until_ready(ref)
    assert out.shape == (N, planes, H, W), out.shape
    assert jnp.allclose(out, ref, rtol=1e-4, atol=1e-4), \
        float(jnp.max(jnp.abs(out - ref)))

    # ---- bf16 fast path (v6e/v7x): bf16 operands, fp32 accumulation ----
    out_bf16 = basic_block_forward(x, w1, w2, g1, beta1, m1, v1, g2, beta2, m2, v2,
                                   compute_dtype=jnp.bfloat16)
    out_bf16 = jax.block_until_ready(out_bf16)
    ref_bf16 = reference_forward(x, w1, w2, g1, beta1, m1, v1, g2, beta2, m2, v2,
                                 compute_dtype=jnp.bfloat16)
    ref_bf16 = jax.block_until_ready(ref_bf16)
    assert jnp.allclose(out_bf16, ref_bf16, rtol=1e-2, atol=1e-2), \
        float(jnp.max(jnp.abs(out_bf16 - ref_bf16)))

    print("KERNEL_OK")
</pallas_src>

<mosaic_0001>
module attributes {stable_mosaic.version = 11 : i64} {
  func.func @kernel(%arg0: i32, %arg1: memref<1x18x18x128xf32, #tpu.memory_space<vmem>>, %arg2: memref<1x16x16x128xf32, #tpu.memory_space<vmem>>, %arg3: memref<1152x128xf32, #tpu.memory_space<vmem>>, %arg4: memref<1152x128xf32, #tpu.memory_space<vmem>>, %arg5: memref<1x128xf32, #tpu.memory_space<vmem>>, %arg6: memref<1x128xf32, #tpu.memory_space<vmem>>, %arg7: memref<1x128xf32, #tpu.memory_space<vmem>>, %arg8: memref<1x128xf32, #tpu.memory_space<vmem>>, %arg9: memref<1x256x128xf32, #tpu.memory_space<vmem>>, %arg10: memref<256x1152xf32, #tpu.memory_space<vmem>>, %arg11: memref<18x18x128xf32, #tpu.memory_space<vmem>>) attributes {dimension_semantics = [#tpu.dimension_semantics<parallel>], iteration_bounds = array<i64: 2>, scalar_prefetch = 0 : i64, scratch_operands = 2 : i64, tpu.core_type = #tpu.core_type<tc>, window_params = [{transform_indices = @transform_0, window_bounds = array<i64: 1, 18, 18, 128>}, {transform_indices = @transform_1, window_bounds = array<i64: 1, 16, 16, 128>}, {pipeline_mode = #tpu.pipeline_mode<synchronous>, transform_indices = @transform_2, window_bounds = array<i64: 1152, 128>}, {pipeline_mode = #tpu.pipeline_mode<synchronous>, transform_indices = @transform_3, window_bounds = array<i64: 1152, 128>}, {pipeline_mode = #tpu.pipeline_mode<synchronous>, transform_indices = @transform_4, window_bounds = array<i64: 1, 128>}, {pipeline_mode = #tpu.pipeline_mode<synchronous>, transform_indices = @transform_5, window_bounds = array<i64: 1, 128>}, {pipeline_mode = #tpu.pipeline_mode<synchronous>, transform_indices = @transform_6, window_bounds = array<i64: 1, 128>}, {pipeline_mode = #tpu.pipeline_mode<synchronous>, transform_indices = @transform_7, window_bounds = array<i64: 1, 128>}, {transform_indices = @transform_8, window_bounds = array<i64: 1, 256, 128>}]} {
    %c0 = arith.constant 0 : index
    %c0_0 = arith.constant 0 : index
    %c0_1 = arith.constant 0 : index
    %c0_2 = arith.constant 0 : index
    %0 = vector.load %arg1[%c0, %c0_0, %c0_1, %c0_2] : memref<1x18x18x128xf32, #tpu.memory_space<vmem>>, vector<1x16x16x128xf32>
    %1 = vector.shape_cast %0 : vector<1x16x16x128xf32> to vector<16x16x128xf32>
    %2 = vector.shape_cast %1 : vector<16x16x128xf32> to vector<256x128xf32>
    %c0_3 = arith.constant 0 : index
    %c0_4 = arith.constant 0 : index
    %3 = vector.load %arg10[%c0_3, %c0_4] : memref<256x1152xf32, #tpu.memory_space<vmem>>, vector<256x128xf32>
    tpu.vector_store %arg10[%c0_3, %c0_4], %2 {strides = array<i32>} : memref<256x1152xf32, #tpu.memory_space<vmem>>, vector<256x128xf32>,
    %c0_5 = arith.constant 0 : index
    %c0_6 = arith.constant 0 : index
    %c1 = arith.constant 1 : index
    %c0_7 = arith.constant 0 : index
    %4 = vector.load %arg1[%c0_5, %c0_6, %c1, %c0_7] : memref<1x18x18x128xf32, #tpu.memory_space<vmem>>, vector<1x16x16x128xf32>
    %5 = vector.shape_cast %4 : vector<1x16x16x128xf32> to vector<16x16x128xf32>
    %6 = vector.shape_cast %5 : vector<16x16x128xf32> to vector<256x128xf32>
    %c0_8 = arith.constant 0 : index
    %c128 = arith.constant 128 : index
    %7 = vector.load %arg10[%c0_8, %c128] : memref<256x1152xf32, #tpu.memory_space<vmem>>, vector<256x128xf32>
    tpu.vector_store %arg10[%c0_8, %c128], %6 {strides = array<i32>} : memref<256x1152xf32, #tpu.memory_space<vmem>>, vector<256x128xf32>,
    %c0_9 = arith.constant 0 : index
    %c0_10 = arith.constant 0 : index
    %c2 = arith.constant 2 : index
    %c0_11 = arith.constant 0 : index
    %8 = vector.load %arg1[%c0_9, %c0_10, %c2, %c0_11] : memref<1x18x18x128xf32, #tpu.memory_space<vmem>>, vector<1x16x16x128xf32>
    %9 = vector.shape_cast %8 : vector<1x16x16x128xf32> to vector<16x16x128xf32>
    %10 = vector.shape_cast %9 : vector<16x16x128xf32> to vector<256x128xf32>
    %c0_12 = arith.constant 0 : index
    %c256 = arith.constant 256 : index
    %11 = vector.load %arg10[%c0_12, %c256] : memref<256x1152xf32, #tpu.memory_space<vmem>>, vector<256x128xf32>
    tpu.vector_store %arg10[%c0_12, %c256], %10 {strides = array<i32>} : memref<256x1152xf32, #tpu.memory_space<vmem>>, vector<256x128xf32>,
    %c0_13 = arith.constant 0 : index
    %c1_14 = arith.constant 1 : index
    %c0_15 = arith.constant 0 : index
    %c0_16 = arith.constant 0 : index
    %12 = vector.load %arg1[%c0_13, %c1_14, %c0_15, %c0_16] : memref<1x18x18x128xf32, #tpu.memory_space<vmem>>, vector<1x16x16x128xf32>
    %13 = vector.shape_cast %12 : vector<1x16x16x128xf32> to vector<16x16x128xf32>
    %14 = vector.shape_cast %13 : vector<16x16x128xf32> to vector<256x128xf32>
    %c0_17 = arith.constant 0 : index
    %c384 = arith.constant 384 : index
    %15 = vector.load %arg10[%c0_17, %c384] : memref<256x1152xf32, #tpu.memory_space<vmem>>, vector<256x128xf32>
    tpu.vector_store %arg10[%c0_17, %c384], %14 {strides = array<i32>} : memref<256x1152xf32, #tpu.memory_space<vmem>>, vector<256x128xf32>,
    %c0_18 = arith.constant 0 : index
    %c1_19 = arith.constant 1 : index
    %c1_20 = arith.constant 1 : index
    %c0_21 = arith.constant 0 : index
    %16 = vector.load %arg1[%c0_18, %c1_19, %c1_20, %c0_21] : memref<1x18x18x128xf32, #tpu.memory_space<vmem>>, vector<1x16x16x128xf32>
    %17 = vector.shape_cast %16 : vector<1x16x16x128xf32> to vector<16x16x128xf32>
    %18 = vector.shape_cast %17 : vector<16x16x128xf32> to vector<256x128xf32>
    %c0_22 = arith.constant 0 : index
    %c512 = arith.constant 512 : index
    %19 = vector.load %arg10[%c0_22, %c512] : memref<256x1152xf32, #tpu.memory_space<vmem>>, vector<256x128xf32>
    tpu.vector_store %arg10[%c0_22, %c512], %18 {strides = array<i32>} : memref<256x1152xf32, #tpu.memory_space<vmem>>, vector<256x128xf32>,
    %c0_23 = arith.constant 0 : index
    %c1_24 = arith.constant 1 : index
    %c2_25 = arith.constant 2 : index
    %c0_26 = arith.constant 0 : index
    %20 = vector.load %arg1[%c0_23, %c1_24, %c2_25, %c0_26] : memref<1x18x18x128xf32, #tpu.memory_space<vmem>>, vector<1x16x16x128xf32>
    %21 = vector.shape_cast %20 : vector<1x16x16x128xf32> to vector<16x16x128xf32>
    %22 = vector.shape_cast %21 : vector<16x16x128xf32> to vector<256x128xf32>
    %c0_27 = arith.constant 0 : index
    %c640 = arith.constant 640 : index
    %23 = vector.load %arg10[%c0_27, %c640] : memref<256x1152xf32, #tpu.memory_space<vmem>>, vector<256x128xf32>
    tpu.vector_store %arg10[%c0_27, %c640], %22 {strides = array<i32>} : memref<256x1152xf32, #tpu.memory_space<vmem>>, vector<256x128xf32>,
    %c0_28 = arith.constant 0 : index
    %c2_29 = arith.constant 2 : index
    %c0_30 = arith.constant 0 : index
    %c0_31 = arith.constant 0 : index
    %24 = vector.load %arg1[%c0_28, %c2_29, %c0_30, %c0_31] : memref<1x18x18x128xf32, #tpu.memory_space<vmem>>, vector<1x16x16x128xf32>
    %25 = vector.shape_cast %24 : vector<1x16x16x128xf32> to vector<16x16x128xf32>
    %26 = vector.shape_cast %25 : vector<16x16x128xf32> to vector<256x128xf32>
    %c0_32 = arith.constant 0 : index
    %c768 = arith.constant 768 : index
    %27 = vector.load %arg10[%c0_32, %c768] : memref<256x1152xf32, #tpu.memory_space<vmem>>, vector<256x128xf32>
    tpu.vector_store %arg10[%c0_32, %c768], %26 {strides = array<i32>} : memref<256x1152xf32, #tpu.memory_space<vmem>>, vector<256x128xf32>,
    %c0_33 = arith.constant 0 : index
    %c2_34 = arith.constant 2 : index
    %c1_35 = arith.constant 1 : index
    %c0_36 = arith.constant 0 : index
    %28 = vector.load %arg1[%c0_33, %c2_34, %c1_35, %c0_36] : memref<1x18x18x128xf32, #tpu.memory_space<vmem>>, vector<1x16x16x128xf32>
    %29 = vector.shape_cast %28 : vector<1x16x16x128xf32> to vector<16x16x128xf32>
    %30 = vector.shape_cast %29 : vector<16x16x128xf32> to vector<256x128xf32>
    %c0_37 = arith.constant 0 : index
    %c896 = arith.constant 896 : index
    %31 = vector.load %arg10[%c0_37, %c896] : memref<256x1152xf32, #tpu.memory_space<vmem>>, vector<256x128xf32>
    tpu.vector_store %arg10[%c0_37, %c896], %30 {strides = array<i32>} : memref<256x1152xf32, #tpu.memory_space<vmem>>, vector<256x128xf32>,
    %c0_38 = arith.constant 0 : index
    %c2_39 = arith.constant 2 : index
    %c2_40 = arith.constant 2 : index
    %c0_41 = arith.constant 0 : index
    %32 = vector.load %arg1[%c0_38, %c2_39, %c2_40, %c0_41] : memref<1x18x18x128xf32, #tpu.memory_space<vmem>>, vector<1x16x16x128xf32>
    %33 = vector.shape_cast %32 : vector<1x16x16x128xf32> to vector<16x16x128xf32>
    %34 = vector.shape_cast %33 : vector<16x16x128xf32> to vector<256x128xf32>
    %c0_42 = arith.constant 0 : index
    %c1024 = arith.constant 1024 : index
    %35 = vector.load %arg10[%c0_42, %c1024] : memref<256x1152xf32, #tpu.memory_space<vmem>>, vector<256x128xf32>
    tpu.vector_store %arg10[%c0_42, %c1024], %34 {strides = array<i32>} : memref<256x1152xf32, #tpu.memory_space<vmem>>, vector<256x128xf32>,
    %c0_43 = arith.constant 0 : index
    %c0_44 = arith.constant 0 : index
    %36 = vector.load %arg10[%c0_43, %c0_44] : memref<256x1152xf32, #tpu.memory_space<vmem>>, vector<256x1152xf32>
    %c0_45 = arith.constant 0 : index
    %c0_46 = arith.constant 0 : index
    %37 = vector.load %arg3[%c0_45, %c0_46] : memref<1152x128xf32, #tpu.memory_space<vmem>>, vector<1152x128xf32>
    %cst = arith.constant dense<0.000000e+00> : vector<256x128xf32>
    %38 = tpu.matmul %36, %37, %cst {dimension_numbers = #tpu.dot_dimension_numbers<[1], [0], [0], [1], [0, 0, 1, 1], [], []>} : vector<256x1152xf32>, vector<1152x128xf32>, vector<256x128xf32> -> vector<256x128xf32>
    %c0_47 = arith.constant 0 : index
    %c0_48 = arith.constant 0 : index
    %39 = vector.load %arg5[%c0_47, %c0_48] : memref<1x128xf32, #tpu.memory_space<vmem>>, vector<1x128xf32>
    %40 = vector.broadcast %39 : vector<1x128xf32> to vector<256x128xf32>
    %41 = arith.mulf %38, %40 : vector<256x128xf32>
    %c0_49 = arith.constant 0 : index
    %c0_50 = arith.constant 0 : index
    %42 = vector.load %arg6[%c0_49, %c0_50] : memref<1x128xf32, #tpu.memory_space<vmem>>, vector<1x128xf32>
    %43 = vector.broadcast %42 : vector<1x128xf32> to vector<256x128xf32>
    %44 = arith.addf %41, %43 : vector<256x128xf32>
    %cst_51 = arith.constant 0.000000e+00 : f32
    %45 = vector.broadcast %cst_51 : f32 to vector<256x128xf32>
    %46 = arith.maximumf %44, %45 : vector<256x128xf32>
    %cst_52 = arith.constant 0.000000e+00 : f32
    %47 = vector.broadcast %cst_52 : f32 to vector<18x128xf32>
    %c0_53 = arith.constant 0 : index
    %c0_54 = arith.constant 0 : index
    %c0_55 = arith.constant 0 : index
    %48 = vector.load %arg11[%c0_53, %c0_54, %c0_55] : memref<18x18x128xf32, #tpu.memory_space<vmem>>, vector<1x18x128xf32>
    %49 = vector.shape_cast %48 : vector<1x18x128xf32> to vector<18x128xf32>
    %50 = vector.shape_cast %47 : vector<18x128xf32> to vector<1x18x128xf32>
    tpu.vector_store %arg11[%c0_53, %c0_54, %c0_55], %50 {strides = array<i32>} : memref<18x18x128xf32, #tpu.memory_space<vmem>>, vector<1x18x128xf32>,
    %c17 = arith.constant 17 : index
    %c0_56 = arith.constant 0 : index
    %c0_57 = arith.constant 0 : index
    %51 = vector.load %arg11[%c17, %c0_56, %c0_57] : memref<18x18x128xf32, #tpu.memory_space<vmem>>, vector<1x18x128xf32>
    %52 = vector.shape_cast %51 : vector<1x18x128xf32> to vector<18x128xf32>
    %53 = vector.shape_cast %47 : vector<18x128xf32> to vector<1x18x128xf32>
    tpu.vector_store %arg11[%c17, %c0_56, %c0_57], %53 {strides = array<i32>} : memref<18x18x128xf32, #tpu.memory_space<vmem>>, vector<1x18x128xf32>,
    %cst_58 = arith.constant 0.000000e+00 : f32
    %54 = vector.broadcast %cst_58 : f32 to vector<18x1x128xf32>
    %c0_59 = arith.constant 0 : index
    %c0_60 = arith.constant 0 : index
    %c0_61 = arith.constant 0 : index
    %55 = vector.load %arg11[%c0_59, %c0_60, %c0_61] : memref<18x18x128xf32, #tpu.memory_space<vmem>>, vector<18x1x128xf32>
    tpu.vector_store %arg11[%c0_59, %c0_60, %c0_61], %54 {strides = array<i32>} : memref<18x18x128xf32, #tpu.memory_space<vmem>>, vector<18x1x128xf32>,
    %c0_62 = arith.constant 0 : index
    %c17_63 = arith.constant 17 : index
    %c0_64 = arith.constant 0 : index
    %56 = vector.load %arg11[%c0_62, %c17_63, %c0_64] : memref<18x18x128xf32, #tpu.memory_space<vmem>>, vector<18x1x128xf32>
    tpu.vector_store %arg11[%c0_62, %c17_63, %c0_64], %54 {strides = array<i32>} : memref<18x18x128xf32, #tpu.memory_space<vmem>>, vector<18x1x128xf32>,
    %57 = vector.shape_cast %46 : vector<256x128xf32> to vector<16x16x128xf32>
    %c1_65 = arith.constant 1 : index
    %c1_66 = arith.constant 1 : index
    %c0_67 = arith.constant 0 : index
    %58 = vector.load %arg11[%c1_65, %c1_66, %c0_67] : memref<18x18x128xf32, #tpu.memory_space<vmem>>, vector<16x16x128xf32>
    tpu.vector_store %arg11[%c1_65, %c1_66, %c0_67], %57 {strides = array<i32>} : memref<18x18x128xf32, #tpu.memory_space<vmem>>, vector<16x16x128xf32>,
    %c0_68 = arith.constant 0 : index
    %c0_69 = arith.constant 0 : index
    %c0_70 = arith.constant 0 : index
    %59 = vector.load %arg11[%c0_68, %c0_69, %c0_70] : memref<18x18x128xf32, #tpu.memory_space<vmem>>, vector<16x16x128xf32>
    %60 = vector.shape_cast %59 : vector<16x16x128xf32> to vector<256x128xf32>
    %c0_71 = arith.constant 0 : index
    %c0_72 = arith.constant 0 : index
    %61 = vector.load %arg10[%c0_71, %c0_72] : memref<256x1152xf32, #tpu.memory_space<vmem>>, vector<256x128xf32>
    tpu.vector_store %arg10[%c0_71, %c0_72], %60 {strides = array<i32>} : memref<256x1152xf32, #tpu.memory_space<vmem>>, vector<256x128xf32>,
    %c0_73 = arith.constant 0 : index
    %c1_74 = arith.constant 1 : index
    %c0_75 = arith.constant 0 : index
    %62 = vector.load %arg11[%c0_73, %c1_74, %c0_75] : memref<18x18x128xf32, #tpu.memory_space<vmem>>, vector<16x16x128xf32>
    %63 = vector.shape_cast %62 : vector<16x16x128xf32> to vector<256x128xf32>
    %c0_76 = arith.constant 0 : index
    %c128_77 = arith.constant 128 : index
    %64 = vector.load %arg10[%c0_76, %c128_77] : memref<256x1152xf32, #tpu.memory_space<vmem>>, vector<256x128xf32>
    tpu.vector_store %arg10[%c0_76, %c128_77], %63 {strides = array<i32>} : memref<256x1152xf32, #tpu.memory_space<vmem>>, vector<256x128xf32>,
    %c0_78 = arith.constant 0 : index
    %c2_79 = arith.constant 2 : index
    %c0_80 = arith.constant 0 : index
    %65 = vector.load %arg11[%c0_78, %c2_79, %c0_80] : memref<18x18x128xf32, #tpu.memory_space<vmem>>, vector<16x16x128xf32>
    %66 = vector.shape_cast %65 : vector<16x16x128xf32> to vector<256x128xf32>
    %c0_81 = arith.constant 0 : index
    %c256_82 = arith.constant 256 : index
    %67 = vector.load %arg10[%c0_81, %c256_82] : memref<256x1152xf32, #tpu.memory_space<vmem>>, vector<256x128xf32>
    tpu.vector_store %arg10[%c0_81, %c256_82], %66 {strides = array<i32>} : memref<256x1152xf32, #tpu.memory_space<vmem>>, vector<256x128xf32>,
    %c1_83 = arith.constant 1 : index
    %c0_84 = arith.constant 0 : index
    %c0_85 = arith.constant 0 : index
    %68 = vector.load %arg11[%c1_83, %c0_84, %c0_85] : memref<18x18x128xf32, #tpu.memory_space<vmem>>, vector<16x16x128xf32>
    %69 = vector.shape_cast %68 : vector<16x16x128xf32> to vector<256x128xf32>
    %c0_86 = arith.constant 0 : index
    %c384_87 = arith.constant 384 : index
    %70 = vector.load %arg10[%c0_86, %c384_87] : memref<256x1152xf32, #tpu.memory_space<vmem>>, vector<256x128xf32>
    tpu.vector_store %arg10[%c0_86, %c384_87], %69 {strides = array<i32>} : memref<256x1152xf32, #tpu.memory_space<vmem>>, vector<256x128xf32>,
    %c1_88 = arith.constant 1 : index
    %c1_89 = arith.constant 1 : index
    %c0_90 = arith.constant 0 : index
    %71 = vector.load %arg11[%c1_88, %c1_89, %c0_90] : memref<18x18x128xf32, #tpu.memory_space<vmem>>, vector<16x16x128xf32>
    %72 = vector.shape_cast %71 : vector<16x16x128xf32> to vector<256x128xf32>
    %c0_91 = arith.constant 0 : index
    %c512_92 = arith.constant 512 : index
    %73 = vector.load %arg10[%c0_91, %c512_92] : memref<256x1152xf32, #tpu.memory_space<vmem>>, vector<256x128xf32>
    tpu.vector_store %arg10[%c0_91, %c512_92], %72 {strides = array<i32>} : memref<256x1152xf32, #tpu.memory_space<vmem>>, vector<256x128xf32>,
    %c1_93 = arith.constant 1 : index
    %c2_94 = arith.constant 2 : index
    %c0_95 = arith.constant 0 : index
    %74 = vector.load %arg11[%c1_93, %c2_94, %c0_95] : memref<18x18x128xf32, #tpu.memory_space<vmem>>, vector<16x16x128xf32>
    %75 = vector.shape_cast %74 : vector<16x16x128xf32> to vector<256x128xf32>
    %c0_96 = arith.constant 0 : index
    %c640_97 = arith.constant 640 : index
    %76 = vector.load %arg10[%c0_96, %c640_97] : memref<256x1152xf32, #tpu.memory_space<vmem>>, vector<256x128xf32>
    tpu.vector_store %arg10[%c0_96, %c640_97], %75 {strides = array<i32>} : memref<256x1152xf32, #tpu.memory_space<vmem>>, vector<256x128xf32>,
    %c2_98 = arith.constant 2 : index
    %c0_99 = arith.constant 0 : index
    %c0_100 = arith.constant 0 : index
    %77 = vector.load %arg11[%c2_98, %c0_99, %c0_100] : memref<18x18x128xf32, #tpu.memory_space<vmem>>, vector<16x16x128xf32>
    %78 = vector.shape_cast %77 : vector<16x16x128xf32> to vector<256x128xf32>
    %c0_101 = arith.constant 0 : index
    %c768_102 = arith.constant 768 : index
    %79 = vector.load %arg10[%c0_101, %c768_102] : memref<256x1152xf32, #tpu.memory_space<vmem>>, vector<256x128xf32>
    tpu.vector_store %arg10[%c0_101, %c768_102], %78 {strides = array<i32>} : memref<256x1152xf32, #tpu.memory_space<vmem>>, vector<256x128xf32>,
    %c2_103 = arith.constant 2 : index
    %c1_104 = arith.constant 1 : index
    %c0_105 = arith.constant 0 : index
    %80 = vector.load %arg11[%c2_103, %c1_104, %c0_105] : memref<18x18x128xf32, #tpu.memory_space<vmem>>, vector<16x16x128xf32>
    %81 = vector.shape_cast %80 : vector<16x16x128xf32> to vector<256x128xf32>
    %c0_106 = arith.constant 0 : index
    %c896_107 = arith.constant 896 : index
    %82 = vector.load %arg10[%c0_106, %c896_107] : memref<256x1152xf32, #tpu.memory_space<vmem>>, vector<256x128xf32>
    tpu.vector_store %arg10[%c0_106, %c896_107], %81 {strides = array<i32>} : memref<256x1152xf32, #tpu.memory_space<vmem>>, vector<256x128xf32>,
    %c2_108 = arith.constant 2 : index
    %c2_109 = arith.constant 2 : index
    %c0_110 = arith.constant 0 : index
    %83 = vector.load %arg11[%c2_108, %c2_109, %c0_110] : memref<18x18x128xf32, #tpu.memory_space<vmem>>, vector<16x16x128xf32>
    %84 = vector.shape_cast %83 : vector<16x16x128xf32> to vector<256x128xf32>
    %c0_111 = arith.constant 0 : index
    %c1024_112 = arith.constant 1024 : index
    %85 = vector.load %arg10[%c0_111, %c1024_112] : memref<256x1152xf32, #tpu.memory_space<vmem>>, vector<256x128xf32>
    tpu.vector_store %arg10[%c0_111, %c1024_112], %84 {strides = array<i32>} : memref<256x1152xf32, #tpu.memory_space<vmem>>, vector<256x128xf32>,
    %c0_113 = arith.constant 0 : index
    %c0_114 = arith.constant 0 : index
    %86 = vector.load %arg10[%c0_113, %c0_114] : memref<256x1152xf32, #tpu.memory_space<vmem>>, vector<256x1152xf32>
    %c0_115 = arith.constant 0 : index
    %c0_116 = arith.constant 0 : index
    %87 = vector.load %arg4[%c0_115, %c0_116] : memref<1152x128xf32, #tpu.memory_space<vmem>>, vector<1152x128xf32>
    %cst_117 = arith.constant dense<0.000000e+00> : vector<256x128xf32>
    %88 = tpu.matmul %86, %87, %cst_117 {dimension_numbers = #tpu.dot_dimension_numbers<[1], [0], [0], [1], [0, 0, 1, 1], [], []>} : vector<256x1152xf32>, vector<1152x128xf32>, vector<256x128xf32> -> vector<256x128xf32>
    %c0_118 = arith.constant 0 : index
    %c0_119 = arith.constant 0 : index
    %89 = vector.load %arg7[%c0_118, %c0_119] : memref<1x128xf32, #tpu.memory_space<vmem>>, vector<1x128xf32>
    %90 = vector.broadcast %89 : vector<1x128xf32> to vector<256x128xf32>
    %91 = arith.mulf %88, %90 : vector<256x128xf32>
    %c0_120 = arith.constant 0 : index
    %c0_121 = arith.constant 0 : index
    %92 = vector.load %arg8[%c0_120, %c0_121] : memref<1x128xf32, #tpu.memory_space<vmem>>, vector<1x128xf32>
    %93 = vector.broadcast %92 : vector<1x128xf32> to vector<256x128xf32>
    %94 = arith.addf %91, %93 : vector<256x128xf32>
    %c0_122 = arith.constant 0 : index
    %c0_123 = arith.constant 0 : index
    %c0_124 = arith.constant 0 : index
    %c0_125 = arith.constant 0 : index
    %95 = vector.load %arg2[%c0_122, %c0_123, %c0_124, %c0_125] : memref<1x16x16x128xf32, #tpu.memory_space<vmem>>, vector<1x16x16x128xf32>
    %96 = vector.shape_cast %95 : vector<1x16x16x128xf32> to vector<16x16x128xf32>
    %97 = vector.shape_cast %96 : vector<16x16x128xf32> to vector<256x128xf32>
    %98 = arith.addf %94, %97 : vector<256x128xf32>
    %cst_126 = arith.constant 0.000000e+00 : f32
    %99 = vector.broadcast %cst_126 : f32 to vector<256x128xf32>
    %100 = arith.maximumf %98, %99 : vector<256x128xf32>
    %c0_127 = arith.constant 0 : index
    %c0_128 = arith.constant 0 : index
    %c0_129 = arith.constant 0 : index
    %101 = vector.load %arg9[%c0_127, %c0_128, %c0_129] : memref<1x256x128xf32, #tpu.memory_space<vmem>>, vector<1x256x128xf32>
    %102 = vector.shape_cast %101 : vector<1x256x128xf32> to vector<256x128xf32>
    %103 = vector.shape_cast %100 : vector<256x128xf32> to vector<1x256x128xf32>
    tpu.vector_store %arg9[%c0_127, %c0_128, %c0_129], %103 {strides = array<i32>} : memref<1x256x128xf32, #tpu.memory_space<vmem>>, vector<1x256x128xf32>,
    return
  }
  func.func @transform_0(%arg0: i32) -> (i32, i32, i32, i32) {
    %c0_i32 = arith.constant 0 : i32
    %c0_i32_0 = arith.constant 0 : i32
    %c0_i32_1 = arith.constant 0 : i32
    %c0_i32_2 = arith.constant 0 : i32
    return %arg0, %c0_i32, %c0_i32_0, %c0_i32_1 : i32, i32, i32, i32
  }
  func.func @transform_1(%arg0: i32) -> (i32, i32, i32, i32) {
    %c0_i32 = arith.constant 0 : i32
    %c0_i32_0 = arith.constant 0 : i32
    %c0_i32_1 = arith.constant 0 : i32
    %c0_i32_2 = arith.constant 0 : i32
    return %arg0, %c0_i32, %c0_i32_0, %c0_i32_1 : i32, i32, i32, i32
  }
  func.func @transform_2(%arg0: i32) -> (i32, i32) {
    %c0_i32 = arith.constant 0 : i32
    %c0_i32_0 = arith.constant 0 : i32
    %c0_i32_1 = arith.constant 0 : i32
    return %c0_i32, %c0_i32_0 : i32, i32
  }
  func.func @transform_3(%arg0: i32) -> (i32, i32) {
    %c0_i32 = arith.constant 0 : i32
    %c0_i32_0 = arith.constant 0 : i32
    %c0_i32_1 = arith.constant 0 : i32
    return %c0_i32, %c0_i32_0 : i32, i32
  }
  func.func @transform_4(%arg0: i32) -> (i32, i32) {
    %c0_i32 = arith.constant 0 : i32
    %c0_i32_0 = arith.constant 0 : i32
    %c0_i32_1 = arith.constant 0 : i32
    return %c0_i32, %c0_i32_0 : i32, i32
  }
  func.func @transform_5(%arg0: i32) -> (i32, i32) {
    %c0_i32 = arith.constant 0 : i32
    %c0_i32_0 = arith.constant 0 : i32
    %c0_i32_1 = arith.constant 0 : i32
    return %c0_i32, %c0_i32_0 : i32, i32
  }
  func.func @transform_6(%arg0: i32) -> (i32, i32) {
    %c0_i32 = arith.constant 0 : i32
    %c0_i32_0 = arith.constant 0 : i32
    %c0_i32_1 = arith.constant 0 : i32
    return %c0_i32, %c0_i32_0 : i32, i32
  }
  func.func @transform_7(%arg0: i32) -> (i32, i32) {
    %c0_i32 = arith.constant 0 : i32
    %c0_i32_0 = arith.constant 0 : i32
    %c0_i32_1 = arith.constant 0 : i32
    return %c0_i32, %c0_i32_0 : i32, i32
  }
  func.func @transform_8(%arg0: i32) -> (i32, i32, i32) {
    %c0_i32 = arith.constant 0 : i32
    %c0_i32_0 = arith.constant 0 : i32
    %c0_i32_1 = arith.constant 0 : i32
    return %arg0, %c0_i32, %c0_i32_0 : i32, i32, i32
  }
}

</mosaic_0001>

<llo_original>
// kernel: basic_block_forward.1
$region0: #{basic_block_forward.1}
  #allocation0 [shape = 'u32[]', space=smem, size = 0x4, offset = 0x4, fixed_abs, tag = 'smem constant byte address 0x4 - core index']
  #allocation1 [shape = 'u32[72,128]{1,0:T(1,128)}', space=vmem, size = 0x9000, scoped, tag = 'internal scratch']
  #allocation2 [shape = 'f32[256,1152]{1,0:T(8,128)}', space=vmem, size = 0x120000, scoped, tag = 'scratch operand']
  #allocation3 [shape = 'f32[18,18,128]{2,1,0:T(8,128)}', space=vmem, size = 0x36000, scoped, tag = 'scratch operand']
  %s0 = inlined_call_operand.vmem [shape: f32[2,18,18,128], index: 0, kind: input, shape index: {}]
  %s1 = inlined_call_operand.vmem [shape: f32[2,16,16,128], index: 1, kind: input, shape index: {}]
  %s2 = inlined_call_operand.vmem [shape: f32[1152,128], index: 2, kind: input, shape index: {}]
  %s3 = inlined_call_operand.vmem [shape: f32[1152,128], index: 3, kind: input, shape index: {}]
  %s4 = inlined_call_operand.vmem [shape: f32[1,128], index: 4, kind: input, shape index: {}]
  %s5 = inlined_call_operand.vmem [shape: f32[1,128], index: 5, kind: input, shape index: {}]
  %s6 = inlined_call_operand.vmem [shape: f32[1,128], index: 6, kind: input, shape index: {}]
  %s7 = inlined_call_operand.vmem [shape: f32[1,128], index: 7, kind: input, shape index: {}]
  %s8 = inlined_call_operand.vmem [shape: f32[2,256,128], index: 8, kind: output, shape index: {}]
  %s9 = sld [smem:[#allocation0]]
  $region65: #{basic_block_forward.1} parent=0
    _
  %s11 = ssub.s32 1, %s9
  %s12 = scalar_select 0, %s11, %s9
  loop: start=0, step=1, limit=4
  $region2: #{basic_block_forward.1} parent=0 // loop_pre_header
    _
  $region3: #{basic_block_forward.1} parent=0 // loop_header
    %s14 = sphi 0, %s18
    %p15 = scmp.ge.s32.totalorder %s14, 4
    %s24 = sphi 0, %s26
    %s27 = sphi 0, %s24
    %s28 = sphi 0, %s27
    %s44 = sphi 0, %s28
    %s50 = sphi 0, %s52
    %s53 = sphi 0, %s50
    %s54 = sphi 0, %s53
    %s70 = sphi 0, %s54
    %s74 = sphi 0, %s74
    %s76 = sphi 0, %s74
    %s77 = sphi 0, %s76
    %s91 = sphi 0, %s77
    %s95 = sphi 0, %s95
    %s97 = sphi 0, %s95
    %s98 = sphi 0, %s97
    %s112 = sphi 0, %s98
    %s116 = sphi 0, %s116
    %s118 = sphi 0, %s116
    %s119 = sphi 0, %s118
    %s133 = sphi 0, %s119
    %s137 = sphi 0, %s137
    %s139 = sphi 0, %s137
    %s140 = sphi 0, %s139
    %s154 = sphi 0, %s140
    %s158 = sphi 0, %s158
    %s160 = sphi 0, %s158
    %s161 = sphi 0, %s160
    %s175 = sphi 0, %s161
    %s179 = sphi 0, %s179
    %s181 = sphi 0, %s179
    %s182 = sphi 0, %s181
    %s196 = sphi 0, %s182
    %s202 = sphi 0, %s204
    %s205 = sphi 0, %s202
    %s206 = sphi 0, %s205
    %s222 = sphi 0, %s206
  $region4: #{basic_block_forward.1} parent=0 // loop_header_branch
    %17 = sbr.rel (%p15) target = $region8
  $region5: #{basic_block_forward.1} parent=0 // loop_body
    %s19 = ssub.s32 %s14, 1
    %s20 = ssub.s32 %s14, 2
    %s21 = sadd.s32 %s14, 1
    %s22 = ssub.s32 %s14, %s21
    %p23 = scmp.eq.s32.totalorder %s22, 0
    %s25 = sadd.s32 %s24, 1
    %s26 = scalar_select %p23, %s24, %s25
    %p29 = pneg %p23
    %p30 = scmp.eq.s32.totalorder %s14, 1
    %p31 = por %p29, %p30
    %p32 = scmp.ne.s32.totalorder %s24, %s27
    %p33 = scmp.eq.s32.totalorder %s14, 0
    %p34 = por %p32, %p33
    %p35 = scmp.ne.s32.totalorder %s24, %s27
    %p36 = scmp.eq.s32.totalorder %s19, 1
    %p37 = por %p35, %p36
    %p38 = scmp.ne.s32.totalorder %s27, %s28
    %p39 = scmp.eq.s32.totalorder %s19, 0
    %p40 = por %p38, %p39
    %p41 = scmp.ne.s32.totalorder %s27, %s28
    %p42 = scmp.eq.s32.totalorder %s20, 1
    %p43 = por %p41, %p42
    %p45 = scmp.ne.s32.totalorder %s28, %s44
    %p46 = scmp.eq.s32.totalorder %s20, 0
    %p47 = por %p45, %p46
    %s48 = ssub.s32 %s14, %s21
    %p49 = scmp.eq.s32.totalorder %s48, 0
    %s51 = sadd.s32 %s50, 1
    %s52 = scalar_select %p49, %s50, %s51
    %p55 = pneg %p49
    %p56 = scmp.eq.s32.totalorder %s14, 1
    %p57 = por %p55, %p56
    %p58 = scmp.ne.s32.totalorder %s50, %s53
    %p59 = scmp.eq.s32.totalorder %s14, 0
    %p60 = por %p58, %p59
    %p61 = scmp.ne.s32.totalorder %s50, %s53
    %p62 = scmp.eq.s32.totalorder %s19, 1
    %p63 = por %p61, %p62
    %p64 = scmp.ne.s32.totalorder %s53, %s54
    %p65 = scmp.eq.s32.totalorder %s19, 0
    %p66 = por %p64, %p65
    %p67 = scmp.ne.s32.totalorder %s53, %s54
    %p68 = scmp.eq.s32.totalorder %s20, 1
    %p69 = por %p67, %p68
    %p71 = scmp.ne.s32.totalorder %s54, %s70
    %p72 = scmp.eq.s32.totalorder %s20, 0
    %p73 = por %p71, %p72
    %s75 = sadd.s32 %s74, 1
    %p78 = scmp.eq.s32.totalorder %s14, 1
    %p79 = scmp.ne.s32.totalorder %s74, %s76
    %p80 = scmp.eq.s32.totalorder %s14, 0
    %p81 = por %p79, %p80
    %p82 = scmp.ne.s32.totalorder %s74, %s76
    %p83 = scmp.eq.s32.totalorder %s19, 1
    %p84 = por %p82, %p83
    %p85 = scmp.ne.s32.totalorder %s76, %s77
    %p86 = scmp.eq.s32.totalorder %s19, 0
    %p87 = por %p85, %p86
    %p88 = scmp.ne.s32.totalorder %s76, %s77
    %p89 = scmp.eq.s32.totalorder %s20, 1
    %p90 = por %p88, %p89
    %p92 = scmp.ne.s32.totalorder %s77, %s91
    %p93 = scmp.eq.s32.totalorder %s20, 0
    %p94 = por %p92, %p93
    %s96 = sadd.s32 %s95, 1
    %p99 = scmp.eq.s32.totalorder %s14, 1
    %p100 = scmp.ne.s32.totalorder %s95, %s97
    %p101 = scmp.eq.s32.totalorder %s14, 0
    %p102 = por %p100, %p101
    %p103 = scmp.ne.s32.totalorder %s95, %s97
    %p104 = scmp.eq.s32.totalorder %s19, 1
    %p105 = por %p103, %p104
    %p106 = scmp.ne.s32.totalorder %s97, %s98
    %p107 = scmp.eq.s32.totalorder %s19, 0
    %p108 = por %p106, %p107
    %p109 = scmp.ne.s32.totalorder %s97, %s98
    %p110 = scmp.eq.s32.totalorder %s20, 1
    %p111 = por %p109, %p110
    %p113 = scmp.ne.s32.totalorder %s98, %s112
    %p114 = scmp.eq.s32.totalorder %s20, 0
    %p115 = por %p113, %p114
    %s117 = sadd.s32 %s116, 1
    %p120 = scmp.eq.s32.totalorder %s14, 1
    %p121 = scmp.ne.s32.totalorder %s116, %s118
    %p122 = scmp.eq.s32.totalorder %s14, 0
    %p123 = por %p121, %p122
    %p124 = scmp.ne.s32.totalorder %s116, %s118
    %p125 = scmp.eq.s32.totalorder %s19, 1
    %p126 = por %p124, %p125
    %p127 = scmp.ne.s32.totalorder %s118, %s119
    %p128 = scmp.eq.s32.totalorder %s19, 0
    %p129 = por %p127, %p128
    %p130 = scmp.ne.s32.totalorder %s118, %s119
    %p131 = scmp.eq.s32.totalorder %s20, 1
    %p132 = por %p130, %p131
    %p134 = scmp.ne.s32.totalorder %s119, %s133
    %p135 = scmp.eq.s32.totalorder %s20, 0
    %p136 = por %p134, %p135
    %s138 = sadd.s32 %s137, 1
    %p141 = scmp.eq.s32.totalorder %s14, 1
    %p142 = scmp.ne.s32.totalorder %s137, %s139
    %p143 = scmp.eq.s32.totalorder %s14, 0
    %p144 = por %p142, %p143
    %p145 = scmp.ne.s32.totalorder %s137, %s139
    %p146 = scmp.eq.s32.totalorder %s19, 1
    %p147 = por %p145, %p146
    %p148 = scmp.ne.s32.totalorder %s139, %s140
    %p149 = scmp.eq.s32.totalorder %s19, 0
    %p150 = por %p148, %p149
    %p151 = scmp.ne.s32.totalorder %s139, %s140
    %p152 = scmp.eq.s32.totalorder %s20, 1
    %p153 = por %p151, %p152
    %p155 = scmp.ne.s32.totalorder %s140, %s154
    %p156 = scmp.eq.s32.totalorder %s20, 0
    %p157 = por %p155, %p156
    %s159 = sadd.s32 %s158, 1
    %p162 = scmp.eq.s32.totalorder %s14, 1
    %p163 = scmp.ne.s32.totalorder %s158, %s160
    %p164 = scmp.eq.s32.totalorder %s14, 0
    %p165 = por %p163, %p164
    %p166 = scmp.ne.s32.totalorder %s158, %s160
    %p167 = scmp.eq.s32.totalorder %s19, 1
    %p168 = por %p166, %p167
    %p169 = scmp.ne.s32.totalorder %s160, %s161
    %p170 = scmp.eq.s32.totalorder %s19, 0
    %p171 = por %p169, %p170
    %p172 = scmp.ne.s32.totalorder %s160, %s161
    %p173 = scmp.eq.s32.totalorder %s20, 1
    %p174 = por %p172, %p173
    %p176 = scmp.ne.s32.totalorder %s161, %s175
    %p177 = scmp.eq.s32.totalorder %s20, 0
    %p178 = por %p176, %p177
    %s180 = sadd.s32 %s179, 1
    %p183 = scmp.eq.s32.totalorder %s14, 1
    %p184 = scmp.ne.s32.totalorder %s179, %s181
    %p185 = scmp.eq.s32.totalorder %s14, 0
    %p186 = por %p184, %p185
    %p187 = scmp.ne.s32.totalorder %s179, %s181
    %p188 = scmp.eq.s32.totalorder %s19, 1
    %p189 = por %p187, %p188
    %p190 = scmp.ne.s32.totalorder %s181, %s182
    %p191 = scmp.eq.s32.totalorder %s19, 0
    %p192 = por %p190, %p191
    %p193 = scmp.ne.s32.totalorder %s181, %s182
    %p194 = scmp.eq.s32.totalorder %s20, 1
    %p195 = por %p193, %p194
    %p197 = scmp.ne.s32.totalorder %s182, %s196
    %p198 = scmp.eq.s32.totalorder %s20, 0
    %p199 = por %p197, %p198
    %s200 = ssub.s32 %s14, %s21
    %p201 = scmp.eq.s32.totalorder %s200, 0
    %s203 = sadd.s32 %s202, 1
    %s204 = scalar_select %p201, %s202, %s203
    %p207 = pneg %p201
    %p208 = scmp.eq.s32.totalorder %s14, 1
    %p209 = por %p207, %p208
    %p210 = scmp.ne.s32.totalorder %s202, %s205
    %p211 = scmp.eq.s32.totalorder %s14, 0
    %p212 = por %p210, %p211
    %p213 = scmp.ne.s32.totalorder %s202, %s205
    %p214 = scmp.eq.s32.totalorder %s19, 1
    %p215 = por %p213, %p214
    %p216 = scmp.ne.s32.totalorder %s205, %s206
    %p217 = scmp.eq.s32.totalorder %s19, 0
    %p218 = por %p216, %p217
    %p219 = scmp.ne.s32.totalorder %s205, %s206
    %p220 = scmp.eq.s32.totalorder %s20, 1
    %p221 = por %p219, %p220
    %p223 = scmp.ne.s32.totalorder %s206, %s222
    %p224 = scmp.eq.s32.totalorder %s20, 0
    %p225 = por %p223, %p224
    %p226 = scmp.le.s32.totalorder 1, %s14
    %p227 = scmp.lt.s32.totalorder %s14, 3
    %p228 = pnand %p226, %p227
    %p229 = pneg %p228
    // Predicated region
    $region9: #{basic_block_forward.1} parent=5 // pred_check
      _
    $region10: #{basic_block_forward.1} parent=5 // pred_check_branch
      %231 = sbr.rel (%p228) target = $region12
    $region11: #{basic_block_forward.1} parent=5 // pred_region
      %s232 = ssub.s32 %s14, 1
      // Predicated region
      $region13: #{basic_block_forward.1} parent=11 // pred_check
        %p233 = pneg %p87
      $region14: #{basic_block_forward.1} parent=11 // pred_check_branch
        %235 = sbr.rel (%p233) target = $region16
      $region15: #{basic_block_forward.1} parent=11 // pred_region
        _
      $region16: #{basic_block_forward.1} parent=11 // pred_fallthru
        _
      // Predicated region
      $region17: #{basic_block_forward.1} parent=11 // pred_check
        %p236 = pneg %p108
      $region18: #{basic_block_forward.1} parent=11 // pred_check_branch
        %238 = sbr.rel (%p236) target = $region20
      $region19: #{basic_block_forward.1} parent=11 // pred_region
        _
      $region20: #{basic_block_forward.1} parent=11 // pred_fallthru
        _
      // Predicated region
      $region21: #{basic_block_forward.1} parent=11 // pred_check
        %p239 = pneg %p129
      $region22: #{basic_block_forward.1} parent=11 // pred_check_branch
        %241 = sbr.rel (%p239) target = $region24
      $region23: #{basic_block_forward.1} parent=11 // pred_region
        _
      $region24: #{basic_block_forward.1} parent=11 // pred_fallthru
        _
      // Predicated region
      $region25: #{basic_block_forward.1} parent=11 // pred_check
        %p242 = pneg %p150
      $region26: #{basic_block_forward.1} parent=11 // pred_check_branch
        %244 = sbr.rel (%p242) target = $region28
      $region27: #{basic_block_forward.1} parent=11 // pred_region
        _
      $region28: #{basic_block_forward.1} parent=11 // pred_fallthru
        _
      // Predicated region
      $region29: #{basic_block_forward.1} parent=11 // pred_check
        %p245 = pneg %p171
      $region30: #{basic_block_forward.1} parent=11 // pred_check_branch
        %247 = sbr.rel (%p245) target = $region32
      $region31: #{basic_block_forward.1} parent=11 // pred_region
        _
      $region32: #{basic_block_forward.1} parent=11 // pred_fallthru
        _
      // Predicated region
      $region33: #{basic_block_forward.1} parent=11 // pred_check
        %p248 = pneg %p192
      $region34: #{basic_block_forward.1} parent=11 // pred_check_branch
        %250 = sbr.rel (%p248) target = $region36
      $region35: #{basic_block_forward.1} parent=11 // pred_region
        _
      $region36: #{basic_block_forward.1} parent=11 // pred_fallthru
        _
    $region12: #{basic_block_forward.1} parent=5 // pred_fallthru
      _
    %p251 = scmp.lt.s32.totalorder %s14, 2
    // Predicated region
    $region37: #{basic_block_forward.1} parent=5 // pred_check
      %p252 = pneg %p251
    $region38: #{basic_block_forward.1} parent=5 // pred_check_branch
      %254 = sbr.rel (%p252) target = $region40
    $region39: #{basic_block_forward.1} parent=5 // pred_region
      // Predicated region
      $region41: #{basic_block_forward.1} parent=39 // pred_check
        %p255 = pneg %p34
      $region42: #{basic_block_forward.1} parent=39 // pred_check_branch
        %257 = sbr.rel (%p255) target = $region44
      $region43: #{basic_block_forward.1} parent=39 // pred_region
        %p258 = scmp.lt.s32.totalorder %s14, 1
        %s259 = scalar_select %p258, %s14, 1
        %s260 = smul.addr %s259, 54
        %s261 = smul.addr %s260, 8
        %s262 = scalar_lea.vmem %s0, %s261
      $region44: #{basic_block_forward.1} parent=39 // pred_fallthru
        _
      // Predicated region
      $region45: #{basic_block_forward.1} parent=39 // pred_check
        %p263 = pneg %p60
      $region46: #{basic_block_forward.1} parent=39 // pred_check_branch
        %265 = sbr.rel (%p263) target = $region48
      $region47: #{basic_block_forward.1} parent=39 // pred_region
        %p266 = scmp.lt.s32.totalorder %s14, 1
        %s267 = scalar_select %p266, %s14, 1
        %s268 = smul.addr %s267, 32
        %s269 = smul.addr %s268, 8
        %s270 = scalar_lea.vmem %s1, %s269
      $region48: #{basic_block_forward.1} parent=39 // pred_fallthru
        _
    $region40: #{basic_block_forward.1} parent=5 // pred_fallthru
      _
    %p271 = scmp.le.s32.totalorder 1, %s14
    %p272 = scmp.lt.s32.totalorder %s14, 3
    %p273 = pnand %p271, %p272
    %p274 = pneg %p273
    // Predicated region
    $region49: #{basic_block_forward.1} parent=5 // pred_check
      _
    $region50: #{basic_block_forward.1} parent=5 // pred_check_branch
      %276 = sbr.rel (%p273) target = $region52
    $region51: #{basic_block_forward.1} parent=5 // pred_region
      %s277 = ssub.s32 %s14, 1
      %p278 = scmp.lt.s32.totalorder %s19, 1
      %s279 = scalar_select %p278, %s19, 1
      %s280 = smul.addr %s279, 54
      %s281 = smul.addr %s280, 8
      %s282 = scalar_lea.vmem %s0, %s281
      %p283 = pneg %p40
      %p284 = pneg %p37
      %p285 = scmp.lt.s32.totalorder %s19, 1
      %s286 = scalar_select %p285, %s19, 1
      %s287 = smul.addr %s286, 32
      %s288 = smul.addr %s287, 8
      %s289 = scalar_lea.vmem %s1, %s288
      %p290 = pneg %p66
      %p291 = pneg %p63
      %p292 = pneg %p87
      %p293 = pneg %p84
      %p294 = pneg %p108
      %p295 = pneg %p105
      %p296 = pneg %p129
      %p297 = pneg %p126
      %p298 = pneg %p150
      %p299 = pneg %p147
      %p300 = pneg %p171
      %p301 = pneg %p168
      %p302 = pneg %p192
      %p303 = pneg %p189
      %p304 = pneg %p218
      %p305 = pneg %p215
      %p306 = scmp.lt.s32.totalorder %s19, 1
      %s307 = scalar_select %p306, %s19, 1
      %s308 = smul.addr %s307, 32
      %s309 = smul.addr %s308, 8
      %s310 = scalar_lea.vmem %s8, %s309
      %p311 = scmp.lt.s32.totalorder %s19, 1
      %s312 = scalar_select %p311, %s19, 1
      %s313 = smul.addr %s312, 54
      %s314 = smul.addr %s313, 8
      %s315 = scalar_lea.vmem %s0, %s314
      %p316 = scmp.lt.s32.totalorder %s19, 1
      %s317 = scalar_select %p316, %s19, 1
      %s318 = smul.addr %s317, 32
      %s319 = smul.addr %s318, 8
      %s320 = scalar_lea.vmem %s1, %s319
      %p321 = scmp.lt.s32.totalorder %s19, 1
      %s322 = scalar_select %p321, %s19, 1
      %s323 = smul.addr %s322, 32
      %s324 = smul.addr %s323, 8
      %s325 = scalar_lea.vmem %s8, %s324
      %v326 = vld [vmem:[%s315] sm:$0xff]
      %v327 = vld [vmem:[%s315 + $0x8] sm:$0xff]
      %v328 = vld [vmem:[%s315 + $0x18] sm:$0xff]
      %v329 = vld [vmem:[%s315 + $0x20] sm:$0xff]
      %v330 = vld [vmem:[%s315 + $0x30] sm:$0xff]
      %v331 = vld [vmem:[%s315 + $0x38] sm:$0xff]
      %v332 = vld [vmem:[%s315 + $0x48] sm:$0xff]
      %v333 = vld [vmem:[%s315 + $0x50] sm:$0xff]
      %v334 = vld [vmem:[%s315 + $0x60] sm:$0xff]
      %v335 = vld [vmem:[%s315 + $0x68] sm:$0xff]
      %v336 = vld [vmem:[%s315 + $0x78] sm:$0xff]
      %v337 = vld [vmem:[%s315 + $0x80] sm:$0xff]
      %v338 = vld [vmem:[%s315 + $0x90] sm:$0xff]
      %v339 = vld [vmem:[%s315 + $0x98] sm:$0xff]
      %v340 = vld [vmem:[%s315 + $0xa8] sm:$0xff]
      %v341 = vld [vmem:[%s315 + $0xb0] sm:$0xff]
      %v342 = vld [vmem:[%s315 + $0xc0] sm:$0xff]
      %v343 = vld [vmem:[%s315 + $0xc8] sm:$0xff]
      %v344 = vld [vmem:[%s315 + $0xd8] sm:$0xff]
      %v345 = vld [vmem:[%s315 + $0xe0] sm:$0xff]
      %v346 = vld [vmem:[%s315 + $0xf0] sm:$0xff]
      %v347 = vld [vmem:[%s315 + $0xf8] sm:$0xff]
      %v348 = vld [vmem:[%s315 + $0x108] sm:$0xff]
      %v349 = vld [vmem:[%s315 + $0x110] sm:$0xff]
      %v350 = vld [vmem:[%s315 + $0x120] sm:$0xff]
      %v351 = vld [vmem:[%s315 + $0x128] sm:$0xff]
      %v352 = vld [vmem:[%s315 + $0x138] sm:$0xff]
      %v353 = vld [vmem:[%s315 + $0x140] sm:$0xff]
      %v354 = vld [vmem:[%s315 + $0x150] sm:$0xff]
      %v355 = vld [vmem:[%s315 + $0x158] sm:$0xff]
      %v356 = vld [vmem:[%s315 + $0x168] sm:$0xff]
      %v357 = vld [vmem:[%s315 + $0x170] sm:$0xff]
      %358 = vst [vmem:[#allocation2] sm:$0xff] %v326
      %359 = vst [vmem:[#allocation2 + $0x48] sm:$0xff] %v327
      %360 = vst [vmem:[#allocation2 + $0x90] sm:$0xff] %v328
      %361 = vst [vmem:[#allocation2 + $0xd8] sm:$0xff] %v329
      %362 = vst [vmem:[#allocation2 + $0x120] sm:$0xff] %v330
      %363 = vst [vmem:[#allocation2 + $0x168] sm:$0xff] %v331
      %364 = vst [vmem:[#allocation2 + $0x1b0] sm:$0xff] %v332
      %365 = vst [vmem:[#allocation2 + $0x1f8] sm:$0xff] %v333
      %366 = vst [vmem:[#allocation2 + $0x240] sm:$0xff] %v334
      %367 = vst [vmem:[#allocation2 + $0x288] sm:$0xff] %v335
      %368 = vst [vmem:[#allocation2 + $0x2d0] sm:$0xff] %v336
      %369 = vst [vmem:[#allocation2 + $0x318] sm:$0xff] %v337
      %370 = vst [vmem:[#allocation2 + $0x360] sm:$0xff] %v338
      %371 = vst [vmem:[#allocation2 + $0x3a8] sm:$0xff] %v339
      %372 = vst [vmem:[#allocation2 + $0x3f0] sm:$0xff] %v340
      %373 = vst [vmem:[#allocation2 + $0x438] sm:$0xff] %v341
      %374 = vst [vmem:[#allocation2 + $0x480] sm:$0xff] %v342
      %375 = vst [vmem:[#allocation2 + $0x4c8] sm:$0xff] %v343
      %376 = vst [vmem:[#allocation2 + $0x510] sm:$0xff] %v344
      %377 = vst [vmem:[#allocation2 + $0x558] sm:$0xff] %v345
      %378 = vst [vmem:[#allocation2 + $0x5a0] sm:$0xff] %v346
      %379 = vst [vmem:[#allocation2 + $0x5e8] sm:$0xff] %v347
      %380 = vst [vmem:[#allocation2 + $0x630] sm:$0xff] %v348
      %381 = vst [vmem:[#allocation2 + $0x678] sm:$0xff] %v349
      %382 = vst [vmem:[#allocation2 + $0x6c0] sm:$0xff] %v350
      %383 = vst [vmem:[#allocation2 + $0x708] sm:$0xff] %v351
      %384 = vst [vmem:[#allocation2 + $0x750] sm:$0xff] %v352
      %385 = vst [vmem:[#allocation2 + $0x798] sm:$0xff] %v353
      %386 = vst [vmem:[#allocation2 + $0x7e0] sm:$0xff] %v354
      %387 = vst [vmem:[#allocation2 + $0x828] sm:$0xff] %v355
      %388 = vst [vmem:[#allocation2 + $0x870] sm:$0xff] %v356
      %389 = vst [vmem:[#allocation2 + $0x8b8] sm:$0xff] %v357
      %v390 = vld [vmem:[%s315 + $0x1] sm:$0xff]
      %v391 = vld [vmem:[%s315 + $0x9] sm:$0xff]
      %v392 = vld [vmem:[%s315 + $0x19] sm:$0xff]
      %v393 = vld [vmem:[%s315 + $0x21] sm:$0xff]
      %v394 = vld [vmem:[%s315 + $0x31] sm:$0xff]
      %v395 = vld [vmem:[%s315 + $0x39] sm:$0xff]
      %v396 = vld [vmem:[%s315 + $0x49] sm:$0xff]
      %v397 = vld [vmem:[%s315 + $0x51] sm:$0xff]
      %v398 = vld [vmem:[%s315 + $0x61] sm:$0xff]
      %v399 = vld [vmem:[%s315 + $0x69] sm:$0xff]
      %v400 = vld [vmem:[%s315 + $0x79] sm:$0xff]
      %v401 = vld [vmem:[%s315 + $0x81] sm:$0xff]
      %v402 = vld [vmem:[%s315 + $0x91] sm:$0xff]
      %v403 = vld [vmem:[%s315 + $0x99] sm:$0xff]
      %v404 = vld [vmem:[%s315 + $0xa9] sm:$0xff]
      %v405 = vld [vmem:[%s315 + $0xb1] sm:$0xff]
      %v406 = vld [vmem:[%s315 + $0xc1] sm:$0xff]
      %v407 = vld [vmem:[%s315 + $0xc9] sm:$0xff]
      %v408 = vld [vmem:[%s315 + $0xd9] sm:$0xff]
      %v409 = vld [vmem:[%s315 + $0xe1] sm:$0xff]
      %v410 = vld [vmem:[%s315 + $0xf1] sm:$0xff]
      %v411 = vld [vmem:[%s315 + $0xf9] sm:$0xff]
      %v412 = vld [vmem:[%s315 + $0x109] sm:$0xff]
      %v413 = vld [vmem:[%s315 + $0x111] sm:$0xff]
      %v414 = vld [vmem:[%s315 + $0x121] sm:$0xff]
      %v415 = vld [vmem:[%s315 + $0x129] sm:$0xff]
      %v416 = vld [vmem:[%s315 + $0x139] sm:$0xff]
      %v417 = vld [vmem:[%s315 + $0x141] sm:$0xff]
      %v418 = vld [vmem:[%s315 + $0x151] sm:$0xff]
      %v419 = vld [vmem:[%s315 + $0x159] sm:$0xff]
      %v420 = vld [vmem:[%s315 + $0x169] sm:$0xff]
      %v421 = vld [vmem:[%s315 + $0x171] sm:$0xff]
      %422 = vst [vmem:[#allocation2 + $0x8] sm:$0xff] %v390
      %423 = vst [vmem:[#allocation2 + $0x50] sm:$0xff] %v391
      %424 = vst [vmem:[#allocation2 + $0x98] sm:$0xff] %v392
      %425 = vst [vmem:[#allocation2 + $0xe0] sm:$0xff] %v393
      %426 = vst [vmem:[#allocation2 + $0x128] sm:$0xff] %v394
      %427 = vst [vmem:[#allocation2 + $0x170] sm:$0xff] %v395
      %428 = vst [vmem:[#allocation2 + $0x1b8] sm:$0xff] %v396
      %429 = vst [vmem:[#allocation2 + $0x200] sm:$0xff] %v397
      %430 = vst [vmem:[#allocation2 + $0x248] sm:$0xff] %v398
      %431 = vst [vmem:[#allocation2 + $0x290] sm:$0xff] %v399
      %432 = vst [vmem:[#allocation2 + $0x2d8] sm:$0xff] %v400
      %433 = vst [vmem:[#allocation2 + $0x320] sm:$0xff] %v401
      %434 = vst [vmem:[#allocation2 + $0x368] sm:$0xff] %v402
      %435 = vst [vmem:[#allocation2 + $0x3b0] sm:$0xff] %v403
      %436 = vst [vmem:[#allocation2 + $0x3f8] sm:$0xff] %v404
      %437 = vst [vmem:[#allocation2 + $0x440] sm:$0xff] %v405
      %438 = vst [vmem:[#allocation2 + $0x488] sm:$0xff] %v406
      %439 = vst [vmem:[#allocation2 + $0x4d0] sm:$0xff] %v407
      %440 = vst [vmem:[#allocation2 + $0x518] sm:$0xff] %v408
      %441 = vst [vmem:[#allocation2 + $0x560] sm:$0xff] %v409
      %442 = vst [vmem:[#allocation2 + $0x5a8] sm:$0xff] %v410
      %443 = vst [vmem:[#allocation2 + $0x5f0] sm:$0xff] %v411
      %444 = vst [vmem:[#allocation2 + $0x638] sm:$0xff] %v412
      %445 = vst [vmem:[#allocation2 + $0x680] sm:$0xff] %v413
      %446 = vst [vmem:[#allocation2 + $0x6c8] sm:$0xff] %v414
      %447 = vst [vmem:[#allocation2 + $0x710] sm:$0xff] %v415
      %448 = vst [vmem:[#allocation2 + $0x758] sm:$0xff] %v416
      %449 = vst [vmem:[#allocation2 + $0x7a0] sm:$0xff] %v417
      %450 = vst [vmem:[#allocation2 + $0x7e8] sm:$0xff] %v418
      %451 = vst [vmem:[#allocation2 + $0x830] sm:$0xff] %v419
      %452 = vst [vmem:[#allocation2 + $0x878] sm:$0xff] %v420
      %453 = vst [vmem:[#allocation2 + $0x8c0] sm:$0xff] %v421
      %v454 = vld [vmem:[%s315 + $0x2] sm:$0xff]
      %v455 = vld [vmem:[%s315 + $0xa] sm:$0xff]
      %v456 = vld [vmem:[%s315 + $0x1a] sm:$0xff]
      %v457 = vld [vmem:[%s315 + $0x22] sm:$0xff]
      %v458 = vld [vmem:[%s315 + $0x32] sm:$0xff]
      %v459 = vld [vmem:[%s315 + $0x3a] sm:$0xff]
      %v460 = vld [vmem:[%s315 + $0x4a] sm:$0xff]
      %v461 = vld [vmem:[%s315 + $0x52] sm:$0xff]
      %v462 = vld [vmem:[%s315 + $0x62] sm:$0xff]
      %v463 = vld [vmem:[%s315 + $0x6a] sm:$0xff]
      %v464 = vld [vmem:[%s315 + $0x7a] sm:$0xff]
      %v465 = vld [vmem:[%s315 + $0x82] sm:$0xff]
      %v466 = vld [vmem:[%s315 + $0x92] sm:$0xff]
      %v467 = vld [vmem:[%s315 + $0x9a] sm:$0xff]
      %v468 = vld [vmem:[%s315 + $0xaa] sm:$0xff]
      %v469 = vld [vmem:[%s315 + $0xb2] sm:$0xff]
      %v470 = vld [vmem:[%s315 + $0xc2] sm:$0xff]
      %v471 = vld [vmem:[%s315 + $0xca] sm:$0xff]
      %v472 = vld [vmem:[%s315 + $0xda] sm:$0xff]
      %v473 = vld [vmem:[%s315 + $0xe2] sm:$0xff]
      %v474 = vld [vmem:[%s315 + $0xf2] sm:$0xff]
      %v475 = vld [vmem:[%s315 + $0xfa] sm:$0xff]
      %v476 = vld [vmem:[%s315 + $0x10a] sm:$0xff]
      %v477 = vld [vmem:[%s315 + $0x112] sm:$0xff]
      %v478 = vld [vmem:[%s315 + $0x122] sm:$0xff]
      %v479 = vld [vmem:[%s315 + $0x12a] sm:$0xff]
      %v480 = vld [vmem:[%s315 + $0x13a] sm:$0xff]
      %v481 = vld [vmem:[%s315 + $0x142] sm:$0xff]
      %v482 = vld [vmem:[%s315 + $0x152] sm:$0xff]
      %v483 = vld [vmem:[%s315 + $0x15a] sm:$0xff]
      %v484 = vld [vmem:[%s315 + $0x16a] sm:$0xff]
      %v485 = vld [vmem:[%s315 + $0x172] sm:$0xff]
      %486 = vst [vmem:[#allocation2 + $0x10] sm:$0xff] %v454
      %487 = vst [vmem:[#allocation2 + $0x58] sm:$0xff] %v455
      %488 = vst [vmem:[#allocation2 + $0xa0] sm:$0xff] %v456
      %489 = vst [vmem:[#allocation2 + $0xe8] sm:$0xff] %v457
      %490 = vst [vmem:[#allocation2 + $0x130] sm:$0xff] %v458
      %491 = vst [vmem:[#allocation2 + $0x178] sm:$0xff] %v459
      %492 = vst [vmem:[#allocation2 + $0x1c0] sm:$0xff] %v460
      %493 = vst [vmem:[#allocation2 + $0x208] sm:$0xff] %v461
      %494 = vst [vmem:[#allocation2 + $0x250] sm:$0xff] %v462
      %495 = vst [vmem:[#allocation2 + $0x298] sm:$0xff] %v463
      %496 = vst [vmem:[#allocation2 + $0x2e0] sm:$0xff] %v464
      %497 = vst [vmem:[#allocation2 + $0x328] sm:$0xff] %v465
      %498 = vst [vmem:[#allocation2 + $0x370] sm:$0xff] %v466
      %499 = vst [vmem:[#allocation2 + $0x3b8] sm:$0xff] %v467
      %500 = vst [vmem:[#allocation2 + $0x400] sm:$0xff] %v468
      %501 = vst [vmem:[#allocation2 + $0x448] sm:$0xff] %v469
      %502 = vst [vmem:[#allocation2 + $0x490] sm:$0xff] %v470
      %503 = vst [vmem:[#allocation2 + $0x4d8] sm:$0xff] %v471
      %504 = vst [vmem:[#allocation2 + $0x520] sm:$0xff] %v472
      %505 = vst [vmem:[#allocation2 + $0x568] sm:$0xff] %v473
      %506 = vst [vmem:[#allocation2 + $0x5b0] sm:$0xff] %v474
      %507 = vst [vmem:[#allocation2 + $0x5f8] sm:$0xff] %v475
      %508 = vst [vmem:[#allocation2 + $0x640] sm:$0xff] %v476
      %509 = vst [vmem:[#allocation2 + $0x688] sm:$0xff] %v477
      %510 = vst [vmem:[#allocation2 + $0x6d0] sm:$0xff] %v478
      %511 = vst [vmem:[#allocation2 + $0x718] sm:$0xff] %v479
      %512 = vst [vmem:[#allocation2 + $0x760] sm:$0xff] %v480
      %513 = vst [vmem:[#allocation2 + $0x7a8] sm:$0xff] %v481
      %514 = vst [vmem:[#allocation2 + $0x7f0] sm:$0xff] %v482
      %515 = vst [vmem:[#allocation2 + $0x838] sm:$0xff] %v483
      %516 = vst [vmem:[#allocation2 + $0x880] sm:$0xff] %v484
      %517 = vst [vmem:[#allocation2 + $0x8c8] sm:$0xff] %v485
      %s518 = scalar_lea.vmem %s315, 24
      %v519 = vld [vmem:[%s518] sm:$0xff]
      %v520 = vld [vmem:[%s518 + $0x8] sm:$0xff]
      %v521 = vld [vmem:[%s518 + $0x18] sm:$0xff]
      %v522 = vld [vmem:[%s518 + $0x20] sm:$0xff]
      %v523 = vld [vmem:[%s518 + $0x30] sm:$0xff]
      %v524 = vld [vmem:[%s518 + $0x38] sm:$0xff]
      %v525 = vld [vmem:[%s518 + $0x48] sm:$0xff]
      %v526 = vld [vmem:[%s518 + $0x50] sm:$0xff]
      %v527 = vld [vmem:[%s518 + $0x60] sm:$0xff]
      %v528 = vld [vmem:[%s518 + $0x68] sm:$0xff]
      %v529 = vld [vmem:[%s518 + $0x78] sm:$0xff]
      %v530 = vld [vmem:[%s518 + $0x80] sm:$0xff]
      %v531 = vld [vmem:[%s518 + $0x90] sm:$0xff]
      %v532 = vld [vmem:[%s518 + $0x98] sm:$0xff]
      %v533 = vld [vmem:[%s518 + $0xa8] sm:$0xff]
      %v534 = vld [vmem:[%s518 + $0xb0] sm:$0xff]
      %v535 = vld [vmem:[%s518 + $0xc0] sm:$0xff]
      %v536 = vld [vmem:[%s518 + $0xc8] sm:$0xff]
      %v537 = vld [vmem:[%s518 + $0xd8] sm:$0xff]
      %v538 = vld [vmem:[%s518 + $0xe0] sm:$0xff]
      %v539 = vld [vmem:[%s518 + $0xf0] sm:$0xff]
      %v540 = vld [vmem:[%s518 + $0xf8] sm:$0xff]
      %v541 = vld [vmem:[%s518 + $0x108] sm:$0xff]
      %v542 = vld [vmem:[%s518 + $0x110] sm:$0xff]
      %v543 = vld [vmem:[%s518 + $0x120] sm:$0xff]
      %v544 = vld [vmem:[%s518 + $0x128] sm:$0xff]
      %v545 = vld [vmem:[%s518 + $0x138] sm:$0xff]
      %v546 = vld [vmem:[%s518 + $0x140] sm:$0xff]
      %v547 = vld [vmem:[%s518 + $0x150] sm:$0xff]
      %v548 = vld [vmem:[%s518 + $0x158] sm:$0xff]
      %v549 = vld [vmem:[%s518 + $0x168] sm:$0xff]
      %v550 = vld [vmem:[%s518 + $0x170] sm:$0xff]
      %551 = vst [vmem:[#allocation2 + $0x18] sm:$0xff] %v519
      %552 = vst [vmem:[#allocation2 + $0x60] sm:$0xff] %v520
      %553 = vst [vmem:[#allocation2 + $0xa8] sm:$0xff] %v521
      %554 = vst [vmem:[#allocation2 + $0xf0] sm:$0xff] %v522
      %555 = vst [vmem:[#allocation2 + $0x138] sm:$0xff] %v523
      %556 = vst [vmem:[#allocation2 + $0x180] sm:$0xff] %v524
      %557 = vst [vmem:[#allocation2 + $0x1c8] sm:$0xff] %v525
      %558 = vst [vmem:[#allocation2 + $0x210] sm:$0xff] %v526
      %559 = vst [vmem:[#allocation2 + $0x258] sm:$0xff] %v527
      %560 = vst [vmem:[#allocation2 + $0x2a0] sm:$0xff] %v528
      %561 = vst [vmem:[#allocation2 + $0x2e8] sm:$0xff] %v529
      %562 = vst [vmem:[#allocation2 + $0x330] sm:$0xff] %v530
      %563 = vst [vmem:[#allocation2 + $0x378] sm:$0xff] %v531
      %564 = vst [vmem:[#allocation2 + $0x3c0] sm:$0xff] %v532
      %565 = vst [vmem:[#allocation2 + $0x408] sm:$0xff] %v533
      %566 = vst [vmem:[#allocation2 + $0x450] sm:$0xff] %v534
      %567 = vst [vmem:[#allocation2 + $0x498] sm:$0xff] %v535
      %568 = vst [vmem:[#allocation2 + $0x4e0] sm:$0xff] %v536
      %569 = vst [vmem:[#allocation2 + $0x528] sm:$0xff] %v537
      %570 = vst [vmem:[#allocation2 + $0x570] sm:$0xff] %v538
      %571 = vst [vmem:[#allocation2 + $0x5b8] sm:$0xff] %v539
      %572 = vst [vmem:[#allocation2 + $0x600] sm:$0xff] %v540
      %573 = vst [vmem:[#allocation2 + $0x648] sm:$0xff] %v541
      %574 = vst [vmem:[#allocation2 + $0x690] sm:$0xff] %v542
      %575 = vst [vmem:[#allocation2 + $0x6d8] sm:$0xff] %v543
      %576 = vst [vmem:[#allocation2 + $0x720] sm:$0xff] %v544
      %577 = vst [vmem:[#allocation2 + $0x768] sm:$0xff] %v545
      %578 = vst [vmem:[#allocation2 + $0x7b0] sm:$0xff] %v546
      %579 = vst [vmem:[#allocation2 + $0x7f8] sm:$0xff] %v547
      %580 = vst [vmem:[#allocation2 + $0x840] sm:$0xff] %v548
      %581 = vst [vmem:[#allocation2 + $0x888] sm:$0xff] %v549
      %582 = vst [vmem:[#allocation2 + $0x8d0] sm:$0xff] %v550
      %v583 = vld [vmem:[%s518 + $0x1] sm:$0xff]
      %v584 = vld [vmem:[%s518 + $0x9] sm:$0xff]
      %v585 = vld [vmem:[%s518 + $0x19] sm:$0xff]
      %v586 = vld [vmem:[%s518 + $0x21] sm:$0xff]
      %v587 = vld [vmem:[%s518 + $0x31] sm:$0xff]
      %v588 = vld [vmem:[%s518 + $0x39] sm:$0xff]
      %v589 = vld [vmem:[%s518 + $0x49] sm:$0xff]
      %v590 = vld [vmem:[%s518 + $0x51] sm:$0xff]
      %v591 = vld [vmem:[%s518 + $0x61] sm:$0xff]
      %v592 = vld [vmem:[%s518 + $0x69] sm:$0xff]
      %v593 = vld [vmem:[%s518 + $0x79] sm:$0xff]
      %v594 = vld [vmem:[%s518 + $0x81] sm:$0xff]
      %v595 = vld [vmem:[%s518 + $0x91] sm:$0xff]
      %v596 = vld [vmem:[%s518 + $0x99] sm:$0xff]
      %v597 = vld [vmem:[%s518 + $0xa9] sm:$0xff]
      %v598 = vld [vmem:[%s518 + $0xb1] sm:$0xff]
      %v599 = vld [vmem:[%s518 + $0xc1] sm:$0xff]
      %v600 = vld [vmem:[%s518 + $0xc9] sm:$0xff]
      %v601 = vld [vmem:[%s518 + $0xd9] sm:$0xff]
      %v602 = vld [vmem:[%s518 + $0xe1] sm:$0xff]
      %v603 = vld [vmem:[%s518 + $0xf1] sm:$0xff]
      %v604 = vld [vmem:[%s518 + $0xf9] sm:$0xff]
      %v605 = vld [vmem:[%s518 + $0x109] sm:$0xff]
      %v606 = vld [vmem:[%s518 + $0x111] sm:$0xff]
      %v607 = vld [vmem:[%s518 + $0x121] sm:$0xff]
      %v608 = vld [vmem:[%s518 + $0x129] sm:$0xff]
      %v609 = vld [vmem:[%s518 + $0x139] sm:$0xff]
      %v610 = vld [vmem:[%s518 + $0x141] sm:$0xff]
      %v611 = vld [vmem:[%s518 + $0x151] sm:$0xff]
      %v612 = vld [vmem:[%s518 + $0x159] sm:$0xff]
      %v613 = vld [vmem:[%s518 + $0x169] sm:$0xff]
      %v614 = vld [vmem:[%s518 + $0x171] sm:$0xff]
      %615 = vst [vmem:[#allocation2 + $0x20] sm:$0xff] %v583
      %616 = vst [vmem:[#allocation2 + $0x68] sm:$0xff] %v584
      %617 = vst [vmem:[#allocation2 + $0xb0] sm:$0xff] %v585
      %618 = vst [vmem:[#allocation2 + $0xf8] sm:$0xff] %v586
      %619 = vst [vmem:[#allocation2 + $0x140] sm:$0xff] %v587
      %620 = vst [vmem:[#allocation2 + $0x188] sm:$0xff] %v588
      %621 = vst [vmem:[#allocation2 + $0x1d0] sm:$0xff] %v589
      %622 = vst [vmem:[#allocation2 + $0x218] sm:$0xff] %v590
      %623 = vst [vmem:[#allocation2 + $0x260] sm:$0xff] %v591
      %624 = vst [vmem:[#allocation2 + $0x2a8] sm:$0xff] %v592
      %625 = vst [vmem:[#allocation2 + $0x2f0] sm:$0xff] %v593
      %626 = vst [vmem:[#allocation2 + $0x338] sm:$0xff] %v594
      %627 = vst [vmem:[#allocation2 + $0x380] sm:$0xff] %v595
      %628 = vst [vmem:[#allocation2 + $0x3c8] sm:$0xff] %v596
      %629 = vst [vmem:[#allocation2 + $0x410] sm:$0xff] %v597
      %630 = vst [vmem:[#allocation2 + $0x458] sm:$0xff] %v598
      %631 = vst [vmem:[#allocation2 + $0x4a0] sm:$0xff] %v599
      %632 = vst [vmem:[#allocation2 + $0x4e8] sm:$0xff] %v600
      %633 = vst [vmem:[#allocation2 + $0x530] sm:$0xff] %v601
      %634 = vst [vmem:[#allocation2 + $0x578] sm:$0xff] %v602
      %635 = vst [vmem:[#allocation2 + $0x5c0] sm:$0xff] %v603
      %636 = vst [vmem:[#allocation2 + $0x608] sm:$0xff] %v604
      %637 = vst [vmem:[#allocation2 + $0x650] sm:$0xff] %v605
      %638 = vst [vmem:[#allocation2 + $0x698] sm:$0xff] %v606
      %639 = vst [vmem:[#allocation2 + $0x6e0] sm:$0xff] %v607
      %640 = vst [vmem:[#allocation2 + $0x728] sm:$0xff] %v608
      %641 = vst [vmem:[#allocation2 + $0x770] sm:$0xff] %v609
      %642 = vst [vmem:[#allocation2 + $0x7b8] sm:$0xff] %v610
      %643 = vst [vmem:[#allocation2 + $0x800] sm:$0xff] %v611
      %644 = vst [vmem:[#allocation2 + $0x848] sm:$0xff] %v612
      %645 = vst [vmem:[#allocation2 + $0x890] sm:$0xff] %v613
      %646 = vst [vmem:[#allocation2 + $0x8d8] sm:$0xff] %v614
      %v647 = vld [vmem:[%s518 + $0x2] sm:$0xff]
      %v648 = vld [vmem:[%s518 + $0xa] sm:$0xff]
      %v649 = vld [vmem:[%s518 + $0x1a] sm:$0xff]
      %v650 = vld [vmem:[%s518 + $0x22] sm:$0xff]
      %v651 = vld [vmem:[%s518 + $0x32] sm:$0xff]
      %v652 = vld [vmem:[%s518 + $0x3a] sm:$0xff]
      %v653 = vld [vmem:[%s518 + $0x4a] sm:$0xff]
      %v654 = vld [vmem:[%s518 + $0x52] sm:$0xff]
      %v655 = vld [vmem:[%s518 + $0x62] sm:$0xff]
      %v656 = vld [vmem:[%s518 + $0x6a] sm:$0xff]
      %v657 = vld [vmem:[%s518 + $0x7a] sm:$0xff]
      %v658 = vld [vmem:[%s518 + $0x82] sm:$0xff]
      %v659 = vld [vmem:[%s518 + $0x92] sm:$0xff]
      %v660 = vld [vmem:[%s518 + $0x9a] sm:$0xff]
      %v661 = vld [vmem:[%s518 + $0xaa] sm:$0xff]
      %v662 = vld [vmem:[%s518 + $0xb2] sm:$0xff]
      %v663 = vld [vmem:[%s518 + $0xc2] sm:$0xff]
      %v664 = vld [vmem:[%s518 + $0xca] sm:$0xff]
      %v665 = vld [vmem:[%s518 + $0xda] sm:$0xff]
      %v666 = vld [vmem:[%s518 + $0xe2] sm:$0xff]
      %v667 = vld [vmem:[%s518 + $0xf2] sm:$0xff]
      %v668 = vld [vmem:[%s518 + $0xfa] sm:$0xff]
      %v669 = vld [vmem:[%s518 + $0x10a] sm:$0xff]
      %v670 = vld [vmem:[%s518 + $0x112] sm:$0xff]
      %v671 = vld [vmem:[%s518 + $0x122] sm:$0xff]
      %v672 = vld [vmem:[%s518 + $0x12a] sm:$0xff]
      %v673 = vld [vmem:[%s518 + $0x13a] sm:$0xff]
      %v674 = vld [vmem:[%s518 + $0x142] sm:$0xff]
      %v675 = vld [vmem:[%s518 + $0x152] sm:$0xff]
      %v676 = vld [vmem:[%s518 + $0x15a] sm:$0xff]
      %v677 = vld [vmem:[%s518 + $0x16a] sm:$0xff]
      %v678 = vld [vmem:[%s518 + $0x172] sm:$0xff]
      %679 = vst [vmem:[#allocation2 + $0x28] sm:$0xff] %v647
      %680 = vst [vmem:[#allocation2 + $0x70] sm:$0xff] %v648
      %681 = vst [vmem:[#allocation2 + $0xb8] sm:$0xff] %v649
      %682 = vst [vmem:[#allocation2 + $0x100] sm:$0xff] %v650
      %683 = vst [vmem:[#allocation2 + $0x148] sm:$0xff] %v651
      %684 = vst [vmem:[#allocation2 + $0x190] sm:$0xff] %v652
      %685 = vst [vmem:[#allocation2 + $0x1d8] sm:$0xff] %v653
      %686 = vst [vmem:[#allocation2 + $0x220] sm:$0xff] %v654
      %687 = vst [vmem:[#allocation2 + $0x268] sm:$0xff] %v655
      %688 = vst [vmem:[#allocation2 + $0x2b0] sm:$0xff] %v656
      %689 = vst [vmem:[#allocation2 + $0x2f8] sm:$0xff] %v657
      %690 = vst [vmem:[#allocation2 + $0x340] sm:$0xff] %v658
      %691 = vst [vmem:[#allocation2 + $0x388] sm:$0xff] %v659
      %692 = vst [vmem:[#allocation2 + $0x3d0] sm:$0xff] %v660
      %693 = vst [vmem:[#allocation2 + $0x418] sm:$0xff] %v661
      %694 = vst [vmem:[#allocation2 + $0x460] sm:$0xff] %v662
      %695 = vst [vmem:[#allocation2 + $0x4a8] sm:$0xff] %v663
      %696 = vst [vmem:[#allocation2 + $0x4f0] sm:$0xff] %v664
      %697 = vst [vmem:[#allocation2 + $0x538] sm:$0xff] %v665
      %698 = vst [vmem:[#allocation2 + $0x580] sm:$0xff] %v666
      %699 = vst [vmem:[#allocation2 + $0x5c8] sm:$0xff] %v667
      %700 = vst [vmem:[#allocation2 + $0x610] sm:$0xff] %v668
      %701 = vst [vmem:[#allocation2 + $0x658] sm:$0xff] %v669
      %702 = vst [vmem:[#allocation2 + $0x6a0] sm:$0xff] %v670
      %703 = vst [vmem:[#allocation2 + $0x6e8] sm:$0xff] %v671
      %704 = vst [vmem:[#allocation2 + $0x730] sm:$0xff] %v672
      %705 = vst [vmem:[#allocation2 + $0x778] sm:$0xff] %v673
      %706 = vst [vmem:[#allocation2 + $0x7c0] sm:$0xff] %v674
      %707 = vst [vmem:[#allocation2 + $0x808] sm:$0xff] %v675
      %708 = vst [vmem:[#allocation2 + $0x850] sm:$0xff] %v676
      %709 = vst [vmem:[#allocation2 + $0x898] sm:$0xff] %v677
      %710 = vst [vmem:[#allocation2 + $0x8e0] sm:$0xff] %v678
      %s711 = scalar_lea.vmem %s315, 48
      %v712 = vld [vmem:[%s711] sm:$0xff]
      %v713 = vld [vmem:[%s711 + $0x8] sm:$0xff]
      %v714 = vld [vmem:[%s711 + $0x18] sm:$0xff]
      %v715 = vld [vmem:[%s711 + $0x20] sm:$0xff]
      %v716 = vld [vmem:[%s711 + $0x30] sm:$0xff]
      %v717 = vld [vmem:[%s711 + $0x38] sm:$0xff]
      %v718 = vld [vmem:[%s711 + $0x48] sm:$0xff]
      %v719 = vld [vmem:[%s711 + $0x50] sm:$0xff]
      %v720 = vld [vmem:[%s711 + $0x60] sm:$0xff]
      %v721 = vld [vmem:[%s711 + $0x68] sm:$0xff]
      %v722 = vld [vmem:[%s711 + $0x78] sm:$0xff]
      %v723 = vld [vmem:[%s711 + $0x80] sm:$0xff]
      %v724 = vld [vmem:[%s711 + $0x90] sm:$0xff]
      %v725 = vld [vmem:[%s711 + $0x98] sm:$0xff]
      %v726 = vld [vmem:[%s711 + $0xa8] sm:$0xff]
      %v727 = vld [vmem:[%s711 + $0xb0] sm:$0xff]
      %v728 = vld [vmem:[%s711 + $0xc0] sm:$0xff]
      %v729 = vld [vmem:[%s711 + $0xc8] sm:$0xff]
      %v730 = vld [vmem:[%s711 + $0xd8] sm:$0xff]
      %v731 = vld [vmem:[%s711 + $0xe0] sm:$0xff]
      %v732 = vld [vmem:[%s711 + $0xf0] sm:$0xff]
      %v733 = vld [vmem:[%s711 + $0xf8] sm:$0xff]
      %v734 = vld [vmem:[%s711 + $0x108] sm:$0xff]
      %v735 = vld [vmem:[%s711 + $0x110] sm:$0xff]
      %v736 = vld [vmem:[%s711 + $0x120] sm:$0xff]
      %v737 = vld [vmem:[%s711 + $0x128] sm:$0xff]
      %v738 = vld [vmem:[%s711 + $0x138] sm:$0xff]
      %v739 = vld [vmem:[%s711 + $0x140] sm:$0xff]
      %v740 = vld [vmem:[%s711 + $0x150] sm:$0xff]
      %v741 = vld [vmem:[%s711 + $0x158] sm:$0xff]
      %v742 = vld [vmem:[%s711 + $0x168] sm:$0xff]
      %v743 = vld [vmem:[%s711 + $0x170] sm:$0xff]
      %744 = vst [vmem:[#allocation2 + $0x30] sm:$0xff] %v712
      %745 = vst [vmem:[#allocation2 + $0x78] sm:$0xff] %v713
      %746 = vst [vmem:[#allocation2 + $0xc0] sm:$0xff] %v714
      %747 = vst [vmem:[#allocation2 + $0x108] sm:$0xff] %v715
      %748 = vst [vmem:[#allocation2 + $0x150] sm:$0xff] %v716
      %749 = vst [vmem:[#allocation2 + $0x198] sm:$0xff] %v717
      %750 = vst [vmem:[#allocation2 + $0x1e0] sm:$0xff] %v718
      %751 = vst [vmem:[#allocation2 + $0x228] sm:$0xff] %v719
      %752 = vst [vmem:[#allocation2 + $0x270] sm:$0xff] %v720
      %753 = vst [vmem:[#allocation2 + $0x2b8] sm:$0xff] %v721
      %754 = vst [vmem:[#allocation2 + $0x300] sm:$0xff] %v722
      %755 = vst [vmem:[#allocation2 + $0x348] sm:$0xff] %v723
      %756 = vst [vmem:[#allocation2 + $0x390] sm:$0xff] %v724
      %757 = vst [vmem:[#allocation2 + $0x3d8] sm:$0xff] %v725
      %758 = vst [vmem:[#allocation2 + $0x420] sm:$0xff] %v726
      %759 = vst [vmem:[#allocation2 + $0x468] sm:$0xff] %v727
      %760 = vst [vmem:[#allocation2 + $0x4b0] sm:$0xff] %v728
      %761 = vst [vmem:[#allocation2 + $0x4f8] sm:$0xff] %v729
      %762 = vst [vmem:[#allocation2 + $0x540] sm:$0xff] %v730
      %763 = vst [vmem:[#allocation2 + $0x588] sm:$0xff] %v731
      %764 = vst [vmem:[#allocation2 + $0x5d0] sm:$0xff] %v732
      %765 = vst [vmem:[#allocation2 + $0x618] sm:$0xff] %v733
      %766 = vst [vmem:[#allocation2 + $0x660] sm:$0xff] %v734
      %767 = vst [vmem:[#allocation2 + $0x6a8] sm:$0xff] %v735
      %768 = vst [vmem:[#allocation2 + $0x6f0] sm:$0xff] %v736
      %769 = vst [vmem:[#allocation2 + $0x738] sm:$0xff] %v737
      %770 = vst [vmem:[#allocation2 + $0x780] sm:$0xff] %v738
      %771 = vst [vmem:[#allocation2 + $0x7c8] sm:$0xff] %v739
      %772 = vst [vmem:[#allocation2 + $0x810] sm:$0xff] %v740
      %773 = vst [vmem:[#allocation2 + $0x858] sm:$0xff] %v741
      %774 = vst [vmem:[#allocation2 + $0x8a0] sm:$0xff] %v742
      %775 = vst [vmem:[#allocation2 + $0x8e8] sm:$0xff] %v743
      %v776 = vld [vmem:[%s711 + $0x1] sm:$0xff]
      %v777 = vld [vmem:[%s711 + $0x9] sm:$0xff]
      %v778 = vld [vmem:[%s711 + $0x19] sm:$0xff]
      %v779 = vld [vmem:[%s711 + $0x21] sm:$0xff]
      %v780 = vld [vmem:[%s711 + $0x31] sm:$0xff]
      %v781 = vld [vmem:[%s711 + $0x39] sm:$0xff]
      %v782 = vld [vmem:[%s711 + $0x49] sm:$0xff]
      %v783 = vld [vmem:[%s711 + $0x51] sm:$0xff]
      %v784 = vld [vmem:[%s711 + $0x61] sm:$0xff]
      %v785 = vld [vmem:[%s711 + $0x69] sm:$0xff]
      %v786 = vld [vmem:[%s711 + $0x79] sm:$0xff]
      %v787 = vld [vmem:[%s711 + $0x81] sm:$0xff]
      %v788 = vld [vmem:[%s711 + $0x91] sm:$0xff]
      %v789 = vld [vmem:[%s711 + $0x99] sm:$0xff]
      %v790 = vld [vmem:[%s711 + $0xa9] sm:$0xff]
      %v791 = vld [vmem:[%s711 + $0xb1] sm:$0xff]
      %v792 = vld [vmem:[%s711 + $0xc1] sm:$0xff]
      %v793 = vld [vmem:[%s711 + $0xc9] sm:$0xff]
      %v794 = vld [vmem:[%s711 + $0xd9] sm:$0xff]
      %v795 = vld [vmem:[%s711 + $0xe1] sm:$0xff]
      %v796 = vld [vmem:[%s711 + $0xf1] sm:$0xff]
      %v797 = vld [vmem:[%s711 + $0xf9] sm:$0xff]
      %v798 = vld [vmem:[%s711 + $0x109] sm:$0xff]
      %v799 = vld [vmem:[%s711 + $0x111] sm:$0xff]
      %v800 = vld [vmem:[%s711 + $0x121] sm:$0xff]
      %v801 = vld [vmem:[%s711 + $0x129] sm:$0xff]
      %v802 = vld [vmem:[%s711 + $0x139] sm:$0xff]
      %v803 = vld [vmem:[%s711 + $0x141] sm:$0xff]
      %v804 = vld [vmem:[%s711 + $0x151] sm:$0xff]
      %v805 = vld [vmem:[%s711 + $0x159] sm:$0xff]
      %v806 = vld [vmem:[%s711 + $0x169] sm:$0xff]
      %v807 = vld [vmem:[%s711 + $0x171] sm:$0xff]
      %808 = vst [vmem:[#allocation2 + $0x38] sm:$0xff] %v776
      %809 = vst [vmem:[#allocation2 + $0x80] sm:$0xff] %v777
      %810 = vst [vmem:[#allocation2 + $0xc8] sm:$0xff] %v778
      %811 = vst [vmem:[#allocation2 + $0x110] sm:$0xff] %v779
      %812 = vst [vmem:[#allocation2 + $0x158] sm:$0xff] %v780
      %813 = vst [vmem:[#allocation2 + $0x1a0] sm:$0xff] %v781
      %814 = vst [vmem:[#allocation2 + $0x1e8] sm:$0xff] %v782
      %815 = vst [vmem:[#allocation2 + $0x230] sm:$0xff] %v783
      %816 = vst [vmem:[#allocation2 + $0x278] sm:$0xff] %v784
      %817 = vst [vmem:[#allocation2 + $0x2c0] sm:$0xff] %v785
      %818 = vst [vmem:[#allocation2 + $0x308] sm:$0xff] %v786
      %819 = vst [vmem:[#allocation2 + $0x350] sm:$0xff] %v787
      %820 = vst [vmem:[#allocation2 + $0x398] sm:$0xff] %v788
      %821 = vst [vmem:[#allocation2 + $0x3e0] sm:$0xff] %v789
      %822 = vst [vmem:[#allocation2 + $0x428] sm:$0xff] %v790
      %823 = vst [vmem:[#allocation2 + $0x470] sm:$0xff] %v791
      %824 = vst [vmem:[#allocation2 + $0x4b8] sm:$0xff] %v792
      %825 = vst [vmem:[#allocation2 + $0x500] sm:$0xff] %v793
      %826 = vst [vmem:[#allocation2 + $0x548] sm:$0xff] %v794
      %827 = vst [vmem:[#allocation2 + $0x590] sm:$0xff] %v795
      %828 = vst [vmem:[#allocation2 + $0x5d8] sm:$0xff] %v796
      %829 = vst [vmem:[#allocation2 + $0x620] sm:$0xff] %v797
      %830 = vst [vmem:[#allocation2 + $0x668] sm:$0xff] %v798
      %831 = vst [vmem:[#allocation2 + $0x6b0] sm:$0xff] %v799
      %832 = vst [vmem:[#allocation2 + $0x6f8] sm:$0xff] %v800
      %833 = vst [vmem:[#allocation2 + $0x740] sm:$0xff] %v801
      %834 = vst [vmem:[#allocation2 + $0x788] sm:$0xff] %v802
      %835 = vst [vmem:[#allocation2 + $0x7d0] sm:$0xff] %v803
      %836 = vst [vmem:[#allocation2 + $0x818] sm:$0xff] %v804
      %837 = vst [vmem:[#allocation2 + $0x860] sm:$0xff] %v805
      %838 = vst [vmem:[#allocation2 + $0x8a8] sm:$0xff] %v806
      %839 = vst [vmem:[#allocation2 + $0x8f0] sm:$0xff] %v807
      %v840 = vld [vmem:[%s711 + $0x2] sm:$0xff]
      %v841 = vld [vmem:[%s711 + $0xa] sm:$0xff]
      %v842 = vld [vmem:[%s711 + $0x1a] sm:$0xff]
      %v843 = vld [vmem:[%s711 + $0x22] sm:$0xff]
      %v844 = vld [vmem:[%s711 + $0x32] sm:$0xff]
      %v845 = vld [vmem:[%s711 + $0x3a] sm:$0xff]
      %v846 = vld [vmem:[%s711 + $0x4a] sm:$0xff]
      %v847 = vld [vmem:[%s711 + $0x52] sm:$0xff]
      %v848 = vld [vmem:[%s711 + $0x62] sm:$0xff]
      %v849 = vld [vmem:[%s711 + $0x6a] sm:$0xff]
      %v850 = vld [vmem:[%s711 + $0x7a] sm:$0xff]
      %v851 = vld [vmem:[%s711 + $0x82] sm:$0xff]
      %v852 = vld [vmem:[%s711 + $0x92] sm:$0xff]
      %v853 = vld [vmem:[%s711 + $0x9a] sm:$0xff]
      %v854 = vld [vmem:[%s711 + $0xaa] sm:$0xff]
      %v855 = vld [vmem:[%s711 + $0xb2] sm:$0xff]
      %v856 = vld [vmem:[%s711 + $0xc2] sm:$0xff]
      %v857 = vld [vmem:[%s711 + $0xca] sm:$0xff]
      %v858 = vld [vmem:[%s711 + $0xda] sm:$0xff]
      %v859 = vld [vmem:[%s711 + $0xe2] sm:$0xff]
      %v860 = vld [vmem:[%s711 + $0xf2] sm:$0xff]
      %v861 = vld [vmem:[%s711 + $0xfa] sm:$0xff]
      %v862 = vld [vmem:[%s711 + $0x10a] sm:$0xff]
      %v863 = vld [vmem:[%s711 + $0x112] sm:$0xff]
      %v864 = vld [vmem:[%s711 + $0x122] sm:$0xff]
      %v865 = vld [vmem:[%s711 + $0x12a] sm:$0xff]
      %v866 = vld [vmem:[%s711 + $0x13a] sm:$0xff]
      %v867 = vld [vmem:[%s711 + $0x142] sm:$0xff]
      %v868 = vld [vmem:[%s711 + $0x152] sm:$0xff]
      %v869 = vld [vmem:[%s711 + $0x15a] sm:$0xff]
      %v870 = vld [vmem:[%s711 + $0x16a] sm:$0xff]
      %v871 = vld [vmem:[%s711 + $0x172] sm:$0xff]
      %872 = vst [vmem:[#allocation2 + $0x40] sm:$0xff] %v840
      %873 = vst [vmem:[#allocation2 + $0x88] sm:$0xff] %v841
      %874 = vst [vmem:[#allocation2 + $0xd0] sm:$0xff] %v842
      %875 = vst [vmem:[#allocation2 + $0x118] sm:$0xff] %v843
      %876 = vst [vmem:[#allocation2 + $0x160] sm:$0xff] %v844
      %877 = vst [vmem:[#allocation2 + $0x1a8] sm:$0xff] %v845
      %878 = vst [vmem:[#allocation2 + $0x1f0] sm:$0xff] %v846
      %879 = vst [vmem:[#allocation2 + $0x238] sm:$0xff] %v847
      %880 = vst [vmem:[#allocation2 + $0x280] sm:$0xff] %v848
      %881 = vst [vmem:[#allocation2 + $0x2c8] sm:$0xff] %v849
      %882 = vst [vmem:[#allocation2 + $0x310] sm:$0xff] %v850
      %883 = vst [vmem:[#allocation2 + $0x358] sm:$0xff] %v851
      %884 = vst [vmem:[#allocation2 + $0x3a0] sm:$0xff] %v852
      %885 = vst [vmem:[#allocation2 + $0x3e8] sm:$0xff] %v853
      %886 = vst [vmem:[#allocation2 + $0x430] sm:$0xff] %v854
      %887 = vst [vmem:[#allocation2 + $0x478] sm:$0xff] %v855
      %888 = vst [vmem:[#allocation2 + $0x4c0] sm:$0xff] %v856
      %889 = vst [vmem:[#allocation2 + $0x508] sm:$0xff] %v857
      %890 = vst [vmem:[#allocation2 + $0x550] sm:$0xff] %v858
      %891 = vst [vmem:[#allocation2 + $0x598] sm:$0xff] %v859
      %892 = vst [vmem:[#allocation2 + $0x5e0] sm:$0xff] %v860
      %893 = vst [vmem:[#allocation2 + $0x628] sm:$0xff] %v861
      %894 = vst [vmem:[#allocation2 + $0x670] sm:$0xff] %v862
      %895 = vst [vmem:[#allocation2 + $0x6b8] sm:$0xff] %v863
      %896 = vst [vmem:[#allocation2 + $0x700] sm:$0xff] %v864
      %897 = vst [vmem:[#allocation2 + $0x748] sm:$0xff] %v865
      %898 = vst [vmem:[#allocation2 + $0x790] sm:$0xff] %v866
      %899 = vst [vmem:[#allocation2 + $0x7d8] sm:$0xff] %v867
      %900 = vst [vmem:[#allocation2 + $0x820] sm:$0xff] %v868
      %901 = vst [vmem:[#allocation2 + $0x868] sm:$0xff] %v869
      %902 = vst [vmem:[#allocation2 + $0x8b0] sm:$0xff] %v870
      %903 = vst [vmem:[#allocation2 + $0x8f8] sm:$0xff] %v871
      %v904 = vld [vmem:[#allocation2] sm:$0xff]
      %v905 = vld [vmem:[#allocation2 + $0x8] sm:$0xff]
      %v906 = vld [vmem:[#allocation2 + $0x10] sm:$0xff]
      %v907 = vld [vmem:[#allocation2 + $0x18] sm:$0xff]
      %v908 = vld [vmem:[#allocation2 + $0x20] sm:$0xff]
      %v909 = vld [vmem:[#allocation2 + $0x28] sm:$0xff]
      %v910 = vld [vmem:[#allocation2 + $0x30] sm:$0xff]
      %v911 = vld [vmem:[#allocation2 + $0x38] sm:$0xff]
      %v912 = vld [vmem:[#allocation2 + $0x40] sm:$0xff]
      %v913 = vld [vmem:[#allocation2 + $0x48] sm:$0xff]
      %v914 = vld [vmem:[#allocation2 + $0x50] sm:$0xff]
      %v915 = vld [vmem:[#allocation2 + $0x58] sm:$0xff]
      %v916 = vld [vmem:[#allocation2 + $0x60] sm:$0xff]
      %v917 = vld [vmem:[#allocation2 + $0x68] sm:$0xff]
      %v918 = vld [vmem:[#allocation2 + $0x70] sm:$0xff]
      %v919 = vld [vmem:[#allocation2 + $0x78] sm:$0xff]
      %v920 = vld [vmem:[#allocation2 + $0x80] sm:$0xff]
      %v921 = vld [vmem:[#allocation2 + $0x88] sm:$0xff]
      %v922 = vld [vmem:[#allocation2 + $0x90] sm:$0xff]
      %v923 = vld [vmem:[#allocation2 + $0x98] sm:$0xff]
      %v924 = vld [vmem:[#allocation2 + $0xa0] sm:$0xff]
      %v925 = vld [vmem:[#allocation2 + $0xa8] sm:$0xff]
      %v926 = vld [vmem:[#allocation2 + $0xb0] sm:$0xff]
      %v927 = vld [vmem:[#allocation2 + $0xb8] sm:$0xff]
      %v928 = vld [vmem:[#allocation2 + $0xc0] sm:$0xff]
      %v929 = vld [vmem:[#allocation2 + $0xc8] sm:$0xff]
      %v930 = vld [vmem:[#allocation2 + $0xd0] sm:$0xff]
      %v931 = vld [vmem:[#allocation2 + $0xd8] sm:$0xff]
      %v932 = vld [vmem:[#allocation2 + $0xe0] sm:$0xff]
      %v933 = vld [vmem:[#allocation2 + $0xe8] sm:$0xff]
      %v934 = vld [vmem:[#allocation2 + $0xf0] sm:$0xff]
      %v935 = vld [vmem:[#allocation2 + $0xf8] sm:$0xff]
      %v936 = vld [vmem:[#allocation2 + $0x100] sm:$0xff]
      %v937 = vld [vmem:[#allocation2 + $0x108] sm:$0xff]
      %v938 = vld [vmem:[#allocation2 + $0x110] sm:$0xff]
      %v939 = vld [vmem:[#allocation2 + $0x118] sm:$0xff]
      %v940 = vld [vmem:[#allocation2 + $0x120] sm:$0xff]
      %v941 = vld [vmem:[#allocation2 + $0x128] sm:$0xff]
      %v942 = vld [vmem:[#allocation2 + $0x130] sm:$0xff]
      %v943 = vld [vmem:[#allocation2 + $0x138] sm:$0xff]
      %v944 = vld [vmem:[#allocation2 + $0x140] sm:$0xff]
      %v945 = vld [vmem:[#allocation2 + $0x148] sm:$0xff]
      %v946 = vld [vmem:[#allocation2 + $0x150] sm:$0xff]
      %v947 = vld [vmem:[#allocation2 + $0x158] sm:$0xff]
      %v948 = vld [vmem:[#allocation2 + $0x160] sm:$0xff]
      %v949 = vld [vmem:[#allocation2 + $0x168] sm:$0xff]
      %v950 = vld [vmem:[#allocation2 + $0x170] sm:$0xff]
      %v951 = vld [vmem:[#allocation2 + $0x178] sm:$0xff]
      %v952 = vld [vmem:[#allocation2 + $0x180] sm:$0xff]
      %v953 = vld [vmem:[#allocation2 + $0x188] sm:$0xff]
      %v954 = vld [vmem:[#allocation2 + $0x190] sm:$0xff]
      %v955 = vld [vmem:[#allocation2 + $0x198] sm:$0xff]
      %v956 = vld [vmem:[#allocation2 + $0x1a0] sm:$0xff]
      %v957 = vld [vmem:[#allocation2 + $0x1a8] sm:$0xff]
      %v958 = vld [vmem:[#allocation2 + $0x1b0] sm:$0xff]
      %v959 = vld [vmem:[#allocation2 + $0x1b8] sm:$0xff]
      %v960 = vld [vmem:[#allocation2 + $0x1c0] sm:$0xff]
      %v961 = vld [vmem:[#allocation2 + $0x1c8] sm:$0xff]
      %v962 = vld [vmem:[#allocation2 + $0x1d0] sm:$0xff]
      %v963 = vld [vmem:[#allocation2 + $0x1d8] sm:$0xff]
      %v964 = vld [vmem:[#allocation2 + $0x1e0] sm:$0xff]
      %v965 = vld [vmem:[#allocation2 + $0x1e8] sm:$0xff]
      %v966 = vld [vmem:[#allocation2 + $0x1f0] sm:$0xff]
      %v967 = vld [vmem:[#allocation2 + $0x1f8] sm:$0xff]
      %v968 = vld [vmem:[#allocation2 + $0x200] sm:$0xff]
      %v969 = vld [vmem:[#allocation2 + $0x208] sm:$0xff]
      %v970 = vld [vmem:[#allocation2 + $0x210] sm:$0xff]
      %v971 = vld [vmem:[#allocation2 + $0x218] sm:$0xff]
      %v972 = vld [vmem:[#allocation2 + $0x220] sm:$0xff]
      %v973 = vld [vmem:[#allocation2 + $0x228] sm:$0xff]
      %v974 = vld [vmem:[#allocation2 + $0x230] sm:$0xff]
      %v975 = vld [vmem:[#allocation2 + $0x238] sm:$0xff]
      %v976 = vld [vmem:[#allocation2 + $0x240] sm:$0xff]
      %v977 = vld [vmem:[#allocation2 + $0x248] sm:$0xff]
      %v978 = vld [vmem:[#allocation2 + $0x250] sm:$0xff]
      %v979 = vld [vmem:[#allocation2 + $0x258] sm:$0xff]
      %v980 = vld [vmem:[#allocation2 + $0x260] sm:$0xff]
      %v981 = vld [vmem:[#allocation2 + $0x268] sm:$0xff]
      %v982 = vld [vmem:[#allocation2 + $0x270] sm:$0xff]
      %v983 = vld [vmem:[#allocation2 + $0x278] sm:$0xff]
      %v984 = vld [vmem:[#allocation2 + $0x280] sm:$0xff]
      %v985 = vld [vmem:[#allocation2 + $0x288] sm:$0xff]
      %v986 = vld [vmem:[#allocation2 + $0x290] sm:$0xff]
      %v987 = vld [vmem:[#allocation2 + $0x298] sm:$0xff]
      %v988 = vld [vmem:[#allocation2 + $0x2a0] sm:$0xff]
      %v989 = vld [vmem:[#allocation2 + $0x2a8] sm:$0xff]
      %v990 = vld [vmem:[#allocation2 + $0x2b0] sm:$0xff]
      %v991 = vld [vmem:[#allocation2 + $0x2b8] sm:$0xff]
      %v992 = vld [vmem:[#allocation2 + $0x2c0] sm:$0xff]
      %v993 = vld [vmem:[#allocation2 + $0x2c8] sm:$0xff]
      %v994 = vld [vmem:[#allocation2 + $0x2d0] sm:$0xff]
      %v995 = vld [vmem:[#allocation2 + $0x2d8] sm:$0xff]
      %v996 = vld [vmem:[#allocation2 + $0x2e0] sm:$0xff]
      %v997 = vld [vmem:[#allocation2 + $0x2e8] sm:$0xff]
      %v998 = vld [vmem:[#allocation2 + $0x2f0] sm:$0xff]
      %v999 = vld [vmem:[#allocation2 + $0x2f8] sm:$0xff]
      %v1000 = vld [vmem:[#allocation2 + $0x300] sm:$0xff]
      %v1001 = vld [vmem:[#allocation2 + $0x308] sm:$0xff]
      %v1002 = vld [vmem:[#allocation2 + $0x310] sm:$0xff]
      %v1003 = vld [vmem:[#allocation2 + $0x318] sm:$0xff]
      %v1004 = vld [vmem:[#allocation2 + $0x320] sm:$0xff]
      %v1005 = vld [vmem:[#allocation2 + $0x328] sm:$0xff]
      %v1006 = vld [vmem:[#allocation2 + $0x330] sm:$0xff]
      %v1007 = vld [vmem:[#allocation2 + $0x338] sm:$0xff]
      %v1008 = vld [vmem:[#allocation2 + $0x340] sm:$0xff]
      %v1009 = vld [vmem:[#allocation2 + $0x348] sm:$0xff]
      %v1010 = vld [vmem:[#allocation2 + $0x350] sm:$0xff]
      %v1011 = vld [vmem:[#allocation2 + $0x358] sm:$0xff]
      %v1012 = vld [vmem:[#allocation2 + $0x360] sm:$0xff]
      %v1013 = vld [vmem:[#allocation2 + $0x368] sm:$0xff]
      %v1014 = vld [vmem:[#allocation2 + $0x370] sm:$0xff]
      %v1015 = vld [vmem:[#allocation2 + $0x378] sm:$0xff]
      %v1016 = vld [vmem:[#allocation2 + $0x380] sm:$0xff]
      %v1017 = vld [vmem:[#allocation2 + $0x388] sm:$0xff]
      %v1018 = vld [vmem:[#allocation2 + $0x390] sm:$0xff]
      %v1019 = vld [vmem:[#allocation2 + $0x398] sm:$0xff]
      %v1020 = vld [vmem:[#allocation2 + $0x3a0] sm:$0xff]
      %v1021 = vld [vmem:[#allocation2 + $0x3a8] sm:$0xff]
      %v1022 = vld [vmem:[#allocation2 + $0x3b0] sm:$0xff]
      %v1023 = vld [vmem:[#allocation2 + $0x3b8] sm:$0xff]
      %v1024 = vld [vmem:[#allocation2 + $0x3c0] sm:$0xff]
      %v1025 = vld [vmem:[#allocation2 + $0x3c8] sm:$0xff]
      %v1026 = vld [vmem:[#allocation2 + $0x3d0] sm:$0xff]
      %v1027 = vld [vmem:[#allocation2 + $0x3d8] sm:$0xff]
      %v1028 = vld [vmem:[#allocation2 + $0x3e0] sm:$0xff]
      %v1029 = vld [vmem:[#allocation2 + $0x3e8] sm:$0xff]
      %v1030 = vld [vmem:[#allocation2 + $0x3f0] sm:$0xff]
      %v1031 = vld [vmem:[#allocation2 + $0x3f8] sm:$0xff]
      %v1032 = vld [vmem:[#allocation2 + $0x400] sm:$0xff]
      %v1033 = vld [vmem:[#allocation2 + $0x408] sm:$0xff]
      %v1034 = vld [vmem:[#allocation2 + $0x410] sm:$0xff]
      %v1035 = vld [vmem:[#allocation2 + $0x418] sm:$0xff]
      %v1036 = vld [vmem:[#allocation2 + $0x420] sm:$0xff]
      %v1037 = vld [vmem:[#allocation2 + $0x428] sm:$0xff]
      %v1038 = vld [vmem:[#allocation2 + $0x430] sm:$0xff]
      %v1039 = vld [vmem:[#allocation2 + $0x438] sm:$0xff]
      %v1040 = vld [vmem:[#allocation2 + $0x440] sm:$0xff]
      %v1041 = vld [vmem:[#allocation2 + $0x448] sm:$0xff]
      %v1042 = vld [vmem:[#allocation2 + $0x450] sm:$0xff]
      %v1043 = vld [vmem:[#allocation2 + $0x458] sm:$0xff]
      %v1044 = vld [vmem:[#allocation2 + $0x460] sm:$0xff]
      %v1045 = vld [vmem:[#allocation2 + $0x468] sm:$0xff]
      %v1046 = vld [vmem:[#allocation2 + $0x470] sm:$0xff]
      %v1047 = vld [vmem:[#allocation2 + $0x478] sm:$0xff]
      %v1048 = vld [vmem:[#allocation2 + $0x480] sm:$0xff]
      %v1049 = vld [vmem:[#allocation2 + $0x488] sm:$0xff]
      %v1050 = vld [vmem:[#allocation2 + $0x490] sm:$0xff]
      %v1051 = vld [vmem:[#allocation2 + $0x498] sm:$0xff]
      %v1052 = vld [vmem:[#allocation2 + $0x4a0] sm:$0xff]
      %v1053 = vld [vmem:[#allocation2 + $0x4a8] sm:$0xff]
      %v1054 = vld [vmem:[#allocation2 + $0x4b0] sm:$0xff]
      %v1055 = vld [vmem:[#allocation2 + $0x4b8] sm:$0xff]
      %v1056 = vld [vmem:[#allocation2 + $0x4c0] sm:$0xff]
      %v1057 = vld [vmem:[#allocation2 + $0x4c8] sm:$0xff]
      %v1058 = vld [vmem:[#allocation2 + $0x4d0] sm:$0xff]
      %v1059 = vld [vmem:[#allocation2 + $0x4d8] sm:$0xff]
      %v1060 = vld [vmem:[#allocation2 + $0x4e0] sm:$0xff]
      %v1061 = vld [vmem:[#allocation2 + $0x4e8] sm:$0xff]
      %v1062 = vld [vmem:[#allocation2 + $0x4f0] sm:$0xff]
      %v1063 = vld [vmem:[#allocation2 + $0x4f8] sm:$0xff]
      %v1064 = vld [vmem:[#allocation2 + $0x500] sm:$0xff]
      %v1065 = vld [vmem:[#allocation2 + $0x508] sm:$0xff]
      %v1066 = vld [vmem:[#allocation2 + $0x510] sm:$0xff]
      %v1067 = vld [vmem:[#allocation2 + $0x518] sm:$0xff]
      %v1068 = vld [vmem:[#allocation2 + $0x520] sm:$0xff]
      %v1069 = vld [vmem:[#allocation2 + $0x528] sm:$0xff]
      %v1070 = vld [vmem:[#allocation2 + $0x530] sm:$0xff]
      %v1071 = vld [vmem:[#allocation2 + $0x538] sm:$0xff]
      %v1072 = vld [vmem:[#allocation2 + $0x540] sm:$0xff]
      %v1073 = vld [vmem:[#allocation2 + $0x548] sm:$0xff]
      %v1074 = vld [vmem:[#allocation2 + $0x550] sm:$0xff]
      %v1075 = vld [vmem:[#allocation2 + $0x558] sm:$0xff]
      %v1076 = vld [vmem:[#allocation2 + $0x560] sm:$0xff]
      %v1077 = vld [vmem:[#allocation2 + $0x568] sm:$0xff]
      %v1078 = vld [vmem:[#allocation2 + $0x570] sm:$0xff]
      %v1079 = vld [vmem:[#allocation2 + $0x578] sm:$0xff]
      %v1080 = vld [vmem:[#allocation2 + $0x580] sm:$0xff]
      %v1081 = vld [vmem:[#allocation2 + $0x588] sm:$0xff]
      %v1082 = vld [vmem:[#allocation2 + $0x590] sm:$0xff]
      %v1083 = vld [vmem:[#allocation2 + $0x598] sm:$0xff]
      %v1084 = vld [vmem:[#allocation2 + $0x5a0] sm:$0xff]
      %v1085 = vld [vmem:[#allocation2 + $0x5a8] sm:$0xff]
      %v1086 = vld [vmem:[#allocation2 + $0x5b0] sm:$0xff]
      %v1087 = vld [vmem:[#allocation2 + $0x5b8] sm:$0xff]
      %v1088 = vld [vmem:[#allocation2 + $0x5c0] sm:$0xff]
      %v1089 = vld [vmem:[#allocation2 + $0x5c8] sm:$0xff]
      %v1090 = vld [vmem:[#allocation2 + $0x5d0] sm:$0xff]
      %v1091 = vld [vmem:[#allocation2 + $0x5d8] sm:$0xff]
      %v1092 = vld [vmem:[#allocation2 + $0x5e0] sm:$0xff]
      %v1093 = vld [vmem:[#allocation2 + $0x5e8] sm:$0xff]
      %v1094 = vld [vmem:[#allocation2 + $0x5f0] sm:$0xff]
      %v1095 = vld [vmem:[#allocation2 + $0x5f8] sm:$0xff]
      %v1096 = vld [vmem:[#allocation2 + $0x600] sm:$0xff]
      %v1097 = vld [vmem:[#allocation2 + $0x608] sm:$0xff]
      %v1098 = vld [vmem:[#allocation2 + $0x610] sm:$0xff]
      %v1099 = vld [vmem:[#allocation2 + $0x618] sm:$0xff]
      %v1100 = vld [vmem:[#allocation2 + $0x620] sm:$0xff]
      %v1101 = vld [vmem:[#allocation2 + $0x628] sm:$0xff]
      %v1102 = vld [vmem:[#allocation2 + $0x630] sm:$0xff]
      %v1103 = vld [vmem:[#allocation2 + $0x638] sm:$0xff]
      %v1104 = vld [vmem:[#allocation2 + $0x640] sm:$0xff]
      %v1105 = vld [vmem:[#allocation2 + $0x648] sm:$0xff]
      %v1106 = vld [vmem:[#allocation2 + $0x650] sm:$0xff]
      %v1107 = vld [vmem:[#allocation2 + $0x658] sm:$0xff]
      %v1108 = vld [vmem:[#allocation2 + $0x660] sm:$0xff]
      %v1109 = vld [vmem:[#allocation2 + $0x668] sm:$0xff]
      %v1110 = vld [vmem:[#allocation2 + $0x670] sm:$0xff]
      %v1111 = vld [vmem:[#allocation2 + $0x678] sm:$0xff]
      %v1112 = vld [vmem:[#allocation2 + $0x680] sm:$0xff]
      %v1113 = vld [vmem:[#allocation2 + $0x688] sm:$0xff]
      %v1114 = vld [vmem:[#allocation2 + $0x690] sm:$0xff]
      %v1115 = vld [vmem:[#allocation2 + $0x698] sm:$0xff]
      %v1116 = vld [vmem:[#allocation2 + $0x6a0] sm:$0xff]
      %v1117 = vld [vmem:[#allocation2 + $0x6a8] sm:$0xff]
      %v1118 = vld [vmem:[#allocation2 + $0x6b0] sm:$0xff]
      %v1119 = vld [vmem:[#allocation2 + $0x6b8] sm:$0xff]
      %v1120 = vld [vmem:[#allocation2 + $0x6c0] sm:$0xff]
      %v1121 = vld [vmem:[#allocation2 + $0x6c8] sm:$0xff]
      %v1122 = vld [vmem:[#allocation2 + $0x6d0] sm:$0xff]
      %v1123 = vld [vmem:[#allocation2 + $0x6d8] sm:$0xff]
      %v1124 = vld [vmem:[#allocation2 + $0x6e0] sm:$0xff]
      %v1125 = vld [vmem:[#allocation2 + $0x6e8] sm:$0xff]
      %v1126 = vld [vmem:[#allocation2 + $0x6f0] sm:$0xff]
      %v1127 = vld [vmem:[#allocation2 + $0x6f8] sm:$0xff]
      %v1128 = vld [vmem:[#allocation2 + $0x700] sm:$0xff]
      %v1129 = vld [vmem:[#allocation2 + $0x708] sm:$0xff]
      %v1130 = vld [vmem:[#allocation2 + $0x710] sm:$0xff]
      %v1131 = vld [vmem:[#allocation2 + $0x718] sm:$0xff]
      %v1132 = vld [vmem:[#allocation2 + $0x720] sm:$0xff]
      %v1133 = vld [vmem:[#allocation2 + $0x728] sm:$0xff]
      %v1134 = vld [vmem:[#allocation2 + $0x730] sm:$0xff]
      %v1135 = vld [vmem:[#allocation2 + $0x738] sm:$0xff]
      %v1136 = vld [vmem:[#allocation2 + $0x740] sm:$0xff]
      %v1137 = vld [vmem:[#allocation2 + $0x748] sm:$0xff]
      %v1138 = vld [vmem:[#allocation2 + $0x750] sm:$0xff]
      %v1139 = vld [vmem:[#allocation2 + $0x758] sm:$0xff]
      %v1140 = vld [vmem:[#allocation2 + $0x760] sm:$0xff]
      %v1141 = vld [vmem:[#allocation2 + $0x768] sm:$0xff]
      %v1142 = vld [vmem:[#allocation2 + $0x770] sm:$0xff]
      %v1143 = vld [vmem:[#allocation2 + $0x778] sm:$0xff]
      %v1144 = vld [vmem:[#allocation2 + $0x780] sm:$0xff]
      %v1145 = vld [vmem:[#allocation2 + $0x788] sm:$0xff]
      %v1146 = vld [vmem:[#allocation2 + $0x790] sm:$0xff]
      %v1147 = vld [vmem:[#allocation2 + $0x798] sm:$0xff]
      %v1148 = vld [vmem:[#allocation2 + $0x7a0] sm:$0xff]
      %v1149 = vld [vmem:[#allocation2 + $0x7a8] sm:$0xff]
      %v1150 = vld [vmem:[#allocation2 + $0x7b0] sm:$0xff]
      %v1151 = vld [vmem:[#allocation2 + $0x7b8] sm:$0xff]
      %v1152 = vld [vmem:[#allocation2 + $0x7c0] sm:$0xff]
      %v1153 = vld [vmem:[#allocation2 + $0x7c8] sm:$0xff]
      %v1154 = vld [vmem:[#allocation2 + $0x7d0] sm:$0xff]
      %v1155 = vld [vmem:[#allocation2 + $0x7d8] sm:$0xff]
      %v1156 = vld [vmem:[#allocation2 + $0x7e0] sm:$0xff]
      %v1157 = vld [vmem:[#allocation2 + $0x7e8] sm:$0xff]
      %v1158 = vld [vmem:[#allocation2 + $0x7f0] sm:$0xff]
      %v1159 = vld [vmem:[#allocation2 + $0x7f8] sm:$0xff]
      %v1160 = vld [vmem:[#allocation2 + $0x800] sm:$0xff]
      %v1161 = vld [vmem:[#allocation2 + $0x808] sm:$0xff]
      %v1162 = vld [vmem:[#allocation2 + $0x810] sm:$0xff]
      %v1163 = vld [vmem:[#allocation2 + $0x818] sm:$0xff]
      %v1164 = vld [vmem:[#allocation2 + $0x820] sm:$0xff]
      %v1165 = vld [vmem:[#allocation2 + $0x828] sm:$0xff]
      %v1166 = vld [vmem:[#allocation2 + $0x830] sm:$0xff]
      %v1167 = vld [vmem:[#allocation2 + $0x838] sm:$0xff]
      %v1168 = vld [vmem:[#allocation2 + $0x840] sm:$0xff]
      %v1169 = vld [vmem:[#allocation2 + $0x848] sm:$0xff]
      %v1170 = vld [vmem:[#allocation2 + $0x850] sm:$0xff]
      %v1171 = vld [vmem:[#allocation2 + $0x858] sm:$0xff]
      %v1172 = vld [vmem:[#allocation2 + $0x860] sm:$0xff]
      %v1173 = vld [vmem:[#allocation2 + $0x868] sm:$0xff]
      %v1174 = vld [vmem:[#allocation2 + $0x870] sm:$0xff]
      %v1175 = vld [vmem:[#allocation2 + $0x878] sm:$0xff]
      %v1176 = vld [vmem:[#allocation2 + $0x880] sm:$0xff]
      %v1177 = vld [vmem:[#allocation2 + $0x888] sm:$0xff]
      %v1178 = vld [vmem:[#allocation2 + $0x890] sm:$0xff]
      %v1179 = vld [vmem:[#allocation2 + $0x898] sm:$0xff]
      %v1180 = vld [vmem:[#allocation2 + $0x8a0] sm:$0xff]
      %v1181 = vld [vmem:[#allocation2 + $0x8a8] sm:$0xff]
      %v1182 = vld [vmem:[#allocation2 + $0x8b0] sm:$0xff]
      %v1183 = vld [vmem:[#allocation2 + $0x8b8] sm:$0xff]
      %v1184 = vld [vmem:[#allocation2 + $0x8c0] sm:$0xff]
      %v1185 = vld [vmem:[#allocation2 + $0x8c8] sm:$0xff]
      %v1186 = vld [vmem:[#allocation2 + $0x8d0] sm:$0xff]
      %v1187 = vld [vmem:[#allocation2 + $0x8d8] sm:$0xff]
      %v1188 = vld [vmem:[#allocation2 + $0x8e0] sm:$0xff]
      %v1189 = vld [vmem:[#allocation2 + $0x8e8] sm:$0xff]
      %v1190 = vld [vmem:[#allocation2 + $0x8f0] sm:$0xff]
      %v1191 = vld [vmem:[#allocation2 + $0x8f8] sm:$0xff]
      %v1192 = vld [vmem:[%s2] sm:$0xff]
      %v1193 = vld [vmem:[%s2 + $0x8] sm:$0xff]
      %v1194 = vld [vmem:[%s2 + $0x10] sm:$0xff]
      %v1195 = vld [vmem:[%s2 + $0x18] sm:$0xff]
      %v1196 = vld [vmem:[%s2 + $0x20] sm:$0xff]
      %v1197 = vld [vmem:[%s2 + $0x28] sm:$0xff]
      %v1198 = vld [vmem:[%s2 + $0x30] sm:$0xff]
      %v1199 = vld [vmem:[%s2 + $0x38] sm:$0xff]
      %v1200 = vld [vmem:[%s2 + $0x40] sm:$0xff]
      %v1201 = vld [vmem:[%s2 + $0x48] sm:$0xff]
      %v1202 = vld [vmem:[%s2 + $0x50] sm:$0xff]
      %v1203 = vld [vmem:[%s2 + $0x58] sm:$0xff]
      %v1204 = vld [vmem:[%s2 + $0x60] sm:$0xff]
      %v1205 = vld [vmem:[%s2 + $0x68] sm:$0xff]
      %v1206 = vld [vmem:[%s2 + $0x70] sm:$0xff]
      %v1207 = vld [vmem:[%s2 + $0x78] sm:$0xff]
      %v1208 = vld [vmem:[%s2 + $0x80] sm:$0xff]
      %v1209 = vld [vmem:[%s2 + $0x88] sm:$0xff]
      %v1210 = vld [vmem:[%s2 + $0x90] sm:$0xff]
      %v1211 = vld [vmem:[%s2 + $0x98] sm:$0xff]
      %v1212 = vld [vmem:[%s2 + $0xa0] sm:$0xff]
      %v1213 = vld [vmem:[%s2 + $0xa8] sm:$0xff]
      %v1214 = vld [vmem:[%s2 + $0xb0] sm:$0xff]
      %v1215 = vld [vmem:[%s2 + $0xb8] sm:$0xff]
      %v1216 = vld [vmem:[%s2 + $0xc0] sm:$0xff]
      %v1217 = vld [vmem:[%s2 + $0xc8] sm:$0xff]
      %v1218 = vld [vmem:[%s2 + $0xd0] sm:$0xff]
      %v1219 = vld [vmem:[%s2 + $0xd8] sm:$0xff]
      %v1220 = vld [vmem:[%s2 + $0xe0] sm:$0xff]
      %v1221 = vld [vmem:[%s2 + $0xe8] sm:$0xff]
      %v1222 = vld [vmem:[%s2 + $0xf0] sm:$0xff]
      %v1223 = vld [vmem:[%s2 + $0xf8] sm:$0xff]
      %v1224 = vld [vmem:[%s2 + $0x100] sm:$0xff]
      %v1225 = vld [vmem:[%s2 + $0x108] sm:$0xff]
      %v1226 = vld [vmem:[%s2 + $0x110] sm:$0xff]
      %v1227 = vld [vmem:[%s2 + $0x118] sm:$0xff]
      %v1228 = vld [vmem:[%s2 + $0x120] sm:$0xff]
      %v1229 = vld [vmem:[%s2 + $0x128] sm:$0xff]
      %v1230 = vld [vmem:[%s2 + $0x130] sm:$0xff]
      %v1231 = vld [vmem:[%s2 + $0x138] sm:$0xff]
      %v1232 = vld [vmem:[%s2 + $0x140] sm:$0xff]
      %v1233 = vld [vmem:[%s2 + $0x148] sm:$0xff]
      %v1234 = vld [vmem:[%s2 + $0x150] sm:$0xff]
      %v1235 = vld [vmem:[%s2 + $0x158] sm:$0xff]
      %v1236 = vld [vmem:[%s2 + $0x160] sm:$0xff]
      %v1237 = vld [vmem:[%s2 + $0x168] sm:$0xff]
      %v1238 = vld [vmem:[%s2 + $0x170] sm:$0xff]
      %v1239 = vld [vmem:[%s2 + $0x178] sm:$0xff]
      %v1240 = vld [vmem:[%s2 + $0x180] sm:$0xff]
      %v1241 = vld [vmem:[%s2 + $0x188] sm:$0xff]
      %v1242 = vld [vmem:[%s2 + $0x190] sm:$0xff]
      %v1243 = vld [vmem:[%s2 + $0x198] sm:$0xff]
      %v1244 = vld [vmem:[%s2 + $0x1a0] sm:$0xff]
      %v1245 = vld [vmem:[%s2 + $0x1a8] sm:$0xff]
      %v1246 = vld [vmem:[%s2 + $0x1b0] sm:$0xff]
      %v1247 = vld [vmem:[%s2 + $0x1b8] sm:$0xff]
      %v1248 = vld [vmem:[%s2 + $0x1c0] sm:$0xff]
      %v1249 = vld [vmem:[%s2 + $0x1c8] sm:$0xff]
      %v1250 = vld [vmem:[%s2 + $0x1d0] sm:$0xff]
      %v1251 = vld [vmem:[%s2 + $0x1d8] sm:$0xff]
      %v1252 = vld [vmem:[%s2 + $0x1e0] sm:$0xff]
      %v1253 = vld [vmem:[%s2 + $0x1e8] sm:$0xff]
      %v1254 = vld [vmem:[%s2 + $0x1f0] sm:$0xff]
      %v1255 = vld [vmem:[%s2 + $0x1f8] sm:$0xff]
      %v1256 = vld [vmem:[%s2 + $0x200] sm:$0xff]
      %v1257 = vld [vmem:[%s2 + $0x208] sm:$0xff]
      %v1258 = vld [vmem:[%s2 + $0x210] sm:$0xff]
      %v1259 = vld [vmem:[%s2 + $0x218] sm:$0xff]
      %v1260 = vld [vmem:[%s2 + $0x220] sm:$0xff]
      %v1261 = vld [vmem:[%s2 + $0x228] sm:$0xff]
      %v1262 = vld [vmem:[%s2 + $0x230] sm:$0xff]
      %v1263 = vld [vmem:[%s2 + $0x238] sm:$0xff]
      %v1264 = vld [vmem:[%s2 + $0x240] sm:$0xff]
      %v1265 = vld [vmem:[%s2 + $0x248] sm:$0xff]
      %v1266 = vld [vmem:[%s2 + $0x250] sm:$0xff]
      %v1267 = vld [vmem:[%s2 + $0x258] sm:$0xff]
      %v1268 = vld [vmem:[%s2 + $0x260] sm:$0xff]
      %v1269 = vld [vmem:[%s2 + $0x268] sm:$0xff]
      %v1270 = vld [vmem:[%s2 + $0x270] sm:$0xff]
      %v1271 = vld [vmem:[%s2 + $0x278] sm:$0xff]
      %v1272 = vld [vmem:[%s2 + $0x280] sm:$0xff]
      %v1273 = vld [vmem:[%s2 + $0x288] sm:$0xff]
      %v1274 = vld [vmem:[%s2 + $0x290] sm:$0xff]
      %v1275 = vld [vmem:[%s2 + $0x298] sm:$0xff]
      %v1276 = vld [vmem:[%s2 + $0x2a0] sm:$0xff]
      %v1277 = vld [vmem:[%s2 + $0x2a8] sm:$0xff]
      %v1278 = vld [vmem:[%s2 + $0x2b0] sm:$0xff]
      %v1279 = vld [vmem:[%s2 + $0x2b8] sm:$0xff]
      %v1280 = vld [vmem:[%s2 + $0x2c0] sm:$0xff]
      %v1281 = vld [vmem:[%s2 + $0x2c8] sm:$0xff]
      %v1282 = vld [vmem:[%s2 + $0x2d0] sm:$0xff]
      %v1283 = vld [vmem:[%s2 + $0x2d8] sm:$0xff]
      %v1284 = vld [vmem:[%s2 + $0x2e0] sm:$0xff]
      %v1285 = vld [vmem:[%s2 + $0x2e8] sm:$0xff]
      %v1286 = vld [vmem:[%s2 + $0x2f0] sm:$0xff]
      %v1287 = vld [vmem:[%s2 + $0x2f8] sm:$0xff]
      %v1288 = vld [vmem:[%s2 + $0x300] sm:$0xff]
      %v1289 = vld [vmem:[%s2 + $0x308] sm:$0xff]
      %v1290 = vld [vmem:[%s2 + $0x310] sm:$0xff]
      %v1291 = vld [vmem:[%s2 + $0x318] sm:$0xff]
      %v1292 = vld [vmem:[%s2 + $0x320] sm:$0xff]
      %v1293 = vld [vmem:[%s2 + $0x328] sm:$0xff]
      %v1294 = vld [vmem:[%s2 + $0x330] sm:$0xff]
      %v1295 = vld [vmem:[%s2 + $0x338] sm:$0xff]
      %v1296 = vld [vmem:[%s2 + $0x340] sm:$0xff]
      %v1297 = vld [vmem:[%s2 + $0x348] sm:$0xff]
      %v1298 = vld [vmem:[%s2 + $0x350] sm:$0xff]
      %v1299 = vld [vmem:[%s2 + $0x358] sm:$0xff]
      %v1300 = vld [vmem:[%s2 + $0x360] sm:$0xff]
      %v1301 = vld [vmem:[%s2 + $0x368] sm:$0xff]
      %v1302 = vld [vmem:[%s2 + $0x370] sm:$0xff]
      %v1303 = vld [vmem:[%s2 + $0x378] sm:$0xff]
      %v1304 = vld [vmem:[%s2 + $0x380] sm:$0xff]
      %v1305 = vld [vmem:[%s2 + $0x388] sm:$0xff]
      %v1306 = vld [vmem:[%s2 + $0x390] sm:$0xff]
      %v1307 = vld [vmem:[%s2 + $0x398] sm:$0xff]
      %v1308 = vld [vmem:[%s2 + $0x3a0] sm:$0xff]
      %v1309 = vld [vmem:[%s2 + $0x3a8] sm:$0xff]
      %v1310 = vld [vmem:[%s2 + $0x3b0] sm:$0xff]
      %v1311 = vld [vmem:[%s2 + $0x3b8] sm:$0xff]
      %v1312 = vld [vmem:[%s2 + $0x3c0] sm:$0xff]
      %v1313 = vld [vmem:[%s2 + $0x3c8] sm:$0xff]
      %v1314 = vld [vmem:[%s2 + $0x3d0] sm:$0xff]
      %v1315 = vld [vmem:[%s2 + $0x3d8] sm:$0xff]
      %v1316 = vld [vmem:[%s2 + $0x3e0] sm:$0xff]
      %v1317 = vld [vmem:[%s2 + $0x3e8] sm:$0xff]
      %v1318 = vld [vmem:[%s2 + $0x3f0] sm:$0xff]
      %v1319 = vld [vmem:[%s2 + $0x3f8] sm:$0xff]
      %v1320 = vld [vmem:[%s2 + $0x400] sm:$0xff]
      %v1321 = vld [vmem:[%s2 + $0x408] sm:$0xff]
      %v1322 = vld [vmem:[%s2 + $0x410] sm:$0xff]
      %v1323 = vld [vmem:[%s2 + $0x418] sm:$0xff]
      %v1324 = vld [vmem:[%s2 + $0x420] sm:$0xff]
      %v1325 = vld [vmem:[%s2 + $0x428] sm:$0xff]
      %v1326 = vld [vmem:[%s2 + $0x430] sm:$0xff]
      %v1327 = vld [vmem:[%s2 + $0x438] sm:$0xff]
      %v1328 = vld [vmem:[%s2 + $0x440] sm:$0xff]
      %v1329 = vld [vmem:[%s2 + $0x448] sm:$0xff]
      %v1330 = vld [vmem:[%s2 + $0x450] sm:$0xff]
      %v1331 = vld [vmem:[%s2 + $0x458] sm:$0xff]
      %v1332 = vld [vmem:[%s2 + $0x460] sm:$0xff]
      %v1333 = vld [vmem:[%s2 + $0x468] sm:$0xff]
      %v1334 = vld [vmem:[%s2 + $0x470] sm:$0xff]
      %v1335 = vld [vmem:[%s2 + $0x478] sm:$0xff]
      %1336 = vmatpush.msra.mxu0 %v1207
      %1337 = vmatpush.msra.mxu0 %v1206
      %1338 = vmatpush.msra.mxu0 %v1205
      %1339 = vmatpush.msra.mxu0 %v1204
      %1340 = vmatpush.msra.mxu0 %v1203
      %1341 = vmatpush.msra.mxu0 %v1202
      %1342 = vmatpush.msra.mxu0 %v1201
      %1343 = vmatpush.msra.mxu0 %v1200
      %1344 = vmatpush.msra.mxu0 %v1199
      %1345 = vmatpush.msra.mxu0 %v1198
      %1346 = vmatpush.msra.mxu0 %v1197
      %1347 = vmatpush.msra.mxu0 %v1196
      %1348 = vmatpush.msra.mxu0 %v1195
      %1349 = vmatpush.msra.mxu0 %v1194
      %1350 = vmatpush.msra.mxu0 %v1193
      %1351 = vmatpush.msra.mxu0 %v1192
      %1352 = vmatmul.f32.gmra.mxu0 %v904
      %v1353 = vpop.f32.mrf.mxu0
      %v1354 = vadd.f32 0.0, %v1353
      %1355 = vmatmul.f32.gmra.mxu0 %v913
      %v1356 = vpop.f32.mrf.mxu0
      %v1357 = vadd.f32 0.0, %v1356
      %1358 = vmatmul.f32.gmra.mxu0 %v922
      %v1359 = vpop.f32.mrf.mxu0
      %v1360 = vadd.f32 0.0, %v1359
      %1361 = vmatmul.f32.gmra.mxu0 %v931
      %v1362 = vpop.f32.mrf.mxu0
      %v1363 = vadd.f32 0.0, %v1362
      %1364 = vmatmul.f32.gmra.mxu0 %v940
      %v1365 = vpop.f32.mrf.mxu0
      %v1366 = vadd.f32 0.0, %v1365
      %1367 = vmatmul.f32.gmra.mxu0 %v949
      %v1368 = vpop.f32.mrf.mxu0
      %v1369 = vadd.f32 0.0, %v1368
      %1370 = vmatmul.f32.gmra.mxu0 %v958
      %v1371 = vpop.f32.mrf.mxu0
      %v1372 = vadd.f32 0.0, %v1371
      %1373 = vmatmul.f32.gmra.mxu0 %v967
      %v1374 = vpop.f32.mrf.mxu0
      %v1375 = vadd.f32 0.0, %v1374
      %1376 = vmatmul.f32.gmra.mxu0 %v976
      %v1377 = vpop.f32.mrf.mxu0
      %v1378 = vadd.f32 0.0, %v1377
      %1379 = vmatmul.f32.gmra.mxu0 %v985
      %v1380 = vpop.f32.mrf.mxu0
      %v1381 = vadd.f32 0.0, %v1380
      %1382 = vmatmul.f32.gmra.mxu0 %v994
      %v1383 = vpop.f32.mrf.mxu0
      %v1384 = vadd.f32 0.0, %v1383
      %1385 = vmatmul.f32.gmra.mxu0 %v1003
      %v1386 = vpop.f32.mrf.mxu0
      %v1387 = vadd.f32 0.0, %v1386
      %1388 = vmatmul.f32.gmra.mxu0 %v1012
      %v1389 = vpop.f32.mrf.mxu0
      %v1390 = vadd.f32 0.0, %v1389
      %1391 = vmatmul.f32.gmra.mxu0 %v1021
      %v1392 = vpop.f32.mrf.mxu0
      %v1393 = vadd.f32 0.0, %v1392
      %1394 = vmatmul.f32.gmra.mxu0 %v1030
      %v1395 = vpop.f32.mrf.mxu0
      %v1396 = vadd.f32 0.0, %v1395
      %1397 = vmatmul.f32.gmra.mxu0 %v1039
      %v1398 = vpop.f32.mrf.mxu0
      %v1399 = vadd.f32 0.0, %v1398
      %1400 = vmatmul.f32.gmra.mxu0 %v1048
      %v1401 = vpop.f32.mrf.mxu0
      %v1402 = vadd.f32 0.0, %v1401
      %1403 = vmatmul.f32.gmra.mxu0 %v1057
      %v1404 = vpop.f32.mrf.mxu0
      %v1405 = vadd.f32 0.0, %v1404
      %1406 = vmatmul.f32.gmra.mxu0 %v1066
      %v1407 = vpop.f32.mrf.mxu0
      %v1408 = vadd.f32 0.0, %v1407
      %1409 = vmatmul.f32.gmra.mxu0 %v1075
      %v1410 = vpop.f32.mrf.mxu0
      %v1411 = vadd.f32 0.0, %v1410
      %1412 = vmatmul.f32.gmra.mxu0 %v1084
      %v1413 = vpop.f32.mrf.mxu0
      %v1414 = vadd.f32 0.0, %v1413
      %1415 = vmatmul.f32.gmra.mxu0 %v1093
      %v1416 = vpop.f32.mrf.mxu0
      %v1417 = vadd.f32 0.0, %v1416
      %1418 = vmatmul.f32.gmra.mxu0 %v1102
      %v1419 = vpop.f32.mrf.mxu0
      %v1420 = vadd.f32 0.0, %v1419
      %1421 = vmatmul.f32.gmra.mxu0 %v1111
      %v1422 = vpop.f32.mrf.mxu0
      %v1423 = vadd.f32 0.0, %v1422
      %1424 = vmatmul.f32.gmra.mxu0 %v1120
      %v1425 = vpop.f32.mrf.mxu0
      %v1426 = vadd.f32 0.0, %v1425
      %1427 = vmatmul.f32.gmra.mxu0 %v1129
      %v1428 = vpop.f32.mrf.mxu0
      %v1429 = vadd.f32 0.0, %v1428
      %1430 = vmatmul.f32.gmra.mxu0 %v1138
      %v1431 = vpop.f32.mrf.mxu0
      %v1432 = vadd.f32 0.0, %v1431
      %1433 = vmatmul.f32.gmra.mxu0 %v1147
      %v1434 = vpop.f32.mrf.mxu0
      %v1435 = vadd.f32 0.0, %v1434
      %1436 = vmatmul.f32.gmra.mxu0 %v1156
      %v1437 = vpop.f32.mrf.mxu0
      %v1438 = vadd.f32 0.0, %v1437
      %1439 = vmatmul.f32.gmra.mxu0 %v1165
      %v1440 = vpop.f32.mrf.mxu0
      %v1441 = vadd.f32 0.0, %v1440
      %1442 = vmatmul.f32.gmra.mxu0 %v1174
      %v1443 = vpop.f32.mrf.mxu0
      %v1444 = vadd.f32 0.0, %v1443
      %1445 = vmatmul.f32.gmra.mxu0 %v1183
      %v1446 = vpop.f32.mrf.mxu0
      %v1447 = vadd.f32 0.0, %v1446
      %1448 = vdwg.mxu0
      %1449 = vmatpush.msra.mxu0 %v1223
      %1450 = vmatpush.msra.mxu0 %v1222
      %1451 = vmatpush.msra.mxu0 %v1221
      %1452 = vmatpush.msra.mxu0 %v1220
      %1453 = vmatpush.msra.mxu0 %v1219
      %1454 = vmatpush.msra.mxu0 %v1218
      %1455 = vmatpush.msra.mxu0 %v1217
      %1456 = vmatpush.msra.mxu0 %v1216
      %1457 = vmatpush.msra.mxu0 %v1215
      %1458 = vmatpush.msra.mxu0 %v1214
      %1459 = vmatpush.msra.mxu0 %v1213
      %1460 = vmatpush.msra.mxu0 %v1212
      %1461 = vmatpush.msra.mxu0 %v1211
      %1462 = vmatpush.msra.mxu0 %v1210
      %1463 = vmatpush.msra.mxu0 %v1209
      %1464 = vmatpush.msra.mxu0 %v1208
      %1465 = vmatmul.f32.gmra.mxu0 %v905
      %v1466 = vpop.f32.mrf.mxu0
      %v1467 = vadd.f32 %v1354, %v1466
      %1468 = vmatmul.f32.gmra.mxu0 %v914
      %v1469 = vpop.f32.mrf.mxu0
      %v1470 = vadd.f32 %v1357, %v1469
      %1471 = vmatmul.f32.gmra.mxu0 %v923
      %v1472 = vpop.f32.mrf.mxu0
      %v1473 = vadd.f32 %v1360, %v1472
      %1474 = vmatmul.f32.gmra.mxu0 %v932
      %v1475 = vpop.f32.mrf.mxu0
      %v1476 = vadd.f32 %v1363, %v1475
      %1477 = vmatmul.f32.gmra.mxu0 %v941
      %v1478 = vpop.f32.mrf.mxu0
      %v1479 = vadd.f32 %v1366, %v1478
      %1480 = vmatmul.f32.gmra.mxu0 %v950
      %v1481 = vpop.f32.mrf.mxu0
      %v1482 = vadd.f32 %v1369, %v1481
      %1483 = vmatmul.f32.gmra.mxu0 %v959
      %v1484 = vpop.f32.mrf.mxu0
      %v1485 = vadd.f32 %v1372, %v1484
      %1486 = vmatmul.f32.gmra.mxu0 %v968
      %v1487 = vpop.f32.mrf.mxu0
      %v1488 = vadd.f32 %v1375, %v1487
      %1489 = vmatmul.f32.gmra.mxu0 %v977
      %v1490 = vpop.f32.mrf.mxu0
      %v1491 = vadd.f32 %v1378, %v1490
      %1492 = vmatmul.f32.gmra.mxu0 %v986
      %v1493 = vpop.f32.mrf.mxu0
      %v1494 = vadd.f32 %v1381, %v1493
      %1495 = vmatmul.f32.gmra.mxu0 %v995
      %v1496 = vpop.f32.mrf.mxu0
      %v1497 = vadd.f32 %v1384, %v1496
      %1498 = vmatmul.f32.gmra.mxu0 %v1004
      %v1499 = vpop.f32.mrf.mxu0
      %v1500 = vadd.f32 %v1387, %v1499
      %1501 = vmatmul.f32.gmra.mxu0 %v1013
      %v1502 = vpop.f32.mrf.mxu0
      %v1503 = vadd.f32 %v1390, %v1502
      %1504 = vmatmul.f32.gmra.mxu0 %v1022
      %v1505 = vpop.f32.mrf.mxu0
      %v1506 = vadd.f32 %v1393, %v1505
      %1507 = vmatmul.f32.gmra.mxu0 %v1031
      %v1508 = vpop.f32.mrf.mxu0
      %v1509 = vadd.f32 %v1396, %v1508
      %1510 = vmatmul.f32.gmra.mxu0 %v1040
      %v1511 = vpop.f32.mrf.mxu0
      %v1512 = vadd.f32 %v1399, %v1511
      %1513 = vmatmul.f32.gmra.mxu0 %v1049
      %v1514 = vpop.f32.mrf.mxu0
      %v1515 = vadd.f32 %v1402, %v1514
      %1516 = vmatmul.f32.gmra.mxu0 %v1058
      %v1517 = vpop.f32.mrf.mxu0
      %v1518 = vadd.f32 %v1405, %v1517
      %1519 = vmatmul.f32.gmra.mxu0 %v1067
      %v1520 = vpop.f32.mrf.mxu0
      %v1521 = vadd.f32 %v1408, %v1520
      %1522 = vmatmul.f32.gmra.mxu0 %v1076
      %v1523 = vpop.f32.mrf.mxu0
      %v1524 = vadd.f32 %v1411, %v1523
      %1525 = vmatmul.f32.gmra.mxu0 %v1085
      %v1526 = vpop.f32.mrf.mxu0
      %v1527 = vadd.f32 %v1414, %v1526
      %1528 = vmatmul.f32.gmra.mxu0 %v1094
      %v1529 = vpop.f32.mrf.mxu0
      %v1530 = vadd.f32 %v1417, %v1529
      %1531 = vmatmul.f32.gmra.mxu0 %v1103
      %v1532 = vpop.f32.mrf.mxu0
      %v1533 = vadd.f32 %v1420, %v1532
      %1534 = vmatmul.f32.gmra.mxu0 %v1112
      %v1535 = vpop.f32.mrf.mxu0
      %v1536 = vadd.f32 %v1423, %v1535
      %1537 = vmatmul.f32.gmra.mxu0 %v1121
      %v1538 = vpop.f32.mrf.mxu0
      %v1539 = vadd.f32 %v1426, %v1538
      %1540 = vmatmul.f32.gmra.mxu0 %v1130
      %v1541 = vpop.f32.mrf.mxu0
      %v1542 = vadd.f32 %v1429, %v1541
      %1543 = vmatmul.f32.gmra.mxu0 %v1139
      %v1544 = vpop.f32.mrf.mxu0
      %v1545 = vadd.f32 %v1432, %v1544
      %1546 = vmatmul.f32.gmra.mxu0 %v1148
      %v1547 = vpop.f32.mrf.mxu0
      %v1548 = vadd.f32 %v1435, %v1547
      %1549 = vmatmul.f32.gmra.mxu0 %v1157
      %v1550 = vpop.f32.mrf.mxu0
      %v1551 = vadd.f32 %v1438, %v1550
      %1552 = vmatmul.f32.gmra.mxu0 %v1166
      %v1553 = vpop.f32.mrf.mxu0
      %v1554 = vadd.f32 %v1441, %v1553
      %1555 = vmatmul.f32.gmra.mxu0 %v1175
      %v1556 = vpop.f32.mrf.mxu0
      %v1557 = vadd.f32 %v1444, %v1556
      %1558 = vmatmul.f32.gmra.mxu0 %v1184
      %v1559 = vpop.f32.mrf.mxu0
      %v1560 = vadd.f32 %v1447, %v1559
      %1561 = vdwg.mxu0
      %1562 = vmatpush.msra.mxu0 %v1239
      %1563 = vmatpush.msra.mxu0 %v1238
      %1564 = vmatpush.msra.mxu0 %v1237
      %1565 = vmatpush.msra.mxu0 %v1236
      %1566 = vmatpush.msra.mxu0 %v1235
      %1567 = vmatpush.msra.mxu0 %v1234
      %1568 = vmatpush.msra.mxu0 %v1233
      %1569 = vmatpush.msra.mxu0 %v1232
      %1570 = vmatpush.msra.mxu0 %v1231
      %1571 = vmatpush.msra.mxu0 %v1230
      %1572 = vmatpush.msra.mxu0 %v1229
      %1573 = vmatpush.msra.mxu0 %v1228
      %1574 = vmatpush.msra.mxu0 %v1227
      %1575 = vmatpush.msra.mxu0 %v1226
      %1576 = vmatpush.msra.mxu0 %v1225
      %1577 = vmatpush.msra.mxu0 %v1224
      %1578 = vmatmul.f32.gmra.mxu0 %v906
      %v1579 = vpop.f32.mrf.mxu0
      %v1580 = vadd.f32 %v1467, %v1579
      %1581 = vmatmul.f32.gmra.mxu0 %v915
      %v1582 = vpop.f32.mrf.mxu0
      %v1583 = vadd.f32 %v1470, %v1582
      %1584 = vmatmul.f32.gmra.mxu0 %v924
      %v1585 = vpop.f32.mrf.mxu0
      %v1586 = vadd.f32 %v1473, %v1585
      %1587 = vmatmul.f32.gmra.mxu0 %v933
      %v1588 = vpop.f32.mrf.mxu0
      %v1589 = vadd.f32 %v1476, %v1588
      %1590 = vmatmul.f32.gmra.mxu0 %v942
      %v1591 = vpop.f32.mrf.mxu0
      %v1592 = vadd.f32 %v1479, %v1591
      %1593 = vmatmul.f32.gmra.mxu0 %v951
      %v1594 = vpop.f32.mrf.mxu0
      %v1595 = vadd.f32 %v1482, %v1594
      %1596 = vmatmul.f32.gmra.mxu0 %v960
      %v1597 = vpop.f32.mrf.mxu0
      %v1598 = vadd.f32 %v1485, %v1597
      %1599 = vmatmul.f32.gmra.mxu0 %v969
      %v1600 = vpop.f32.mrf.mxu0
      %v1601 = vadd.f32 %v1488, %v1600
      %1602 = vmatmul.f32.gmra.mxu0 %v978
      %v1603 = vpop.f32.mrf.mxu0
      %v1604 = vadd.f32 %v1491, %v1603
      %1605 = vmatmul.f32.gmra.mxu0 %v987
      %v1606 = vpop.f32.mrf.mxu0
      %v1607 = vadd.f32 %v1494, %v1606
      %1608 = vmatmul.f32.gmra.mxu0 %v996
      %v1609 = vpop.f32.mrf.mxu0
      %v1610 = vadd.f32 %v1497, %v1609
      %1611 = vmatmul.f32.gmra.mxu0 %v1005
      %v1612 = vpop.f32.mrf.mxu0
      %v1613 = vadd.f32 %v1500, %v1612
      %1614 = vmatmul.f32.gmra.mxu0 %v1014
      %v1615 = vpop.f32.mrf.mxu0
      %v1616 = vadd.f32 %v1503, %v1615
      %1617 = vmatmul.f32.gmra.mxu0 %v1023
      %v1618 = vpop.f32.mrf.mxu0
      %v1619 = vadd.f32 %v1506, %v1618
      %1620 = vmatmul.f32.gmra.mxu0 %v1032
      %v1621 = vpop.f32.mrf.mxu0
      %v1622 = vadd.f32 %v1509, %v1621
      %1623 = vmatmul.f32.gmra.mxu0 %v1041
      %v1624 = vpop.f32.mrf.mxu0
      %v1625 = vadd.f32 %v1512, %v1624
      %1626 = vmatmul.f32.gmra.mxu0 %v1050
      %v1627 = vpop.f32.mrf.mxu0
      %v1628 = vadd.f32 %v1515, %v1627
      %1629 = vmatmul.f32.gmra.mxu0 %v1059
      %v1630 = vpop.f32.mrf.mxu0
      %v1631 = vadd.f32 %v1518, %v1630
      %1632 = vmatmul.f32.gmra.mxu0 %v1068
      %v1633 = vpop.f32.mrf.mxu0
      %v1634 = vadd.f32 %v1521, %v1633
      %1635 = vmatmul.f32.gmra.mxu0 %v1077
      %v1636 = vpop.f32.mrf.mxu0
      %v1637 = vadd.f32 %v1524, %v1636
      %1638 = vmatmul.f32.gmra.mxu0 %v1086
      %v1639 = vpop.f32.mrf.mxu0
      %v1640 = vadd.f32 %v1527, %v1639
      %1641 = vmatmul.f32.gmra.mxu0 %v1095
      %v1642 = vpop.f32.mrf.mxu0
      %v1643 = vadd.f32 %v1530, %v1642
      %1644 = vmatmul.f32.gmra.mxu0 %v1104
      %v1645 = vpop.f32.mrf.mxu0
      %v1646 = vadd.f32 %v1533, %v1645
      %1647 = vmatmul.f32.gmra.mxu0 %v1113
      %v1648 = vpop.f32.mrf.mxu0
      %v1649 = vadd.f32 %v1536, %v1648
      %1650 = vmatmul.f32.gmra.mxu0 %v1122
      %v1651 = vpop.f32.mrf.mxu0
      %v1652 = vadd.f32 %v1539, %v1651
      %1653 = vmatmul.f32.gmra.mxu0 %v1131
      %v1654 = vpop.f32.mrf.mxu0
      %v1655 = vadd.f32 %v1542, %v1654
      %1656 = vmatmul.f32.gmra.mxu0 %v1140
      %v1657 = vpop.f32.mrf.mxu0
      %v1658 = vadd.f32 %v1545, %v1657
      %1659 = vmatmul.f32.gmra.mxu0 %v1149
      %v1660 = vpop.f32.mrf.mxu0
      %v1661 = vadd.f32 %v1548, %v1660
      %1662 = vmatmul.f32.gmra.mxu0 %v1158
      %v1663 = vpop.f32.mrf.mxu0
      %v1664 = vadd.f32 %v1551, %v1663
      %1665 = vmatmul.f32.gmra.mxu0 %v1167
      %v1666 = vpop.f32.mrf.mxu0
      %v1667 = vadd.f32 %v1554, %v1666
      %1668 = vmatmul.f32.gmra.mxu0 %v1176
      %v1669 = vpop.f32.mrf.mxu0
      %v1670 = vadd.f32 %v1557, %v1669
      %1671 = vmatmul.f32.gmra.mxu0 %v1185
      %v1672 = vpop.f32.mrf.mxu0
      %v1673 = vadd.f32 %v1560, %v1672
      %1674 = vdwg.mxu0
      %1675 = vmatpush.msra.mxu0 %v1255
      %1676 = vmatpush.msra.mxu0 %v1254
      %1677 = vmatpush.msra.mxu0 %v1253
      %1678 = vmatpush.msra.mxu0 %v1252
      %1679 = vmatpush.msra.mxu0 %v1251
      %1680 = vmatpush.msra.mxu0 %v1250
      %1681 = vmatpush.msra.mxu0 %v1249
      %1682 = vmatpush.msra.mxu0 %v1248
      %1683 = vmatpush.msra.mxu0 %v1247
      %1684 = vmatpush.msra.mxu0 %v1246
      %1685 = vmatpush.msra.mxu0 %v1245
      %1686 = vmatpush.msra.mxu0 %v1244
      %1687 = vmatpush.msra.mxu0 %v1243
      %1688 = vmatpush.msra.mxu0 %v1242
      %1689 = vmatpush.msra.mxu0 %v1241
      %1690 = vmatpush.msra.mxu0 %v1240
      %1691 = vmatmul.f32.gmra.mxu0 %v907
      %v1692 = vpop.f32.mrf.mxu0
      %v1693 = vadd.f32 %v1580, %v1692
      %1694 = vmatmul.f32.gmra.mxu0 %v916
      %v1695 = vpop.f32.mrf.mxu0
      %v1696 = vadd.f32 %v1583, %v1695
      %1697 = vmatmul.f32.gmra.mxu0 %v925
      %v1698 = vpop.f32.mrf.mxu0
      %v1699 = vadd.f32 %v1586, %v1698
      %1700 = vmatmul.f32.gmra.mxu0 %v934
      %v1701 = vpop.f32.mrf.mxu0
      %v1702 = vadd.f32 %v1589, %v1701
      %1703 = vmatmul.f32.gmra.mxu0 %v943
      %v1704 = vpop.f32.mrf.mxu0
      %v1705 = vadd.f32 %v1592, %v1704
      %1706 = vmatmul.f32.gmra.mxu0 %v952
      %v1707 = vpop.f32.mrf.mxu0
      %v1708 = vadd.f32 %v1595, %v1707
      %1709 = vmatmul.f32.gmra.mxu0 %v961
      %v1710 = vpop.f32.mrf.mxu0
      %v1711 = vadd.f32 %v1598, %v1710
      %1712 = vmatmul.f32.gmra.mxu0 %v970
      %v1713 = vpop.f32.mrf.mxu0
      %v1714 = vadd.f32 %v1601, %v1713
      %1715 = vmatmul.f32.gmra.mxu0 %v979
      %v1716 = vpop.f32.mrf.mxu0
      %v1717 = vadd.f32 %v1604, %v1716
      %1718 = vmatmul.f32.gmra.mxu0 %v988
      %v1719 = vpop.f32.mrf.mxu0
      %v1720 = vadd.f32 %v1607, %v1719
      %1721 = vmatmul.f32.gmra.mxu0 %v997
      %v1722 = vpop.f32.mrf.mxu0
      %v1723 = vadd.f32 %v1610, %v1722
      %1724 = vmatmul.f32.gmra.mxu0 %v1006
      %v1725 = vpop.f32.mrf.mxu0
      %v1726 = vadd.f32 %v1613, %v1725
      %1727 = vmatmul.f32.gmra.mxu0 %v1015
      %v1728 = vpop.f32.mrf.mxu0
      %v1729 = vadd.f32 %v1616, %v1728
      %1730 = vmatmul.f32.gmra.mxu0 %v1024
      %v1731 = vpop.f32.mrf.mxu0
      %v1732 = vadd.f32 %v1619, %v1731
      %1733 = vmatmul.f32.gmra.mxu0 %v1033
      %v1734 = vpop.f32.mrf.mxu0
      %v1735 = vadd.f32 %v1622, %v1734
      %1736 = vmatmul.f32.gmra.mxu0 %v1042
      %v1737 = vpop.f32.mrf.mxu0
      %v1738 = vadd.f32 %v1625, %v1737
      %1739 = vmatmul.f32.gmra.mxu0 %v1051
      %v1740 = vpop.f32.mrf.mxu0
      %v1741 = vadd.f32 %v1628, %v1740
      %1742 = vmatmul.f32.gmra.mxu0 %v1060
      %v1743 = vpop.f32.mrf.mxu0
      %v1744 = vadd.f32 %v1631, %v1743
      %1745 = vmatmul.f32.gmra.mxu0 %v1069
      %v1746 = vpop.f32.mrf.mxu0
      %v1747 = vadd.f32 %v1634, %v1746
      %1748 = vmatmul.f32.gmra.mxu0 %v1078
      %v1749 = vpop.f32.mrf.mxu0
      %v1750 = vadd.f32 %v1637, %v1749
      %1751 = vmatmul.f32.gmra.mxu0 %v1087
      %v1752 = vpop.f32.mrf.mxu0
      %v1753 = vadd.f32 %v1640, %v1752
      %1754 = vmatmul.f32.gmra.mxu0 %v1096
      %v1755 = vpop.f32.mrf.mxu0
      %v1756 = vadd.f32 %v1643, %v1755
      %1757 = vmatmul.f32.gmra.mxu0 %v1105
      %v1758 = vpop.f32.mrf.mxu0
      %v1759 = vadd.f32 %v1646, %v1758
      %1760 = vmatmul.f32.gmra.mxu0 %v1114
      %v1761 = vpop.f32.mrf.mxu0
      %v1762 = vadd.f32 %v1649, %v1761
      %1763 = vmatmul.f32.gmra.mxu0 %v1123
      %v1764 = vpop.f32.mrf.mxu0
      %v1765 = vadd.f32 %v1652, %v1764
      %1766 = vmatmul.f32.gmra.mxu0 %v1132
      %v1767 = vpop.f32.mrf.mxu0
      %v1768 = vadd.f32 %v1655, %v1767
      %1769 = vmatmul.f32.gmra.mxu0 %v1141
      %v1770 = vpop.f32.mrf.mxu0
      %v1771 = vadd.f32 %v1658, %v1770
      %1772 = vmatmul.f32.gmra.mxu0 %v1150
      %v1773 = vpop.f32.mrf.mxu0
      %v1774 = vadd.f32 %v1661, %v1773
      %1775 = vmatmul.f32.gmra.mxu0 %v1159
      %v1776 = vpop.f32.mrf.mxu0
      %v1777 = vadd.f32 %v1664, %v1776
      %1778 = vmatmul.f32.gmra.mxu0 %v1168
      %v1779 = vpop.f32.mrf.mxu0
      %v1780 = vadd.f32 %v1667, %v1779
      %1781 = vmatmul.f32.gmra.mxu0 %v1177
      %v1782 = vpop.f32.mrf.mxu0
      %v1783 = vadd.f32 %v1670, %v1782
      %1784 = vmatmul.f32.gmra.mxu0 %v1186
      %v1785 = vpop.f32.mrf.mxu0
      %v1786 = vadd.f32 %v1673, %v1785
      %1787 = vdwg.mxu0
      %1788 = vmatpush.msra.mxu0 %v1271
      %1789 = vmatpush.msra.mxu0 %v1270
      %1790 = vmatpush.msra.mxu0 %v1269
      %1791 = vmatpush.msra.mxu0 %v1268
      %1792 = vmatpush.msra.mxu0 %v1267
      %1793 = vmatpush.msra.mxu0 %v1266
      %1794 = vmatpush.msra.mxu0 %v1265
      %1795 = vmatpush.msra.mxu0 %v1264
      %1796 = vmatpush.msra.mxu0 %v1263
      %1797 = vmatpush.msra.mxu0 %v1262
      %1798 = vmatpush.msra.mxu0 %v1261
      %1799 = vmatpush.msra.mxu0 %v1260
      %1800 = vmatpush.msra.mxu0 %v1259
      %1801 = vmatpush.msra.mxu0 %v1258
      %1802 = vmatpush.msra.mxu0 %v1257
      %1803 = vmatpush.msra.mxu0 %v1256
      %1804 = vmatmul.f32.gmra.mxu0 %v908
      %v1805 = vpop.f32.mrf.mxu0
      %v1806 = vadd.f32 %v1693, %v1805
      %1807 = vmatmul.f32.gmra.mxu0 %v917
      %v1808 = vpop.f32.mrf.mxu0
      %v1809 = vadd.f32 %v1696, %v1808
      %1810 = vmatmul.f32.gmra.mxu0 %v926
      %v1811 = vpop.f32.mrf.mxu0
      %v1812 = vadd.f32 %v1699, %v1811
      %1813 = vmatmul.f32.gmra.mxu0 %v935
      %v1814 = vpop.f32.mrf.mxu0
      %v1815 = vadd.f32 %v1702, %v1814
      %1816 = vmatmul.f32.gmra.mxu0 %v944
      %v1817 = vpop.f32.mrf.mxu0
      %v1818 = vadd.f32 %v1705, %v1817
      %1819 = vmatmul.f32.gmra.mxu0 %v953
      %v1820 = vpop.f32.mrf.mxu0
      %v1821 = vadd.f32 %v1708, %v1820
      %1822 = vmatmul.f32.gmra.mxu0 %v962
      %v1823 = vpop.f32.mrf.mxu0
      %v1824 = vadd.f32 %v1711, %v1823
      %1825 = vmatmul.f32.gmra.mxu0 %v971
      %v1826 = vpop.f32.mrf.mxu0
      %v1827 = vadd.f32 %v1714, %v1826
      %1828 = vmatmul.f32.gmra.mxu0 %v980
      %v1829 = vpop.f32.mrf.mxu0
      %v1830 = vadd.f32 %v1717, %v1829
      %1831 = vmatmul.f32.gmra.mxu0 %v989
      %v1832 = vpop.f32.mrf.mxu0
      %v1833 = vadd.f32 %v1720, %v1832
      %1834 = vmatmul.f32.gmra.mxu0 %v998
      %v1835 = vpop.f32.mrf.mxu0
      %v1836 = vadd.f32 %v1723, %v1835
      %1837 = vmatmul.f32.gmra.mxu0 %v1007
      %v1838 = vpop.f32.mrf.mxu0
      %v1839 = vadd.f32 %v1726, %v1838
      %1840 = vmatmul.f32.gmra.mxu0 %v1016
      %v1841 = vpop.f32.mrf.mxu0
      %v1842 = vadd.f32 %v1729, %v1841
      %1843 = vmatmul.f32.gmra.mxu0 %v1025
      %v1844 = vpop.f32.mrf.mxu0
      %v1845 = vadd.f32 %v1732, %v1844
      %1846 = vmatmul.f32.gmra.mxu0 %v1034
      %v1847 = vpop.f32.mrf.mxu0
      %v1848 = vadd.f32 %v1735, %v1847
      %1849 = vmatmul.f32.gmra.mxu0 %v1043
      %v1850 = vpop.f32.mrf.mxu0
      %v1851 = vadd.f32 %v1738, %v1850
      %1852 = vmatmul.f32.gmra.mxu0 %v1052
      %v1853 = vpop.f32.mrf.mxu0
      %v1854 = vadd.f32 %v1741, %v1853
      %1855 = vmatmul.f32.gmra.mxu0 %v1061
      %v1856 = vpop.f32.mrf.mxu0
      %v1857 = vadd.f32 %v1744, %v1856
      %1858 = vmatmul.f32.gmra.mxu0 %v1070
      %v1859 = vpop.f32.mrf.mxu0
      %v1860 = vadd.f32 %v1747, %v1859
      %1861 = vmatmul.f32.gmra.mxu0 %v1079
      %v1862 = vpop.f32.mrf.mxu0
      %v1863 = vadd.f32 %v1750, %v1862
      %1864 = vmatmul.f32.gmra.mxu0 %v1088
      %v1865 = vpop.f32.mrf.mxu0
      %v1866 = vadd.f32 %v1753, %v1865
      %1867 = vmatmul.f32.gmra.mxu0 %v1097
      %v1868 = vpop.f32.mrf.mxu0
      %v1869 = vadd.f32 %v1756, %v1868
      %1870 = vmatmul.f32.gmra.mxu0 %v1106
      %v1871 = vpop.f32.mrf.mxu0
      %v1872 = vadd.f32 %v1759, %v1871
      %1873 = vmatmul.f32.gmra.mxu0 %v1115
      %v1874 = vpop.f32.mrf.mxu0
      %v1875 = vadd.f32 %v1762, %v1874
      %1876 = vmatmul.f32.gmra.mxu0 %v1124
      %v1877 = vpop.f32.mrf.mxu0
      %v1878 = vadd.f32 %v1765, %v1877
      %1879 = vmatmul.f32.gmra.mxu0 %v1133
      %v1880 = vpop.f32.mrf.mxu0
      %v1881 = vadd.f32 %v1768, %v1880
      %1882 = vmatmul.f32.gmra.mxu0 %v1142
      %v1883 = vpop.f32.mrf.mxu0
      %v1884 = vadd.f32 %v1771, %v1883
      %1885 = vmatmul.f32.gmra.mxu0 %v1151
      %v1886 = vpop.f32.mrf.mxu0
      %v1887 = vadd.f32 %v1774, %v1886
      %1888 = vmatmul.f32.gmra.mxu0 %v1160
      %v1889 = vpop.f32.mrf.mxu0
      %v1890 = vadd.f32 %v1777, %v1889
      %1891 = vmatmul.f32.gmra.mxu0 %v1169
      %v1892 = vpop.f32.mrf.mxu0
      %v1893 = vadd.f32 %v1780, %v1892
      %1894 = vmatmul.f32.gmra.mxu0 %v1178
      %v1895 = vpop.f32.mrf.mxu0
      %v1896 = vadd.f32 %v1783, %v1895
      %1897 = vmatmul.f32.gmra.mxu0 %v1187
      %v1898 = vpop.f32.mrf.mxu0
      %v1899 = vadd.f32 %v1786, %v1898
      %1900 = vdwg.mxu0
      %1901 = vmatpush.msra.mxu0 %v1287
      %1902 = vmatpush.msra.mxu0 %v1286
      %1903 = vmatpush.msra.mxu0 %v1285
      %1904 = vmatpush.msra.mxu0 %v1284
      %1905 = vmatpush.msra.mxu0 %v1283
      %1906 = vmatpush.msra.mxu0 %v1282
      %1907 = vmatpush.msra.mxu0 %v1281
      %1908 = vmatpush.msra.mxu0 %v1280
      %1909 = vmatpush.msra.mxu0 %v1279
      %1910 = vmatpush.msra.mxu0 %v1278
      %1911 = vmatpush.msra.mxu0 %v1277
      %1912 = vmatpush.msra.mxu0 %v1276
      %1913 = vmatpush.msra.mxu0 %v1275
      %1914 = vmatpush.msra.mxu0 %v1274
      %1915 = vmatpush.msra.mxu0 %v1273
      %1916 = vmatpush.msra.mxu0 %v1272
      %1917 = vmatmul.f32.gmra.mxu0 %v909
      %v1918 = vpop.f32.mrf.mxu0
      %v1919 = vadd.f32 %v1806, %v1918
      %1920 = vmatmul.f32.gmra.mxu0 %v918
      %v1921 = vpop.f32.mrf.mxu0
      %v1922 = vadd.f32 %v1809, %v1921
      %1923 = vmatmul.f32.gmra.mxu0 %v927
      %v1924 = vpop.f32.mrf.mxu0
      %v1925 = vadd.f32 %v1812, %v1924
      %1926 = vmatmul.f32.gmra.mxu0 %v936
      %v1927 = vpop.f32.mrf.mxu0
      %v1928 = vadd.f32 %v1815, %v1927
      %1929 = vmatmul.f32.gmra.mxu0 %v945
      %v1930 = vpop.f32.mrf.mxu0
      %v1931 = vadd.f32 %v1818, %v1930
      %1932 = vmatmul.f32.gmra.mxu0 %v954
      %v1933 = vpop.f32.mrf.mxu0
      %v1934 = vadd.f32 %v1821, %v1933
      %1935 = vmatmul.f32.gmra.mxu0 %v963
      %v1936 = vpop.f32.mrf.mxu0
      %v1937 = vadd.f32 %v1824, %v1936
      %1938 = vmatmul.f32.gmra.mxu0 %v972
      %v1939 = vpop.f32.mrf.mxu0
      %v1940 = vadd.f32 %v1827, %v1939
      %1941 = vmatmul.f32.gmra.mxu0 %v981
      %v1942 = vpop.f32.mrf.mxu0
      %v1943 = vadd.f32 %v1830, %v1942
      %1944 = vmatmul.f32.gmra.mxu0 %v990
      %v1945 = vpop.f32.mrf.mxu0
      %v1946 = vadd.f32 %v1833, %v1945
      %1947 = vmatmul.f32.gmra.mxu0 %v999
      %v1948 = vpop.f32.mrf.mxu0
      %v1949 = vadd.f32 %v1836, %v1948
      %1950 = vmatmul.f32.gmra.mxu0 %v1008
      %v1951 = vpop.f32.mrf.mxu0
      %v1952 = vadd.f32 %v1839, %v1951
      %1953 = vmatmul.f32.gmra.mxu0 %v1017
      %v1954 = vpop.f32.mrf.mxu0
      %v1955 = vadd.f32 %v1842, %v1954
      %1956 = vmatmul.f32.gmra.mxu0 %v1026
      %v1957 = vpop.f32.mrf.mxu0
      %v1958 = vadd.f32 %v1845, %v1957
      %1959 = vmatmul.f32.gmra.mxu0 %v1035
      %v1960 = vpop.f32.mrf.mxu0
      %v1961 = vadd.f32 %v1848, %v1960
      %1962 = vmatmul.f32.gmra.mxu0 %v1044
      %v1963 = vpop.f32.mrf.mxu0
      %v1964 = vadd.f32 %v1851, %v1963
      %1965 = vmatmul.f32.gmra.mxu0 %v1053
      %v1966 = vpop.f32.mrf.mxu0
      %v1967 = vadd.f32 %v1854, %v1966
      %1968 = vmatmul.f32.gmra.mxu0 %v1062
      %v1969 = vpop.f32.mrf.mxu0
      %v1970 = vadd.f32 %v1857, %v1969
      %1971 = vmatmul.f32.gmra.mxu0 %v1071
      %v1972 = vpop.f32.mrf.mxu0
      %v1973 = vadd.f32 %v1860, %v1972
      %1974 = vmatmul.f32.gmra.mxu0 %v1080
      %v1975 = vpop.f32.mrf.mxu0
      %v1976 = vadd.f32 %v1863, %v1975
      %1977 = vmatmul.f32.gmra.mxu0 %v1089
      %v1978 = vpop.f32.mrf.mxu0
      %v1979 = vadd.f32 %v1866, %v1978
      %1980 = vmatmul.f32.gmra.mxu0 %v1098
      %v1981 = vpop.f32.mrf.mxu0
      %v1982 = vadd.f32 %v1869, %v1981
      %1983 = vmatmul.f32.gmra.mxu0 %v1107
      %v1984 = vpop.f32.mrf.mxu0
      %v1985 = vadd.f32 %v1872, %v1984
      %1986 = vmatmul.f32.gmra.mxu0 %v1116
      %v1987 = vpop.f32.mrf.mxu0
      %v1988 = vadd.f32 %v1875, %v1987
      %1989 = vmatmul.f32.gmra.mxu0 %v1125
      %v1990 = vpop.f32.mrf.mxu0
      %v1991 = vadd.f32 %v1878, %v1990
      %1992 = vmatmul.f32.gmra.mxu0 %v1134
      %v1993 = vpop.f32.mrf.mxu0
      %v1994 = vadd.f32 %v1881, %v1993
      %1995 = vmatmul.f32.gmra.mxu0 %v1143
      %v1996 = vpop.f32.mrf.mxu0
      %v1997 = vadd.f32 %v1884, %v1996
      %1998 = vmatmul.f32.gmra.mxu0 %v1152
      %v1999 = vpop.f32.mrf.mxu0
      %v2000 = vadd.f32 %v1887, %v1999
      %2001 = vmatmul.f32.gmra.mxu0 %v1161
      %v2002 = vpop.f32.mrf.mxu0
      %v2003 = vadd.f32 %v1890, %v2002
      %2004 = vmatmul.f32.gmra.mxu0 %v1170
      %v2005 = vpop.f32.mrf.mxu0
      %v2006 = vadd.f32 %v1893, %v2005
      %2007 = vmatmul.f32.gmra.mxu0 %v1179
      %v2008 = vpop.f32.mrf.mxu0
      %v2009 = vadd.f32 %v1896, %v2008
      %2010 = vmatmul.f32.gmra.mxu0 %v1188
      %v2011 = vpop.f32.mrf.mxu0
      %v2012 = vadd.f32 %v1899, %v2011
      %2013 = vdwg.mxu0
      %2014 = vmatpush.msra.mxu0 %v1303
      %2015 = vmatpush.msra.mxu0 %v1302
      %2016 = vmatpush.msra.mxu0 %v1301
      %2017 = vmatpush.msra.mxu0 %v1300
      %2018 = vmatpush.msra.mxu0 %v1299
      %2019 = vmatpush.msra.mxu0 %v1298
      %2020 = vmatpush.msra.mxu0 %v1297
      %2021 = vmatpush.msra.mxu0 %v1296
      %2022 = vmatpush.msra.mxu0 %v1295
      %2023 = vmatpush.msra.mxu0 %v1294
      %2024 = vmatpush.msra.mxu0 %v1293
      %2025 = vmatpush.msra.mxu0 %v1292
      %2026 = vmatpush.msra.mxu0 %v1291
      %2027 = vmatpush.msra.mxu0 %v1290
      %2028 = vmatpush.msra.mxu0 %v1289
      %2029 = vmatpush.msra.mxu0 %v1288
      %2030 = vmatmul.f32.gmra.mxu0 %v910
      %v2031 = vpop.f32.mrf.mxu0
      %v2032 = vadd.f32 %v1919, %v2031
      %2033 = vmatmul.f32.gmra.mxu0 %v919
      %v2034 = vpop.f32.mrf.mxu0
      %v2035 = vadd.f32 %v1922, %v2034
      %2036 = vmatmul.f32.gmra.mxu0 %v928
      %v2037 = vpop.f32.mrf.mxu0
      %v2038 = vadd.f32 %v1925, %v2037
      %2039 = vmatmul.f32.gmra.mxu0 %v937
      %v2040 = vpop.f32.mrf.mxu0
      %v2041 = vadd.f32 %v1928, %v2040
      %2042 = vmatmul.f32.gmra.mxu0 %v946
      %v2043 = vpop.f32.mrf.mxu0
      %v2044 = vadd.f32 %v1931, %v2043
      %2045 = vmatmul.f32.gmra.mxu0 %v955
      %v2046 = vpop.f32.mrf.mxu0
      %v2047 = vadd.f32 %v1934, %v2046
      %2048 = vmatmul.f32.gmra.mxu0 %v964
      %v2049 = vpop.f32.mrf.mxu0
      %v2050 = vadd.f32 %v1937, %v2049
      %2051 = vmatmul.f32.gmra.mxu0 %v973
      %v2052 = vpop.f32.mrf.mxu0
      %v2053 = vadd.f32 %v1940, %v2052
      %2054 = vmatmul.f32.gmra.mxu0 %v982
      %v2055 = vpop.f32.mrf.mxu0
      %v2056 = vadd.f32 %v1943, %v2055
      %2057 = vmatmul.f32.gmra.mxu0 %v991
      %v2058 = vpop.f32.mrf.mxu0
      %v2059 = vadd.f32 %v1946, %v2058
      %2060 = vmatmul.f32.gmra.mxu0 %v1000
      %v2061 = vpop.f32.mrf.mxu0
      %v2062 = vadd.f32 %v1949, %v2061
      %2063 = vmatmul.f32.gmra.mxu0 %v1009
      %v2064 = vpop.f32.mrf.mxu0
      %v2065 = vadd.f32 %v1952, %v2064
      %2066 = vmatmul.f32.gmra.mxu0 %v1018
      %v2067 = vpop.f32.mrf.mxu0
      %v2068 = vadd.f32 %v1955, %v2067
      %2069 = vmatmul.f32.gmra.mxu0 %v1027
      %v2070 = vpop.f32.mrf.mxu0
      %v2071 = vadd.f32 %v1958, %v2070
      %2072 = vmatmul.f32.gmra.mxu0 %v1036
      %v2073 = vpop.f32.mrf.mxu0
      %v2074 = vadd.f32 %v1961, %v2073
      %2075 = vmatmul.f32.gmra.mxu0 %v1045
      %v2076 = vpop.f32.mrf.mxu0
      %v2077 = vadd.f32 %v1964, %v2076
      %2078 = vmatmul.f32.gmra.mxu0 %v1054
      %v2079 = vpop.f32.mrf.mxu0
      %v2080 = vadd.f32 %v1967, %v2079
      %2081 = vmatmul.f32.gmra.mxu0 %v1063
      %v2082 = vpop.f32.mrf.mxu0
      %v2083 = vadd.f32 %v1970, %v2082
      %2084 = vmatmul.f32.gmra.mxu0 %v1072
      %v2085 = vpop.f32.mrf.mxu0
      %v2086 = vadd.f32 %v1973, %v2085
      %2087 = vmatmul.f32.gmra.mxu0 %v1081
      %v2088 = vpop.f32.mrf.mxu0
      %v2089 = vadd.f32 %v1976, %v2088
      %2090 = vmatmul.f32.gmra.mxu0 %v1090
      %v2091 = vpop.f32.mrf.mxu0
      %v2092 = vadd.f32 %v1979, %v2091
      %2093 = vmatmul.f32.gmra.mxu0 %v1099
      %v2094 = vpop.f32.mrf.mxu0
      %v2095 = vadd.f32 %v1982, %v2094
      %2096 = vmatmul.f32.gmra.mxu0 %v1108
      %v2097 = vpop.f32.mrf.mxu0
      %v2098 = vadd.f32 %v1985, %v2097
      %2099 = vmatmul.f32.gmra.mxu0 %v1117
      %v2100 = vpop.f32.mrf.mxu0
      %v2101 = vadd.f32 %v1988, %v2100
      %2102 = vmatmul.f32.gmra.mxu0 %v1126
      %v2103 = vpop.f32.mrf.mxu0
      %v2104 = vadd.f32 %v1991, %v2103
      %2105 = vmatmul.f32.gmra.mxu0 %v1135
      %v2106 = vpop.f32.mrf.mxu0
      %v2107 = vadd.f32 %v1994, %v2106
      %2108 = vmatmul.f32.gmra.mxu0 %v1144
      %v2109 = vpop.f32.mrf.mxu0
      %v2110 = vadd.f32 %v1997, %v2109
      %2111 = vmatmul.f32.gmra.mxu0 %v1153
      %v2112 = vpop.f32.mrf.mxu0
      %v2113 = vadd.f32 %v2000, %v2112
      %2114 = vmatmul.f32.gmra.mxu0 %v1162
      %v2115 = vpop.f32.mrf.mxu0
      %v2116 = vadd.f32 %v2003, %v2115
      %2117 = vmatmul.f32.gmra.mxu0 %v1171
      %v2118 = vpop.f32.mrf.mxu0
      %v2119 = vadd.f32 %v2006, %v2118
      %2120 = vmatmul.f32.gmra.mxu0 %v1180
      %v2121 = vpop.f32.mrf.mxu0
      %v2122 = vadd.f32 %v2009, %v2121
      %2123 = vmatmul.f32.gmra.mxu0 %v1189
      %v2124 = vpop.f32.mrf.mxu0
      %v2125 = vadd.f32 %v2012, %v2124
      %2126 = vdwg.mxu0
      %2127 = vmatpush.msra.mxu0 %v1319
      %2128 = vmatpush.msra.mxu0 %v1318
      %2129 = vmatpush.msra.mxu0 %v1317
      %2130 = vmatpush.msra.mxu0 %v1316
      %2131 = vmatpush.msra.mxu0 %v1315
      %2132 = vmatpush.msra.mxu0 %v1314
      %2133 = vmatpush.msra.mxu0 %v1313
      %2134 = vmatpush.msra.mxu0 %v1312
      %2135 = vmatpush.msra.mxu0 %v1311
      %2136 = vmatpush.msra.mxu0 %v1310
      %2137 = vmatpush.msra.mxu0 %v1309
      %2138 = vmatpush.msra.mxu0 %v1308
      %2139 = vmatpush.msra.mxu0 %v1307
      %2140 = vmatpush.msra.mxu0 %v1306
      %2141 = vmatpush.msra.mxu0 %v1305
      %2142 = vmatpush.msra.mxu0 %v1304
      %2143 = vmatmul.f32.gmra.mxu0 %v911
      %v2144 = vpop.f32.mrf.mxu0
      %v2145 = vadd.f32 %v2032, %v2144
      %2146 = vmatmul.f32.gmra.mxu0 %v920
      %v2147 = vpop.f32.mrf.mxu0
      %v2148 = vadd.f32 %v2035, %v2147
      %2149 = vmatmul.f32.gmra.mxu0 %v929
      %v2150 = vpop.f32.mrf.mxu0
      %v2151 = vadd.f32 %v2038, %v2150
      %2152 = vmatmul.f32.gmra.mxu0 %v938
      %v2153 = vpop.f32.mrf.mxu0
      %v2154 = vadd.f32 %v2041, %v2153
      %2155 = vmatmul.f32.gmra.mxu0 %v947
      %v2156 = vpop.f32.mrf.mxu0
      %v2157 = vadd.f32 %v2044, %v2156
      %2158 = vmatmul.f32.gmra.mxu0 %v956
      %v2159 = vpop.f32.mrf.mxu0
      %v2160 = vadd.f32 %v2047, %v2159
      %2161 = vmatmul.f32.gmra.mxu0 %v965
      %v2162 = vpop.f32.mrf.mxu0
      %v2163 = vadd.f32 %v2050, %v2162
      %2164 = vmatmul.f32.gmra.mxu0 %v974
      %v2165 = vpop.f32.mrf.mxu0
      %v2166 = vadd.f32 %v2053, %v2165
      %2167 = vmatmul.f32.gmra.mxu0 %v983
      %v2168 = vpop.f32.mrf.mxu0
      %v2169 = vadd.f32 %v2056, %v2168
      %2170 = vmatmul.f32.gmra.mxu0 %v992
      %v2171 = vpop.f32.mrf.mxu0
      %v2172 = vadd.f32 %v2059, %v2171
      %2173 = vmatmul.f32.gmra.mxu0 %v1001
      %v2174 = vpop.f32.mrf.mxu0
      %v2175 = vadd.f32 %v2062, %v2174
      %2176 = vmatmul.f32.gmra.mxu0 %v1010
      %v2177 = vpop.f32.mrf.mxu0
      %v2178 = vadd.f32 %v2065, %v2177
      %2179 = vmatmul.f32.gmra.mxu0 %v1019
      %v2180 = vpop.f32.mrf.mxu0
      %v2181 = vadd.f32 %v2068, %v2180
      %2182 = vmatmul.f32.gmra.mxu0 %v1028
      %v2183 = vpop.f32.mrf.mxu0
      %v2184 = vadd.f32 %v2071, %v2183
      %2185 = vmatmul.f32.gmra.mxu0 %v1037
      %v2186 = vpop.f32.mrf.mxu0
      %v2187 = vadd.f32 %v2074, %v2186
      %2188 = vmatmul.f32.gmra.mxu0 %v1046
      %v2189 = vpop.f32.mrf.mxu0
      %v2190 = vadd.f32 %v2077, %v2189
      %2191 = vmatmul.f32.gmra.mxu0 %v1055
      %v2192 = vpop.f32.mrf.mxu0
      %v2193 = vadd.f32 %v2080, %v2192
      %2194 = vmatmul.f32.gmra.mxu0 %v1064
      %v2195 = vpop.f32.mrf.mxu0
      %v2196 = vadd.f32 %v2083, %v2195
      %2197 = vmatmul.f32.gmra.mxu0 %v1073
      %v2198 = vpop.f32.mrf.mxu0
      %v2199 = vadd.f32 %v2086, %v2198
      %2200 = vmatmul.f32.gmra.mxu0 %v1082
      %v2201 = vpop.f32.mrf.mxu0
      %v2202 = vadd.f32 %v2089, %v2201
      %2203 = vmatmul.f32.gmra.mxu0 %v1091
      %v2204 = vpop.f32.mrf.mxu0
      %v2205 = vadd.f32 %v2092, %v2204
      %2206 = vmatmul.f32.gmra.mxu0 %v1100
      %v2207 = vpop.f32.mrf.mxu0
      %v2208 = vadd.f32 %v2095, %v2207
      %2209 = vmatmul.f32.gmra.mxu0 %v1109
      %v2210 = vpop.f32.mrf.mxu0
      %v2211 = vadd.f32 %v2098, %v2210
      %2212 = vmatmul.f32.gmra.mxu0 %v1118
      %v2213 = vpop.f32.mrf.mxu0
      %v2214 = vadd.f32 %v2101, %v2213
      %2215 = vmatmul.f32.gmra.mxu0 %v1127
      %v2216 = vpop.f32.mrf.mxu0
      %v2217 = vadd.f32 %v2104, %v2216
      %2218 = vmatmul.f32.gmra.mxu0 %v1136
      %v2219 = vpop.f32.mrf.mxu0
      %v2220 = vadd.f32 %v2107, %v2219
      %2221 = vmatmul.f32.gmra.mxu0 %v1145
      %v2222 = vpop.f32.mrf.mxu0
      %v2223 = vadd.f32 %v2110, %v2222
      %2224 = vmatmul.f32.gmra.mxu0 %v1154
      %v2225 = vpop.f32.mrf.mxu0
      %v2226 = vadd.f32 %v2113, %v2225
      %2227 = vmatmul.f32.gmra.mxu0 %v1163
      %v2228 = vpop.f32.mrf.mxu0
      %v2229 = vadd.f32 %v2116, %v2228
      %2230 = vmatmul.f32.gmra.mxu0 %v1172
      %v2231 = vpop.f32.mrf.mxu0
      %v2232 = vadd.f32 %v2119, %v2231
      %2233 = vmatmul.f32.gmra.mxu0 %v1181
      %v2234 = vpop.f32.mrf.mxu0
      %v2235 = vadd.f32 %v2122, %v2234
      %2236 = vmatmul.f32.gmra.mxu0 %v1190
      %v2237 = vpop.f32.mrf.mxu0
      %v2238 = vadd.f32 %v2125, %v2237
      %2239 = vdwg.mxu0
      %2240 = vmatpush.msra.mxu0 %v1335
      %2241 = vmatpush.msra.mxu0 %v1334
      %2242 = vmatpush.msra.mxu0 %v1333
      %2243 = vmatpush.msra.mxu0 %v1332
      %2244 = vmatpush.msra.mxu0 %v1331
      %2245 = vmatpush.msra.mxu0 %v1330
      %2246 = vmatpush.msra.mxu0 %v1329
      %2247 = vmatpush.msra.mxu0 %v1328
      %2248 = vmatpush.msra.mxu0 %v1327
      %2249 = vmatpush.msra.mxu0 %v1326
      %2250 = vmatpush.msra.mxu0 %v1325
      %2251 = vmatpush.msra.mxu0 %v1324
      %2252 = vmatpush.msra.mxu0 %v1323
      %2253 = vmatpush.msra.mxu0 %v1322
      %2254 = vmatpush.msra.mxu0 %v1321
      %2255 = vmatpush.msra.mxu0 %v1320
      %2256 = vmatmul.f32.gmra.mxu0 %v912
      %v2257 = vpop.f32.mrf.mxu0
      %v2258 = vadd.f32 %v2145, %v2257
      %2259 = vmatmul.f32.gmra.mxu0 %v921
      %v2260 = vpop.f32.mrf.mxu0
      %v2261 = vadd.f32 %v2148, %v2260
      %2262 = vmatmul.f32.gmra.mxu0 %v930
      %v2263 = vpop.f32.mrf.mxu0
      %v2264 = vadd.f32 %v2151, %v2263
      %2265 = vmatmul.f32.gmra.mxu0 %v939
      %v2266 = vpop.f32.mrf.mxu0
      %v2267 = vadd.f32 %v2154, %v2266
      %2268 = vmatmul.f32.gmra.mxu0 %v948
      %v2269 = vpop.f32.mrf.mxu0
      %v2270 = vadd.f32 %v2157, %v2269
      %2271 = vmatmul.f32.gmra.mxu0 %v957
      %v2272 = vpop.f32.mrf.mxu0
      %v2273 = vadd.f32 %v2160, %v2272
      %2274 = vmatmul.f32.gmra.mxu0 %v966
      %v2275 = vpop.f32.mrf.mxu0
      %v2276 = vadd.f32 %v2163, %v2275
      %2277 = vmatmul.f32.gmra.mxu0 %v975
      %v2278 = vpop.f32.mrf.mxu0
      %v2279 = vadd.f32 %v2166, %v2278
      %2280 = vmatmul.f32.gmra.mxu0 %v984
      %v2281 = vpop.f32.mrf.mxu0
      %v2282 = vadd.f32 %v2169, %v2281
      %2283 = vmatmul.f32.gmra.mxu0 %v993
      %v2284 = vpop.f32.mrf.mxu0
      %v2285 = vadd.f32 %v2172, %v2284
      %2286 = vmatmul.f32.gmra.mxu0 %v1002
      %v2287 = vpop.f32.mrf.mxu0
      %v2288 = vadd.f32 %v2175, %v2287
      %2289 = vmatmul.f32.gmra.mxu0 %v1011
      %v2290 = vpop.f32.mrf.mxu0
      %v2291 = vadd.f32 %v2178, %v2290
      %2292 = vmatmul.f32.gmra.mxu0 %v1020
      %v2293 = vpop.f32.mrf.mxu0
      %v2294 = vadd.f32 %v2181, %v2293
      %2295 = vmatmul.f32.gmra.mxu0 %v1029
      %v2296 = vpop.f32.mrf.mxu0
      %v2297 = vadd.f32 %v2184, %v2296
      %2298 = vmatmul.f32.gmra.mxu0 %v1038
      %v2299 = vpop.f32.mrf.mxu0
      %v2300 = vadd.f32 %v2187, %v2299
      %2301 = vmatmul.f32.gmra.mxu0 %v1047
      %v2302 = vpop.f32.mrf.mxu0
      %v2303 = vadd.f32 %v2190, %v2302
      %2304 = vmatmul.f32.gmra.mxu0 %v1056
      %v2305 = vpop.f32.mrf.mxu0
      %v2306 = vadd.f32 %v2193, %v2305
      %2307 = vmatmul.f32.gmra.mxu0 %v1065
      %v2308 = vpop.f32.mrf.mxu0
      %v2309 = vadd.f32 %v2196, %v2308
      %2310 = vmatmul.f32.gmra.mxu0 %v1074
      %v2311 = vpop.f32.mrf.mxu0
      %v2312 = vadd.f32 %v2199, %v2311
      %2313 = vmatmul.f32.gmra.mxu0 %v1083
      %v2314 = vpop.f32.mrf.mxu0
      %v2315 = vadd.f32 %v2202, %v2314
      %2316 = vmatmul.f32.gmra.mxu0 %v1092
      %v2317 = vpop.f32.mrf.mxu0
      %v2318 = vadd.f32 %v2205, %v2317
      %2319 = vmatmul.f32.gmra.mxu0 %v1101
      %v2320 = vpop.f32.mrf.mxu0
      %v2321 = vadd.f32 %v2208, %v2320
      %2322 = vmatmul.f32.gmra.mxu0 %v1110
      %v2323 = vpop.f32.mrf.mxu0
      %v2324 = vadd.f32 %v2211, %v2323
      %2325 = vmatmul.f32.gmra.mxu0 %v1119
      %v2326 = vpop.f32.mrf.mxu0
      %v2327 = vadd.f32 %v2214, %v2326
      %2328 = vmatmul.f32.gmra.mxu0 %v1128
      %v2329 = vpop.f32.mrf.mxu0
      %v2330 = vadd.f32 %v2217, %v2329
      %2331 = vmatmul.f32.gmra.mxu0 %v1137
      %v2332 = vpop.f32.mrf.mxu0
      %v2333 = vadd.f32 %v2220, %v2332
      %2334 = vmatmul.f32.gmra.mxu0 %v1146
      %v2335 = vpop.f32.mrf.mxu0
      %v2336 = vadd.f32 %v2223, %v2335
      %2337 = vmatmul.f32.gmra.mxu0 %v1155
      %v2338 = vpop.f32.mrf.mxu0
      %v2339 = vadd.f32 %v2226, %v2338
      %2340 = vmatmul.f32.gmra.mxu0 %v1164
      %v2341 = vpop.f32.mrf.mxu0
      %v2342 = vadd.f32 %v2229, %v2341
      %2343 = vmatmul.f32.gmra.mxu0 %v1173
      %v2344 = vpop.f32.mrf.mxu0
      %v2345 = vadd.f32 %v2232, %v2344
      %2346 = vmatmul.f32.gmra.mxu0 %v1182
      %v2347 = vpop.f32.mrf.mxu0
      %v2348 = vadd.f32 %v2235, %v2347
      %2349 = vmatmul.f32.gmra.mxu0 %v1191
      %v2350 = vpop.f32.mrf.mxu0
      %v2351 = vadd.f32 %v2238, %v2350
      %2352 = vdwg.mxu0
      %v2353 = vld [vmem:[%s4] sm:$0x1]
      %v2355 = vperm.slane %v2353, 0
      %v2357 = vmul.f32 %v2258, %v2355
      %v2358 = vmul.f32 %v2261, %v2355
      %v2359 = vmul.f32 %v2264, %v2355
      %v2360 = vmul.f32 %v2267, %v2355
      %v2361 = vmul.f32 %v2270, %v2355
      %v2362 = vmul.f32 %v2273, %v2355
      %v2363 = vmul.f32 %v2276, %v2355
      %v2364 = vmul.f32 %v2279, %v2355
      %v2365 = vmul.f32 %v2282, %v2355
      %v2366 = vmul.f32 %v2285, %v2355
      %v2367 = vmul.f32 %v2288, %v2355
      %v2368 = vmul.f32 %v2291, %v2355
      %v2369 = vmul.f32 %v2294, %v2355
      %v2370 = vmul.f32 %v2297, %v2355
      %v2371 = vmul.f32 %v2300, %v2355
      %v2372 = vmul.f32 %v2303, %v2355
      %v2373 = vmul.f32 %v2306, %v2355
      %v2374 = vmul.f32 %v2309, %v2355
      %v2375 = vmul.f32 %v2312, %v2355
      %v2376 = vmul.f32 %v2315, %v2355
      %v2377 = vmul.f32 %v2318, %v2355
      %v2378 = vmul.f32 %v2321, %v2355
      %v2379 = vmul.f32 %v2324, %v2355
      %v2380 = vmul.f32 %v2327, %v2355
      %v2381 = vmul.f32 %v2330, %v2355
      %v2382 = vmul.f32 %v2333, %v2355
      %v2383 = vmul.f32 %v2336, %v2355
      %v2384 = vmul.f32 %v2339, %v2355
      %v2385 = vmul.f32 %v2342, %v2355
      %v2386 = vmul.f32 %v2345, %v2355
      %v2387 = vmul.f32 %v2348, %v2355
      %v2388 = vmul.f32 %v2351, %v2355
      %v2389 = vld [vmem:[%s5] sm:$0x1]
      %v2391 = vperm.slane %v2389, 0
      %v2393 = vadd.f32 %v2357, %v2391
      %v2394 = vadd.f32 %v2358, %v2391
      %v2395 = vadd.f32 %v2359, %v2391
      %v2396 = vadd.f32 %v2360, %v2391
      %v2397 = vadd.f32 %v2361, %v2391
      %v2398 = vadd.f32 %v2362, %v2391
      %v2399 = vadd.f32 %v2363, %v2391
      %v2400 = vadd.f32 %v2364, %v2391
      %v2401 = vadd.f32 %v2365, %v2391
      %v2402 = vadd.f32 %v2366, %v2391
      %v2403 = vadd.f32 %v2367, %v2391
      %v2404 = vadd.f32 %v2368, %v2391
      %v2405 = vadd.f32 %v2369, %v2391
      %v2406 = vadd.f32 %v2370, %v2391
      %v2407 = vadd.f32 %v2371, %v2391
      %v2408 = vadd.f32 %v2372, %v2391
      %v2409 = vadd.f32 %v2373, %v2391
      %v2410 = vadd.f32 %v2374, %v2391
      %v2411 = vadd.f32 %v2375, %v2391
      %v2412 = vadd.f32 %v2376, %v2391
      %v2413 = vadd.f32 %v2377, %v2391
      %v2414 = vadd.f32 %v2378, %v2391
      %v2415 = vadd.f32 %v2379, %v2391
      %v2416 = vadd.f32 %v2380, %v2391
      %v2417 = vadd.f32 %v2381, %v2391
      %v2418 = vadd.f32 %v2382, %v2391
      %v2419 = vadd.f32 %v2383, %v2391
      %v2420 = vadd.f32 %v2384, %v2391
      %v2421 = vadd.f32 %v2385, %v2391
      %v2422 = vadd.f32 %v2386, %v2391
      %v2423 = vadd.f32 %v2387, %v2391
      %v2424 = vadd.f32 %v2388, %v2391
      %v2425 = vmax.f32 %v2393, 0.0
      %v2426 = vmax.f32 %v2394, 0.0
      %v2427 = vmax.f32 %v2395, 0.0
      %v2428 = vmax.f32 %v2396, 0.0
      %v2429 = vmax.f32 %v2397, 0.0
      %v2430 = vmax.f32 %v2398, 0.0
      %v2431 = vmax.f32 %v2399, 0.0
      %v2432 = vmax.f32 %v2400, 0.0
      %v2433 = vmax.f32 %v2401, 0.0
      %v2434 = vmax.f32 %v2402, 0.0
      %v2435 = vmax.f32 %v2403, 0.0
      %v2436 = vmax.f32 %v2404, 0.0
      %v2437 = vmax.f32 %v2405, 0.0
      %v2438 = vmax.f32 %v2406, 0.0
      %v2439 = vmax.f32 %v2407, 0.0
      %v2440 = vmax.f32 %v2408, 0.0
      %v2441 = vmax.f32 %v2409, 0.0
      %v2442 = vmax.f32 %v2410, 0.0
      %v2443 = vmax.f32 %v2411, 0.0
      %v2444 = vmax.f32 %v2412, 0.0
      %v2445 = vmax.f32 %v2413, 0.0
      %v2446 = vmax.f32 %v2414, 0.0
      %v2447 = vmax.f32 %v2415, 0.0
      %v2448 = vmax.f32 %v2416, 0.0
      %v2449 = vmax.f32 %v2417, 0.0
      %v2450 = vmax.f32 %v2418, 0.0
      %v2451 = vmax.f32 %v2419, 0.0
      %v2452 = vmax.f32 %v2420, 0.0
      %v2453 = vmax.f32 %v2421, 0.0
      %v2454 = vmax.f32 %v2422, 0.0
      %v2455 = vmax.f32 %v2423, 0.0
      %v2456 = vmax.f32 %v2424, 0.0
      %2457 = vst [vmem:[#allocation3] sm:$0xff] 0.0
      %2458 = vst [vmem:[#allocation3 + $0x8] sm:$0xff] 0.0
      %2459 = vst [vmem:[#allocation3 + $0x10] sm:$0x3] 0.0
      %s2460 = scalar_lea.vmem [#allocation3], 408
      %2461 = vst [vmem:[%s2460] sm:$0xff] 0.0
      %2462 = vst [vmem:[%s2460 + $0x8] sm:$0xff] 0.0
      %2463 = vst [vmem:[%s2460 + $0x10] sm:$0x3] 0.0
      %2464 = vst [vmem:[#allocation3] sm:$0x1] 0.0
      %2465 = vst [vmem:[#allocation3 + $0x18] sm:$0x1] 0.0
      %2466 = vst [vmem:[#allocation3 + $0x30] sm:$0x1] 0.0
      %2467 = vst [vmem:[#allocation3 + $0x48] sm:$0x1] 0.0
      %2468 = vst [vmem:[#allocation3 + $0x60] sm:$0x1] 0.0
      %2469 = vst [vmem:[#allocation3 + $0x78] sm:$0x1] 0.0
      %2470 = vst [vmem:[#allocation3 + $0x90] sm:$0x1] 0.0
      %2471 = vst [vmem:[#allocation3 + $0xa8] sm:$0x1] 0.0
      %2472 = vst [vmem:[#allocation3 + $0xc0] sm:$0x1] 0.0
      %2473 = vst [vmem:[#allocation3 + $0xd8] sm:$0x1] 0.0
      %2474 = vst [vmem:[#allocation3 + $0xf0] sm:$0x1] 0.0
      %2475 = vst [vmem:[#allocation3 + $0x108] sm:$0x1] 0.0
      %2476 = vst [vmem:[#allocation3 + $0x120] sm:$0x1] 0.0
      %2477 = vst [vmem:[#allocation3 + $0x138] sm:$0x1] 0.0
      %2478 = vst [vmem:[#allocation3 + $0x150] sm:$0x1] 0.0
      %2479 = vst [vmem:[#allocation3 + $0x168] sm:$0x1] 0.0
      %2480 = vst [vmem:[#allocation3 + $0x180] sm:$0x1] 0.0
      %2481 = vst [vmem:[#allocation3 + $0x198] sm:$0x1] 0.0
      %2482 = vst [vmem:[#allocation3 + $0x11] sm:$0x1] 0.0
      %2483 = vst [vmem:[#allocation3 + $0x29] sm:$0x1] 0.0
      %2484 = vst [vmem:[#allocation3 + $0x41] sm:$0x1] 0.0
      %2485 = vst [vmem:[#allocation3 + $0x59] sm:$0x1] 0.0
      %2486 = vst [vmem:[#allocation3 + $0x71] sm:$0x1] 0.0
      %2487 = vst [vmem:[#allocation3 + $0x89] sm:$0x1] 0.0
      %2488 = vst [vmem:[#allocation3 + $0xa1] sm:$0x1] 0.0
      %2489 = vst [vmem:[#allocation3 + $0xb9] sm:$0x1] 0.0
      %2490 = vst [vmem:[#allocation3 + $0xd1] sm:$0x1] 0.0
      %2491 = vst [vmem:[#allocation3 + $0xe9] sm:$0x1] 0.0
      %2492 = vst [vmem:[#allocation3 + $0x101] sm:$0x1] 0.0
      %2493 = vst [vmem:[#allocation3 + $0x119] sm:$0x1] 0.0
      %2494 = vst [vmem:[#allocation3 + $0x131] sm:$0x1] 0.0
      %2495 = vst [vmem:[#allocation3 + $0x149] sm:$0x1] 0.0
      %2496 = vst [vmem:[#allocation3 + $0x161] sm:$0x1] 0.0
      %2497 = vst [vmem:[#allocation3 + $0x179] sm:$0x1] 0.0
      %2498 = vst [vmem:[#allocation3 + $0x191] sm:$0x1] 0.0
      %2499 = vst [vmem:[#allocation3 + $0x1a9] sm:$0x1] 0.0
      %s2500 = scalar_lea.vmem [#allocation3], 24
      %2501 = vst [vmem:[%s2500 + $0x1] sm:$0xff] %v2425
      %2502 = vst [vmem:[%s2500 + $0x9] sm:$0xff] %v2426
      %2503 = vst [vmem:[%s2500 + $0x19] sm:$0xff] %v2427
      %2504 = vst [vmem:[%s2500 + $0x21] sm:$0xff] %v2428
      %2505 = vst [vmem:[%s2500 + $0x31] sm:$0xff] %v2429
      %2506 = vst [vmem:[%s2500 + $0x39] sm:$0xff] %v2430
      %2507 = vst [vmem:[%s2500 + $0x49] sm:$0xff] %v2431
      %2508 = vst [vmem:[%s2500 + $0x51] sm:$0xff] %v2432
      %2509 = vst [vmem:[%s2500 + $0x61] sm:$0xff] %v2433
      %2510 = vst [vmem:[%s2500 + $0x69] sm:$0xff] %v2434
      %2511 = vst [vmem:[%s2500 + $0x79] sm:$0xff] %v2435
      %2512 = vst [vmem:[%s2500 + $0x81] sm:$0xff] %v2436
      %2513 = vst [vmem:[%s2500 + $0x91] sm:$0xff] %v2437
      %2514 = vst [vmem:[%s2500 + $0x99] sm:$0xff] %v2438
      %2515 = vst [vmem:[%s2500 + $0xa9] sm:$0xff] %v2439
      %2516 = vst [vmem:[%s2500 + $0xb1] sm:$0xff] %v2440
      %2517 = vst [vmem:[%s2500 + $0xc1] sm:$0xff] %v2441
      %2518 = vst [vmem:[%s2500 + $0xc9] sm:$0xff] %v2442
      %2519 = vst [vmem:[%s2500 + $0xd9] sm:$0xff] %v2443
      %2520 = vst [vmem:[%s2500 + $0xe1] sm:$0xff] %v2444
      %2521 = vst [vmem:[%s2500 + $0xf1] sm:$0xff] %v2445
      %2522 = vst [vmem:[%s2500 + $0xf9] sm:$0xff] %v2446
      %2523 = vst [vmem:[%s2500 + $0x109] sm:$0xff] %v2447
      %2524 = vst [vmem:[%s2500 + $0x111] sm:$0xff] %v2448
      %2525 = vst [vmem:[%s2500 + $0x121] sm:$0xff] %v2449
      %2526 = vst [vmem:[%s2500 + $0x129] sm:$0xff] %v2450
      %2527 = vst [vmem:[%s2500 + $0x139] sm:$0xff] %v2451
      %2528 = vst [vmem:[%s2500 + $0x141] sm:$0xff] %v2452
      %2529 = vst [vmem:[%s2500 + $0x151] sm:$0xff] %v2453
      %2530 = vst [vmem:[%s2500 + $0x159] sm:$0xff] %v2454
      %2531 = vst [vmem:[%s2500 + $0x169] sm:$0xff] %v2455
      %2532 = vst [vmem:[%s2500 + $0x171] sm:$0xff] %v2456
      %v2533 = vld [vmem:[#allocation3] sm:$0xff]
      %v2534 = vld [vmem:[#allocation3 + $0x8] sm:$0xff]
      %v2535 = vld [vmem:[#allocation3 + $0x18] sm:$0xff]
      %v2536 = vld [vmem:[#allocation3 + $0x20] sm:$0xff]
      %v2537 = vld [vmem:[#allocation3 + $0x30] sm:$0xff]
      %v2538 = vld [vmem:[#allocation3 + $0x38] sm:$0xff]
      %v2539 = vld [vmem:[#allocation3 + $0x48] sm:$0xff]
      %v2540 = vld [vmem:[#allocation3 + $0x50] sm:$0xff]
      %v2541 = vld [vmem:[#allocation3 + $0x60] sm:$0xff]
      %v2542 = vld [vmem:[#allocation3 + $0x68] sm:$0xff]
      %v2543 = vld [vmem:[#allocation3 + $0x78] sm:$0xff]
      %v2544 = vld [vmem:[#allocation3 + $0x80] sm:$0xff]
      %v2545 = vld [vmem:[#allocation3 + $0x90] sm:$0xff]
      %v2546 = vld [vmem:[#allocation3 + $0x98] sm:$0xff]
      %v2547 = vld [vmem:[#allocation3 + $0xa8] sm:$0xff]
      %v2548 = vld [vmem:[#allocation3 + $0xb0] sm:$0xff]
      %v2549 = vld [vmem:[#allocation3 + $0xc0] sm:$0xff]
      %v2550 = vld [vmem:[#allocation3 + $0xc8] sm:$0xff]
      %v2551 = vld [vmem:[#allocation3 + $0xd8] sm:$0xff]
      %v2552 = vld [vmem:[#allocation3 + $0xe0] sm:$0xff]
      %v2553 = vld [vmem:[#allocation3 + $0xf0] sm:$0xff]
      %v2554 = vld [vmem:[#allocation3 + $0xf8] sm:$0xff]
      %v2555 = vld [vmem:[#allocation3 + $0x108] sm:$0xff]
      %v2556 = vld [vmem:[#allocation3 + $0x110] sm:$0xff]
      %v2557 = vld [vmem:[#allocation3 + $0x120] sm:$0xff]
      %v2558 = vld [vmem:[#allocation3 + $0x128] sm:$0xff]
      %v2559 = vld [vmem:[#allocation3 + $0x138] sm:$0xff]
      %v2560 = vld [vmem:[#allocation3 + $0x140] sm:$0xff]
      %v2561 = vld [vmem:[#allocation3 + $0x150] sm:$0xff]
      %v2562 = vld [vmem:[#allocation3 + $0x158] sm:$0xff]
      %v2563 = vld [vmem:[#allocation3 + $0x168] sm:$0xff]
      %v2564 = vld [vmem:[#allocation3 + $0x170] sm:$0xff]
      %2565 = vst [vmem:[#allocation2] sm:$0xff] %v2533
      %2566 = vst [vmem:[#allocation2 + $0x48] sm:$0xff] %v2534
      %2567 = vst [vmem:[#allocation2 + $0x90] sm:$0xff] %v2535
      %2568 = vst [vmem:[#allocation2 + $0xd8] sm:$0xff] %v2536
      %2569 = vst [vmem:[#allocation2 + $0x120] sm:$0xff] %v2537
      %2570 = vst [vmem:[#allocation2 + $0x168] sm:$0xff] %v2538
      %2571 = vst [vmem:[#allocation2 + $0x1b0] sm:$0xff] %v2539
      %2572 = vst [vmem:[#allocation2 + $0x1f8] sm:$0xff] %v2540
      %2573 = vst [vmem:[#allocation2 + $0x240] sm:$0xff] %v2541
      %2574 = vst [vmem:[#allocation2 + $0x288] sm:$0xff] %v2542
      %2575 = vst [vmem:[#allocation2 + $0x2d0] sm:$0xff] %v2543
      %2576 = vst [vmem:[#allocation2 + $0x318] sm:$0xff] %v2544
      %2577 = vst [vmem:[#allocation2 + $0x360] sm:$0xff] %v2545
      %2578 = vst [vmem:[#allocation2 + $0x3a8] sm:$0xff] %v2546
      %2579 = vst [vmem:[#allocation2 + $0x3f0] sm:$0xff] %v2547
      %2580 = vst [vmem:[#allocation2 + $0x438] sm:$0xff] %v2548
      %2581 = vst [vmem:[#allocation2 + $0x480] sm:$0xff] %v2549
      %2582 = vst [vmem:[#allocation2 + $0x4c8] sm:$0xff] %v2550
      %2583 = vst [vmem:[#allocation2 + $0x510] sm:$0xff] %v2551
      %2584 = vst [vmem:[#allocation2 + $0x558] sm:$0xff] %v2552
      %2585 = vst [vmem:[#allocation2 + $0x5a0] sm:$0xff] %v2553
      %2586 = vst [vmem:[#allocation2 + $0x5e8] sm:$0xff] %v2554
      %2587 = vst [vmem:[#allocation2 + $0x630] sm:$0xff] %v2555
      %2588 = vst [vmem:[#allocation2 + $0x678] sm:$0xff] %v2556
      %2589 = vst [vmem:[#allocation2 + $0x6c0] sm:$0xff] %v2557
      %2590 = vst [vmem:[#allocation2 + $0x708] sm:$0xff] %v2558
      %2591 = vst [vmem:[#allocation2 + $0x750] sm:$0xff] %v2559
      %2592 = vst [vmem:[#allocation2 + $0x798] sm:$0xff] %v2560
      %2593 = vst [vmem:[#allocation2 + $0x7e0] sm:$0xff] %v2561
      %2594 = vst [vmem:[#allocation2 + $0x828] sm:$0xff] %v2562
      %2595 = vst [vmem:[#allocation2 + $0x870] sm:$0xff] %v2563
      %2596 = vst [vmem:[#allocation2 + $0x8b8] sm:$0xff] %v2564
      %v2597 = vld [vmem:[#allocation3 + $0x1] sm:$0xff]
      %v2598 = vld [vmem:[#allocation3 + $0x9] sm:$0xff]
      %v2599 = vld [vmem:[#allocation3 + $0x19] sm:$0xff]
      %v2600 = vld [vmem:[#allocation3 + $0x21] sm:$0xff]
      %v2601 = vld [vmem:[#allocation3 + $0x31] sm:$0xff]
      %v2602 = vld [vmem:[#allocation3 + $0x39] sm:$0xff]
      %v2603 = vld [vmem:[#allocation3 + $0x49] sm:$0xff]
      %v2604 = vld [vmem:[#allocation3 + $0x51] sm:$0xff]
      %v2605 = vld [vmem:[#allocation3 + $0x61] sm:$0xff]
      %v2606 = vld [vmem:[#allocation3 + $0x69] sm:$0xff]
      %v2607 = vld [vmem:[#allocation3 + $0x79] sm:$0xff]
      %v2608 = vld [vmem:[#allocation3 + $0x81] sm:$0xff]
      %v2609 = vld [vmem:[#allocation3 + $0x91] sm:$0xff]
      %v2610 = vld [vmem:[#allocation3 + $0x99] sm:$0xff]
      %v2611 = vld [vmem:[#allocation3 + $0xa9] sm:$0xff]
      %v2612 = vld [vmem:[#allocation3 + $0xb1] sm:$0xff]
      %v2613 = vld [vmem:[#allocation3 + $0xc1] sm:$0xff]
      %v2614 = vld [vmem:[#allocation3 + $0xc9] sm:$0xff]
      %v2615 = vld [vmem:[#allocation3 + $0xd9] sm:$0xff]
      %v2616 = vld [vmem:[#allocation3 + $0xe1] sm:$0xff]
      %v2617 = vld [vmem:[#allocation3 + $0xf1] sm:$0xff]
      %v2618 = vld [vmem:[#allocation3 + $0xf9] sm:$0xff]
      %v2619 = vld [vmem:[#allocation3 + $0x109] sm:$0xff]
      %v2620 = vld [vmem:[#allocation3 + $0x111] sm:$0xff]
      %v2621 = vld [vmem:[#allocation3 + $0x121] sm:$0xff]
      %v2622 = vld [vmem:[#allocation3 + $0x129] sm:$0xff]
      %v2623 = vld [vmem:[#allocation3 + $0x139] sm:$0xff]
      %v2624 = vld [vmem:[#allocation3 + $0x141] sm:$0xff]
      %v2625 = vld [vmem:[#allocation3 + $0x151] sm:$0xff]
      %v2626 = vld [vmem:[#allocation3 + $0x159] sm:$0xff]
      %v2627 = vld [vmem:[#allocation3 + $0x169] sm:$0xff]
      %v2628 = vld [vmem:[#allocation3 + $0x171] sm:$0xff]
      %2629 = vst [vmem:[#allocation2 + $0x8] sm:$0xff] %v2597
      %2630 = vst [vmem:[#allocation2 + $0x50] sm:$0xff] %v2598
      %2631 = vst [vmem:[#allocation2 + $0x98] sm:$0xff] %v2599
      %2632 = vst [vmem:[#allocation2 + $0xe0] sm:$0xff] %v2600
      %2633 = vst [vmem:[#allocation2 + $0x128] sm:$0xff] %v2601
      %2634 = vst [vmem:[#allocation2 + $0x170] sm:$0xff] %v2602
      %2635 = vst [vmem:[#allocation2 + $0x1b8] sm:$0xff] %v2603
      %2636 = vst [vmem:[#allocation2 + $0x200] sm:$0xff] %v2604
      %2637 = vst [vmem:[#allocation2 + $0x248] sm:$0xff] %v2605
      %2638 = vst [vmem:[#allocation2 + $0x290] sm:$0xff] %v2606
      %2639 = vst [vmem:[#allocation2 + $0x2d8] sm:$0xff] %v2607
      %2640 = vst [vmem:[#allocation2 + $0x320] sm:$0xff] %v2608
      %2641 = vst [vmem:[#allocation2 + $0x368] sm:$0xff] %v2609
      %2642 = vst [vmem:[#allocation2 + $0x3b0] sm:$0xff] %v2610
      %2643 = vst [vmem:[#allocation2 + $0x3f8] sm:$0xff] %v2611
      %2644 = vst [vmem:[#allocation2 + $0x440] sm:$0xff] %v2612
      %2645 = vst [vmem:[#allocation2 + $0x488] sm:$0xff] %v2613
      %2646 = vst [vmem:[#allocation2 + $0x4d0] sm:$0xff] %v2614
      %2647 = vst [vmem:[#allocation2 + $0x518] sm:$0xff] %v2615
      %2648 = vst [vmem:[#allocation2 + $0x560] sm:$0xff] %v2616
      %2649 = vst [vmem:[#allocation2 + $0x5a8] sm:$0xff] %v2617
      %2650 = vst [vmem:[#allocation2 + $0x5f0] sm:$0xff] %v2618
      %2651 = vst [vmem:[#allocation2 + $0x638] sm:$0xff] %v2619
      %2652 = vst [vmem:[#allocation2 + $0x680] sm:$0xff] %v2620
      %2653 = vst [vmem:[#allocation2 + $0x6c8] sm:$0xff] %v2621
      %2654 = vst [vmem:[#allocation2 + $0x710] sm:$0xff] %v2622
      %2655 = vst [vmem:[#allocation2 + $0x758] sm:$0xff] %v2623
      %2656 = vst [vmem:[#allocation2 + $0x7a0] sm:$0xff] %v2624
      %2657 = vst [vmem:[#allocation2 + $0x7e8] sm:$0xff] %v2625
      %2658 = vst [vmem:[#allocation2 + $0x830] sm:$0xff] %v2626
      %2659 = vst [vmem:[#allocation2 + $0x878] sm:$0xff] %v2627
      %2660 = vst [vmem:[#allocation2 + $0x8c0] sm:$0xff] %v2628
      %v2661 = vld [vmem:[#allocation3 + $0x2] sm:$0xff]
      %v2662 = vld [vmem:[#allocation3 + $0xa] sm:$0xff]
      %v2663 = vld [vmem:[#allocation3 + $0x1a] sm:$0xff]
      %v2664 = vld [vmem:[#allocation3 + $0x22] sm:$0xff]
      %v2665 = vld [vmem:[#allocation3 + $0x32] sm:$0xff]
      %v2666 = vld [vmem:[#allocation3 + $0x3a] sm:$0xff]
      %v2667 = vld [vmem:[#allocation3 + $0x4a] sm:$0xff]
      %v2668 = vld [vmem:[#allocation3 + $0x52] sm:$0xff]
      %v2669 = vld [vmem:[#allocation3 + $0x62] sm:$0xff]
      %v2670 = vld [vmem:[#allocation3 + $0x6a] sm:$0xff]
      %v2671 = vld [vmem:[#allocation3 + $0x7a] sm:$0xff]
      %v2672 = vld [vmem:[#allocation3 + $0x82] sm:$0xff]
      %v2673 = vld [vmem:[#allocation3 + $0x92] sm:$0xff]
      %v2674 = vld [vmem:[#allocation3 + $0x9a] sm:$0xff]
      %v2675 = vld [vmem:[#allocation3 + $0xaa] sm:$0xff]
      %v2676 = vld [vmem:[#allocation3 + $0xb2] sm:$0xff]
      %v2677 = vld [vmem:[#allocation3 + $0xc2] sm:$0xff]
      %v2678 = vld [vmem:[#allocation3 + $0xca] sm:$0xff]
      %v2679 = vld [vmem:[#allocation3 + $0xda] sm:$0xff]
      %v2680 = vld [vmem:[#allocation3 + $0xe2] sm:$0xff]
      %v2681 = vld [vmem:[#allocation3 + $0xf2] sm:$0xff]
      %v2682 = vld [vmem:[#allocation3 + $0xfa] sm:$0xff]
      %v2683 = vld [vmem:[#allocation3 + $0x10a] sm:$0xff]
      %v2684 = vld [vmem:[#allocation3 + $0x112] sm:$0xff]
      %v2685 = vld [vmem:[#allocation3 + $0x122] sm:$0xff]
      %v2686 = vld [vmem:[#allocation3 + $0x12a] sm:$0xff]
      %v2687 = vld [vmem:[#allocation3 + $0x13a] sm:$0xff]
      %v2688 = vld [vmem:[#allocation3 + $0x142] sm:$0xff]
      %v2689 = vld [vmem:[#allocation3 + $0x152] sm:$0xff]
      %v2690 = vld [vmem:[#allocation3 + $0x15a] sm:$0xff]
      %v2691 = vld [vmem:[#allocation3 + $0x16a] sm:$0xff]
      %v2692 = vld [vmem:[#allocation3 + $0x172] sm:$0xff]
      %2693 = vst [vmem:[#allocation2 + $0x10] sm:$0xff] %v2661
      %2694 = vst [vmem:[#allocation2 + $0x58] sm:$0xff] %v2662
      %2695 = vst [vmem:[#allocation2 + $0xa0] sm:$0xff] %v2663
      %2696 = vst [vmem:[#allocation2 + $0xe8] sm:$0xff] %v2664
      %2697 = vst [vmem:[#allocation2 + $0x130] sm:$0xff] %v2665
      %2698 = vst [vmem:[#allocation2 + $0x178] sm:$0xff] %v2666
      %2699 = vst [vmem:[#allocation2 + $0x1c0] sm:$0xff] %v2667
      %2700 = vst [vmem:[#allocation2 + $0x208] sm:$0xff] %v2668
      %2701 = vst [vmem:[#allocation2 + $0x250] sm:$0xff] %v2669
      %2702 = vst [vmem:[#allocation2 + $0x298] sm:$0xff] %v2670
      %2703 = vst [vmem:[#allocation2 + $0x2e0] sm:$0xff] %v2671
      %2704 = vst [vmem:[#allocation2 + $0x328] sm:$0xff] %v2672
      %2705 = vst [vmem:[#allocation2 + $0x370] sm:$0xff] %v2673
      %2706 = vst [vmem:[#allocation2 + $0x3b8] sm:$0xff] %v2674
      %2707 = vst [vmem:[#allocation2 + $0x400] sm:$0xff] %v2675
      %2708 = vst [vmem:[#allocation2 + $0x448] sm:$0xff] %v2676
      %2709 = vst [vmem:[#allocation2 + $0x490] sm:$0xff] %v2677
      %2710 = vst [vmem:[#allocation2 + $0x4d8] sm:$0xff] %v2678
      %2711 = vst [vmem:[#allocation2 + $0x520] sm:$0xff] %v2679
      %2712 = vst [vmem:[#allocation2 + $0x568] sm:$0xff] %v2680
      %2713 = vst [vmem:[#allocation2 + $0x5b0] sm:$0xff] %v2681
      %2714 = vst [vmem:[#allocation2 + $0x5f8] sm:$0xff] %v2682
      %2715 = vst [vmem:[#allocation2 + $0x640] sm:$0xff] %v2683
      %2716 = vst [vmem:[#allocation2 + $0x688] sm:$0xff] %v2684
      %2717 = vst [vmem:[#allocation2 + $0x6d0] sm:$0xff] %v2685
      %2718 = vst [vmem:[#allocation2 + $0x718] sm:$0xff] %v2686
      %2719 = vst [vmem:[#allocation2 + $0x760] sm:$0xff] %v2687
      %2720 = vst [vmem:[#allocation2 + $0x7a8] sm:$0xff] %v2688
      %2721 = vst [vmem:[#allocation2 + $0x7f0] sm:$0xff] %v2689
      %2722 = vst [vmem:[#allocation2 + $0x838] sm:$0xff] %v2690
      %2723 = vst [vmem:[#allocation2 + $0x880] sm:$0xff] %v2691
      %2724 = vst [vmem:[#allocation2 + $0x8c8] sm:$0xff] %v2692
      %v2725 = vld [vmem:[%s2500] sm:$0xff]
      %v2726 = vld [vmem:[%s2500 + $0x8] sm:$0xff]
      %v2727 = vld [vmem:[%s2500 + $0x18] sm:$0xff]
      %v2728 = vld [vmem:[%s2500 + $0x20] sm:$0xff]
      %v2729 = vld [vmem:[%s2500 + $0x30] sm:$0xff]
      %v2730 = vld [vmem:[%s2500 + $0x38] sm:$0xff]
      %v2731 = vld [vmem:[%s2500 + $0x48] sm:$0xff]
      %v2732 = vld [vmem:[%s2500 + $0x50] sm:$0xff]
      %v2733 = vld [vmem:[%s2500 + $0x60] sm:$0xff]
      %v2734 = vld [vmem:[%s2500 + $0x68] sm:$0xff]
      %v2735 = vld [vmem:[%s2500 + $0x78] sm:$0xff]
      %v2736 = vld [vmem:[%s2500 + $0x80] sm:$0xff]
      %v2737 = vld [vmem:[%s2500 + $0x90] sm:$0xff]
      %v2738 = vld [vmem:[%s2500 + $0x98] sm:$0xff]
      %v2739 = vld [vmem:[%s2500 + $0xa8] sm:$0xff]
      %v2740 = vld [vmem:[%s2500 + $0xb0] sm:$0xff]
      %v2741 = vld [vmem:[%s2500 + $0xc0] sm:$0xff]
      %v2742 = vld [vmem:[%s2500 + $0xc8] sm:$0xff]
      %v2743 = vld [vmem:[%s2500 + $0xd8] sm:$0xff]
      %v2744 = vld [vmem:[%s2500 + $0xe0] sm:$0xff]
      %v2745 = vld [vmem:[%s2500 + $0xf0] sm:$0xff]
      %v2746 = vld [vmem:[%s2500 + $0xf8] sm:$0xff]
      %v2747 = vld [vmem:[%s2500 + $0x108] sm:$0xff]
      %v2748 = vld [vmem:[%s2500 + $0x110] sm:$0xff]
      %v2749 = vld [vmem:[%s2500 + $0x120] sm:$0xff]
      %v2750 = vld [vmem:[%s2500 + $0x128] sm:$0xff]
      %v2751 = vld [vmem:[%s2500 + $0x138] sm:$0xff]
      %v2752 = vld [vmem:[%s2500 + $0x140] sm:$0xff]
      %v2753 = vld [vmem:[%s2500 + $0x150] sm:$0xff]
      %v2754 = vld [vmem:[%s2500 + $0x158] sm:$0xff]
      %v2755 = vld [vmem:[%s2500 + $0x168] sm:$0xff]
      %v2756 = vld [vmem:[%s2500 + $0x170] sm:$0xff]
      %2757 = vst [vmem:[#allocation2 + $0x18] sm:$0xff] %v2725
      %2758 = vst [vmem:[#allocation2 + $0x60] sm:$0xff] %v2726
      %2759 = vst [vmem:[#allocation2 + $0xa8] sm:$0xff] %v2727
      %2760 = vst [vmem:[#allocation2 + $0xf0] sm:$0xff] %v2728
      %2761 = vst [vmem:[#allocation2 + $0x138] sm:$0xff] %v2729
      %2762 = vst [vmem:[#allocation2 + $0x180] sm:$0xff] %v2730
      %2763 = vst [vmem:[#allocation2 + $0x1c8] sm:$0xff] %v2731
      %2764 = vst [vmem:[#allocation2 + $0x210] sm:$0xff] %v2732
      %2765 = vst [vmem:[#allocation2 + $0x258] sm:$0xff] %v2733
      %2766 = vst [vmem:[#allocation2 + $0x2a0] sm:$0xff] %v2734
      %2767 = vst [vmem:[#allocation2 + $0x2e8] sm:$0xff] %v2735
      %2768 = vst [vmem:[#allocation2 + $0x330] sm:$0xff] %v2736
      %2769 = vst [vmem:[#allocation2 + $0x378] sm:$0xff] %v2737
      %2770 = vst [vmem:[#allocation2 + $0x3c0] sm:$0xff] %v2738
      %2771 = vst [vmem:[#allocation2 + $0x408] sm:$0xff] %v2739
      %2772 = vst [vmem:[#allocation2 + $0x450] sm:$0xff] %v2740
      %2773 = vst [vmem:[#allocation2 + $0x498] sm:$0xff] %v2741
      %2774 = vst [vmem:[#allocation2 + $0x4e0] sm:$0xff] %v2742
      %2775 = vst [vmem:[#allocation2 + $0x528] sm:$0xff] %v2743
      %2776 = vst [vmem:[#allocation2 + $0x570] sm:$0xff] %v2744
      %2777 = vst [vmem:[#allocation2 + $0x5b8] sm:$0xff] %v2745
      %2778 = vst [vmem:[#allocation2 + $0x600] sm:$0xff] %v2746
      %2779 = vst [vmem:[#allocation2 + $0x648] sm:$0xff] %v2747
      %2780 = vst [vmem:[#allocation2 + $0x690] sm:$0xff] %v2748
      %2781 = vst [vmem:[#allocation2 + $0x6d8] sm:$0xff] %v2749
      %2782 = vst [vmem:[#allocation2 + $0x720] sm:$0xff] %v2750
      %2783 = vst [vmem:[#allocation2 + $0x768] sm:$0xff] %v2751
      %2784 = vst [vmem:[#allocation2 + $0x7b0] sm:$0xff] %v2752
      %2785 = vst [vmem:[#allocation2 + $0x7f8] sm:$0xff] %v2753
      %2786 = vst [vmem:[#allocation2 + $0x840] sm:$0xff] %v2754
      %2787 = vst [vmem:[#allocation2 + $0x888] sm:$0xff] %v2755
      %2788 = vst [vmem:[#allocation2 + $0x8d0] sm:$0xff] %v2756
      %v2789 = vld [vmem:[%s2500 + $0x1] sm:$0xff]
      %v2790 = vld [vmem:[%s2500 + $0x9] sm:$0xff]
      %v2791 = vld [vmem:[%s2500 + $0x19] sm:$0xff]
      %v2792 = vld [vmem:[%s2500 + $0x21] sm:$0xff]
      %v2793 = vld [vmem:[%s2500 + $0x31] sm:$0xff]
      %v2794 = vld [vmem:[%s2500 + $0x39] sm:$0xff]
      %v2795 = vld [vmem:[%s2500 + $0x49] sm:$0xff]
      %v2796 = vld [vmem:[%s2500 + $0x51] sm:$0xff]
      %v2797 = vld [vmem:[%s2500 + $0x61] sm:$0xff]
      %v2798 = vld [vmem:[%s2500 + $0x69] sm:$0xff]
      %v2799 = vld [vmem:[%s2500 + $0x79] sm:$0xff]
      %v2800 = vld [vmem:[%s2500 + $0x81] sm:$0xff]
      %v2801 = vld [vmem:[%s2500 + $0x91] sm:$0xff]
      %v2802 = vld [vmem:[%s2500 + $0x99] sm:$0xff]
      %v2803 = vld [vmem:[%s2500 + $0xa9] sm:$0xff]
      %v2804 = vld [vmem:[%s2500 + $0xb1] sm:$0xff]
      %v2805 = vld [vmem:[%s2500 + $0xc1] sm:$0xff]
      %v2806 = vld [vmem:[%s2500 + $0xc9] sm:$0xff]
      %v2807 = vld [vmem:[%s2500 + $0xd9] sm:$0xff]
      %v2808 = vld [vmem:[%s2500 + $0xe1] sm:$0xff]
      %v2809 = vld [vmem:[%s2500 + $0xf1] sm:$0xff]
      %v2810 = vld [vmem:[%s2500 + $0xf9] sm:$0xff]
      %v2811 = vld [vmem:[%s2500 + $0x109] sm:$0xff]
      %v2812 = vld [vmem:[%s2500 + $0x111] sm:$0xff]
      %v2813 = vld [vmem:[%s2500 + $0x121] sm:$0xff]
      %v2814 = vld [vmem:[%s2500 + $0x129] sm:$0xff]
      %v2815 = vld [vmem:[%s2500 + $0x139] sm:$0xff]
      %v2816 = vld [vmem:[%s2500 + $0x141] sm:$0xff]
      %v2817 = vld [vmem:[%s2500 + $0x151] sm:$0xff]
      %v2818 = vld [vmem:[%s2500 + $0x159] sm:$0xff]
      %v2819 = vld [vmem:[%s2500 + $0x169] sm:$0xff]
      %v2820 = vld [vmem:[%s2500 + $0x171] sm:$0xff]
      %2821 = vst [vmem:[#allocation2 + $0x20] sm:$0xff] %v2789
      %2822 = vst [vmem:[#allocation2 + $0x68] sm:$0xff] %v2790
      %2823 = vst [vmem:[#allocation2 + $0xb0] sm:$0xff] %v2791
      %2824 = vst [vmem:[#allocation2 + $0xf8] sm:$0xff] %v2792
      %2825 = vst [vmem:[#allocation2 + $0x140] sm:$0xff] %v2793
      %2826 = vst [vmem:[#allocation2 + $0x188] sm:$0xff] %v2794
      %2827 = vst [vmem:[#allocation2 + $0x1d0] sm:$0xff] %v2795
      %2828 = vst [vmem:[#allocation2 + $0x218] sm:$0xff] %v2796
      %2829 = vst [vmem:[#allocation2 + $0x260] sm:$0xff] %v2797
      %2830 = vst [vmem:[#allocation2 + $0x2a8] sm:$0xff] %v2798
      %2831 = vst [vmem:[#allocation2 + $0x2f0] sm:$0xff] %v2799
      %2832 = vst [vmem:[#allocation2 + $0x338] sm:$0xff] %v2800
      %2833 = vst [vmem:[#allocation2 + $0x380] sm:$0xff] %v2801
      %2834 = vst [vmem:[#allocation2 + $0x3c8] sm:$0xff] %v2802
      %2835 = vst [vmem:[#allocation2 + $0x410] sm:$0xff] %v2803
      %2836 = vst [vmem:[#allocation2 + $0x458] sm:$0xff] %v2804
      %2837 = vst [vmem:[#allocation2 + $0x4a0] sm:$0xff] %v2805
      %2838 = vst [vmem:[#allocation2 + $0x4e8] sm:$0xff] %v2806
      %2839 = vst [vmem:[#allocation2 + $0x530] sm:$0xff] %v2807
      %2840 = vst [vmem:[#allocation2 + $0x578] sm:$0xff] %v2808
      %2841 = vst [vmem:[#allocation2 + $0x5c0] sm:$0xff] %v2809
      %2842 = vst [vmem:[#allocation2 + $0x608] sm:$0xff] %v2810
      %2843 = vst [vmem:[#allocation2 + $0x650] sm:$0xff] %v2811
      %2844 = vst [vmem:[#allocation2 + $0x698] sm:$0xff] %v2812
      %2845 = vst [vmem:[#allocation2 + $0x6e0] sm:$0xff] %v2813
      %2846 = vst [vmem:[#allocation2 + $0x728] sm:$0xff] %v2814
      %2847 = vst [vmem:[#allocation2 + $0x770] sm:$0xff] %v2815
      %2848 = vst [vmem:[#allocation2 + $0x7b8] sm:$0xff] %v2816
      %2849 = vst [vmem:[#allocation2 + $0x800] sm:$0xff] %v2817
      %2850 = vst [vmem:[#allocation2 + $0x848] sm:$0xff] %v2818
      %2851 = vst [vmem:[#allocation2 + $0x890] sm:$0xff] %v2819
      %2852 = vst [vmem:[#allocation2 + $0x8d8] sm:$0xff] %v2820
      %v2853 = vld [vmem:[%s2500 + $0x2] sm:$0xff]
      %v2854 = vld [vmem:[%s2500 + $0xa] sm:$0xff]
      %v2855 = vld [vmem:[%s2500 + $0x1a] sm:$0xff]
      %v2856 = vld [vmem:[%s2500 + $0x22] sm:$0xff]
      %v2857 = vld [vmem:[%s2500 + $0x32] sm:$0xff]
      %v2858 = vld [vmem:[%s2500 + $0x3a] sm:$0xff]
      %v2859 = vld [vmem:[%s2500 + $0x4a] sm:$0xff]
      %v2860 = vld [vmem:[%s2500 + $0x52] sm:$0xff]
      %v2861 = vld [vmem:[%s2500 + $0x62] sm:$0xff]
      %v2862 = vld [vmem:[%s2500 + $0x6a] sm:$0xff]
      %v2863 = vld [vmem:[%s2500 + $0x7a] sm:$0xff]
      %v2864 = vld [vmem:[%s2500 + $0x82] sm:$0xff]
      %v2865 = vld [vmem:[%s2500 + $0x92] sm:$0xff]
      %v2866 = vld [vmem:[%s2500 + $0x9a] sm:$0xff]
      %v2867 = vld [vmem:[%s2500 + $0xaa] sm:$0xff]
      %v2868 = vld [vmem:[%s2500 + $0xb2] sm:$0xff]
      %v2869 = vld [vmem:[%s2500 + $0xc2] sm:$0xff]
      %v2870 = vld [vmem:[%s2500 + $0xca] sm:$0xff]
      %v2871 = vld [vmem:[%s2500 + $0xda] sm:$0xff]
      %v2872 = vld [vmem:[%s2500 + $0xe2] sm:$0xff]
      %v2873 = vld [vmem:[%s2500 + $0xf2] sm:$0xff]
      %v2874 = vld [vmem:[%s2500 + $0xfa] sm:$0xff]
      %v2875 = vld [vmem:[%s2500 + $0x10a] sm:$0xff]
      %v2876 = vld [vmem:[%s2500 + $0x112] sm:$0xff]
      %v2877 = vld [vmem:[%s2500 + $0x122] sm:$0xff]
      %v2878 = vld [vmem:[%s2500 + $0x12a] sm:$0xff]
      %v2879 = vld [vmem:[%s2500 + $0x13a] sm:$0xff]
      %v2880 = vld [vmem:[%s2500 + $0x142] sm:$0xff]
      %v2881 = vld [vmem:[%s2500 + $0x152] sm:$0xff]
      %v2882 = vld [vmem:[%s2500 + $0x15a] sm:$0xff]
      %v2883 = vld [vmem:[%s2500 + $0x16a] sm:$0xff]
      %v2884 = vld [vmem:[%s2500 + $0x172] sm:$0xff]
      %2885 = vst [vmem:[#allocation2 + $0x28] sm:$0xff] %v2853
      %2886 = vst [vmem:[#allocation2 + $0x70] sm:$0xff] %v2854
      %2887 = vst [vmem:[#allocation2 + $0xb8] sm:$0xff] %v2855
      %2888 = vst [vmem:[#allocation2 + $0x100] sm:$0xff] %v2856
      %2889 = vst [vmem:[#allocation2 + $0x148] sm:$0xff] %v2857
      %2890 = vst [vmem:[#allocation2 + $0x190] sm:$0xff] %v2858
      %2891 = vst [vmem:[#allocation2 + $0x1d8] sm:$0xff] %v2859
      %2892 = vst [vmem:[#allocation2 + $0x220] sm:$0xff] %v2860
      %2893 = vst [vmem:[#allocation2 + $0x268] sm:$0xff] %v2861
      %2894 = vst [vmem:[#allocation2 + $0x2b0] sm:$0xff] %v2862
      %2895 = vst [vmem:[#allocation2 + $0x2f8] sm:$0xff] %v2863
      %2896 = vst [vmem:[#allocation2 + $0x340] sm:$0xff] %v2864
      %2897 = vst [vmem:[#allocation2 + $0x388] sm:$0xff] %v2865
      %2898 = vst [vmem:[#allocation2 + $0x3d0] sm:$0xff] %v2866
      %2899 = vst [vmem:[#allocation2 + $0x418] sm:$0xff] %v2867
      %2900 = vst [vmem:[#allocation2 + $0x460] sm:$0xff] %v2868
      %2901 = vst [vmem:[#allocation2 + $0x4a8] sm:$0xff] %v2869
      %2902 = vst [vmem:[#allocation2 + $0x4f0] sm:$0xff] %v2870
      %2903 = vst [vmem:[#allocation2 + $0x538] sm:$0xff] %v2871
      %2904 = vst [vmem:[#allocation2 + $0x580] sm:$0xff] %v2872
      %2905 = vst [vmem:[#allocation2 + $0x5c8] sm:$0xff] %v2873
      %2906 = vst [vmem:[#allocation2 + $0x610] sm:$0xff] %v2874
      %2907 = vst [vmem:[#allocation2 + $0x658] sm:$0xff] %v2875
      %2908 = vst [vmem:[#allocation2 + $0x6a0] sm:$0xff] %v2876
      %2909 = vst [vmem:[#allocation2 + $0x6e8] sm:$0xff] %v2877
      %2910 = vst [vmem:[#allocation2 + $0x730] sm:$0xff] %v2878
      %2911 = vst [vmem:[#allocation2 + $0x778] sm:$0xff] %v2879
      %2912 = vst [vmem:[#allocation2 + $0x7c0] sm:$0xff] %v2880
      %2913 = vst [vmem:[#allocation2 + $0x808] sm:$0xff] %v2881
      %2914 = vst [vmem:[#allocation2 + $0x850] sm:$0xff] %v2882
      %2915 = vst [vmem:[#allocation2 + $0x898] sm:$0xff] %v2883
      %2916 = vst [vmem:[#allocation2 + $0x8e0] sm:$0xff] %v2884
      %s2917 = scalar_lea.vmem [#allocation3], 48
      %v2918 = vld [vmem:[%s2917] sm:$0xff]
      %v2919 = vld [vmem:[%s2917 + $0x8] sm:$0xff]
      %v2920 = vld [vmem:[%s2917 + $0x18] sm:$0xff]
      %v2921 = vld [vmem:[%s2917 + $0x20] sm:$0xff]
      %v2922 = vld [vmem:[%s2917 + $0x30] sm:$0xff]
      %v2923 = vld [vmem:[%s2917 + $0x38] sm:$0xff]
      %v2924 = vld [vmem:[%s2917 + $0x48] sm:$0xff]
      %v2925 = vld [vmem:[%s2917 + $0x50] sm:$0xff]
      %v2926 = vld [vmem:[%s2917 + $0x60] sm:$0xff]
      %v2927 = vld [vmem:[%s2917 + $0x68] sm:$0xff]
      %v2928 = vld [vmem:[%s2917 + $0x78] sm:$0xff]
      %v2929 = vld [vmem:[%s2917 + $0x80] sm:$0xff]
      %v2930 = vld [vmem:[%s2917 + $0x90] sm:$0xff]
      %v2931 = vld [vmem:[%s2917 + $0x98] sm:$0xff]
      %v2932 = vld [vmem:[%s2917 + $0xa8] sm:$0xff]
      %v2933 = vld [vmem:[%s2917 + $0xb0] sm:$0xff]
      %v2934 = vld [vmem:[%s2917 + $0xc0] sm:$0xff]
      %v2935 = vld [vmem:[%s2917 + $0xc8] sm:$0xff]
      %v2936 = vld [vmem:[%s2917 + $0xd8] sm:$0xff]
      %v2937 = vld [vmem:[%s2917 + $0xe0] sm:$0xff]
      %v2938 = vld [vmem:[%s2917 + $0xf0] sm:$0xff]
      %v2939 = vld [vmem:[%s2917 + $0xf8] sm:$0xff]
      %v2940 = vld [vmem:[%s2917 + $0x108] sm:$0xff]
      %v2941 = vld [vmem:[%s2917 + $0x110] sm:$0xff]
      %v2942 = vld [vmem:[%s2917 + $0x120] sm:$0xff]
      %v2943 = vld [vmem:[%s2917 + $0x128] sm:$0xff]
      %v2944 = vld [vmem:[%s2917 + $0x138] sm:$0xff]
      %v2945 = vld [vmem:[%s2917 + $0x140] sm:$0xff]
      %v2946 = vld [vmem:[%s2917 + $0x150] sm:$0xff]
      %v2947 = vld [vmem:[%s2917 + $0x158] sm:$0xff]
      %v2948 = vld [vmem:[%s2917 + $0x168] sm:$0xff]
      %v2949 = vld [vmem:[%s2917 + $0x170] sm:$0xff]
      %2950 = vst [vmem:[#allocation2 + $0x30] sm:$0xff] %v2918
      %2951 = vst [vmem:[#allocation2 + $0x78] sm:$0xff] %v2919
      %2952 = vst [vmem:[#allocation2 + $0xc0] sm:$0xff] %v2920
      %2953 = vst [vmem:[#allocation2 + $0x108] sm:$0xff] %v2921
      %2954 = vst [vmem:[#allocation2 + $0x150] sm:$0xff] %v2922
      %2955 = vst [vmem:[#allocation2 + $0x198] sm:$0xff] %v2923
      %2956 = vst [vmem:[#allocation2 + $0x1e0] sm:$0xff] %v2924
      %2957 = vst [vmem:[#allocation2 + $0x228] sm:$0xff] %v2925
      %2958 = vst [vmem:[#allocation2 + $0x270] sm:$0xff] %v2926
      %2959 = vst [vmem:[#allocation2 + $0x2b8] sm:$0xff] %v2927
      %2960 = vst [vmem:[#allocation2 + $0x300] sm:$0xff] %v2928
      %2961 = vst [vmem:[#allocation2 + $0x348] sm:$0xff] %v2929
      %2962 = vst [vmem:[#allocation2 + $0x390] sm:$0xff] %v2930
      %2963 = vst [vmem:[#allocation2 + $0x3d8] sm:$0xff] %v2931
      %2964 = vst [vmem:[#allocation2 + $0x420] sm:$0xff] %v2932
      %2965 = vst [vmem:[#allocation2 + $0x468] sm:$0xff] %v2933
      %2966 = vst [vmem:[#allocation2 + $0x4b0] sm:$0xff] %v2934
      %2967 = vst [vmem:[#allocation2 + $0x4f8] sm:$0xff] %v2935
      %2968 = vst [vmem:[#allocation2 + $0x540] sm:$0xff] %v2936
      %2969 = vst [vmem:[#allocation2 + $0x588] sm:$0xff] %v2937
      %2970 = vst [vmem:[#allocation2 + $0x5d0] sm:$0xff] %v2938
      %2971 = vst [vmem:[#allocation2 + $0x618] sm:$0xff] %v2939
      %2972 = vst [vmem:[#allocation2 + $0x660] sm:$0xff] %v2940
      %2973 = vst [vmem:[#allocation2 + $0x6a8] sm:$0xff] %v2941
      %2974 = vst [vmem:[#allocation2 + $0x6f0] sm:$0xff] %v2942
      %2975 = vst [vmem:[#allocation2 + $0x738] sm:$0xff] %v2943
      %2976 = vst [vmem:[#allocation2 + $0x780] sm:$0xff] %v2944
      %2977 = vst [vmem:[#allocation2 + $0x7c8] sm:$0xff] %v2945
      %2978 = vst [vmem:[#allocation2 + $0x810] sm:$0xff] %v2946
      %2979 = vst [vmem:[#allocation2 + $0x858] sm:$0xff] %v2947
      %2980 = vst [vmem:[#allocation2 + $0x8a0] sm:$0xff] %v2948
      %2981 = vst [vmem:[#allocation2 + $0x8e8] sm:$0xff] %v2949
      %v2982 = vld [vmem:[%s2917 + $0x1] sm:$0xff]
      %v2983 = vld [vmem:[%s2917 + $0x9] sm:$0xff]
      %v2984 = vld [vmem:[%s2917 + $0x19] sm:$0xff]
      %v2985 = vld [vmem:[%s2917 + $0x21] sm:$0xff]
      %v2986 = vld [vmem:[%s2917 + $0x31] sm:$0xff]
      %v2987 = vld [vmem:[%s2917 + $0x39] sm:$0xff]
      %v2988 = vld [vmem:[%s2917 + $0x49] sm:$0xff]
      %v2989 = vld [vmem:[%s2917 + $0x51] sm:$0xff]
      %v2990 = vld [vmem:[%s2917 + $0x61] sm:$0xff]
      %v2991 = vld [vmem:[%s2917 + $0x69] sm:$0xff]
      %v2992 = vld [vmem:[%s2917 + $0x79] sm:$0xff]
      %v2993 = vld [vmem:[%s2917 + $0x81] sm:$0xff]
      %v2994 = vld [vmem:[%s2917 + $0x91] sm:$0xff]
      %v2995 = vld [vmem:[%s2917 + $0x99] sm:$0xff]
      %v2996 = vld [vmem:[%s2917 + $0xa9] sm:$0xff]
      %v2997 = vld [vmem:[%s2917 + $0xb1] sm:$0xff]
      %v2998 = vld [vmem:[%s2917 + $0xc1] sm:$0xff]
      %v2999 = vld [vmem:[%s2917 + $0xc9] sm:$0xff]
      %v3000 = vld [vmem:[%s2917 + $0xd9] sm:$0xff]
      %v3001 = vld [vmem:[%s2917 + $0xe1] sm:$0xff]
      %v3002 = vld [vmem:[%s2917 + $0xf1] sm:$0xff]
      %v3003 = vld [vmem:[%s2917 + $0xf9] sm:$0xff]
      %v3004 = vld [vmem:[%s2917 + $0x109] sm:$0xff]
      %v3005 = vld [vmem:[%s2917 + $0x111] sm:$0xff]
      %v3006 = vld [vmem:[%s2917 + $0x121] sm:$0xff]
      %v3007 = vld [vmem:[%s2917 + $0x129] sm:$0xff]
      %v3008 = vld [vmem:[%s2917 + $0x139] sm:$0xff]
      %v3009 = vld [vmem:[%s2917 + $0x141] sm:$0xff]
      %v3010 = vld [vmem:[%s2917 + $0x151] sm:$0xff]
      %v3011 = vld [vmem:[%s2917 + $0x159] sm:$0xff]
      %v3012 = vld [vmem:[%s2917 + $0x169] sm:$0xff]
      %v3013 = vld [vmem:[%s2917 + $0x171] sm:$0xff]
      %3014 = vst [vmem:[#allocation2 + $0x38] sm:$0xff] %v2982
      %3015 = vst [vmem:[#allocation2 + $0x80] sm:$0xff] %v2983
      %3016 = vst [vmem:[#allocation2 + $0xc8] sm:$0xff] %v2984
      %3017 = vst [vmem:[#allocation2 + $0x110] sm:$0xff] %v2985
      %3018 = vst [vmem:[#allocation2 + $0x158] sm:$0xff] %v2986
      %3019 = vst [vmem:[#allocation2 + $0x1a0] sm:$0xff] %v2987
      %3020 = vst [vmem:[#allocation2 + $0x1e8] sm:$0xff] %v2988
      %3021 = vst [vmem:[#allocation2 + $0x230] sm:$0xff] %v2989
      %3022 = vst [vmem:[#allocation2 + $0x278] sm:$0xff] %v2990
      %3023 = vst [vmem:[#allocation2 + $0x2c0] sm:$0xff] %v2991
      %3024 = vst [vmem:[#allocation2 + $0x308] sm:$0xff] %v2992
      %3025 = vst [vmem:[#allocation2 + $0x350] sm:$0xff] %v2993
      %3026 = vst [vmem:[#allocation2 + $0x398] sm:$0xff] %v2994
      %3027 = vst [vmem:[#allocation2 + $0x3e0] sm:$0xff] %v2995
      %3028 = vst [vmem:[#allocation2 + $0x428] sm:$0xff] %v2996
      %3029 = vst [vmem:[#allocation2 + $0x470] sm:$0xff] %v2997
      %3030 = vst [vmem:[#allocation2 + $0x4b8] sm:$0xff] %v2998
      %3031 = vst [vmem:[#allocation2 + $0x500] sm:$0xff] %v2999
      %3032 = vst [vmem:[#allocation2 + $0x548] sm:$0xff] %v3000
      %3033 = vst [vmem:[#allocation2 + $0x590] sm:$0xff] %v3001
      %3034 = vst [vmem:[#allocation2 + $0x5d8] sm:$0xff] %v3002
      %3035 = vst [vmem:[#allocation2 + $0x620] sm:$0xff] %v3003
      %3036 = vst [vmem:[#allocation2 + $0x668] sm:$0xff] %v3004
      %3037 = vst [vmem:[#allocation2 + $0x6b0] sm:$0xff] %v3005
      %3038 = vst [vmem:[#allocation2 + $0x6f8] sm:$0xff] %v3006
      %3039 = vst [vmem:[#allocation2 + $0x740] sm:$0xff] %v3007
      %3040 = vst [vmem:[#allocation2 + $0x788] sm:$0xff] %v3008
      %3041 = vst [vmem:[#allocation2 + $0x7d0] sm:$0xff] %v3009
      %3042 = vst [vmem:[#allocation2 + $0x818] sm:$0xff] %v3010
      %3043 = vst [vmem:[#allocation2 + $0x860] sm:$0xff] %v3011
      %3044 = vst [vmem:[#allocation2 + $0x8a8] sm:$0xff] %v3012
      %3045 = vst [vmem:[#allocation2 + $0x8f0] sm:$0xff] %v3013
      %v3046 = vld [vmem:[%s2917 + $0x2] sm:$0xff]
      %v3047 = vld [vmem:[%s2917 + $0xa] sm:$0xff]
      %v3048 = vld [vmem:[%s2917 + $0x1a] sm:$0xff]
      %v3049 = vld [vmem:[%s2917 + $0x22] sm:$0xff]
      %v3050 = vld [vmem:[%s2917 + $0x32] sm:$0xff]
      %v3051 = vld [vmem:[%s2917 + $0x3a] sm:$0xff]
      %v3052 = vld [vmem:[%s2917 + $0x4a] sm:$0xff]
      %v3053 = vld [vmem:[%s2917 + $0x52] sm:$0xff]
      %v3054 = vld [vmem:[%s2917 + $0x62] sm:$0xff]
      %v3055 = vld [vmem:[%s2917 + $0x6a] sm:$0xff]
      %v3056 = vld [vmem:[%s2917 + $0x7a] sm:$0xff]
      %v3057 = vld [vmem:[%s2917 + $0x82] sm:$0xff]
      %v3058 = vld [vmem:[%s2917 + $0x92] sm:$0xff]
      %v3059 = vld [vmem:[%s2917 + $0x9a] sm:$0xff]
      %v3060 = vld [vmem:[%s2917 + $0xaa] sm:$0xff]
      %v3061 = vld [vmem:[%s2917 + $0xb2] sm:$0xff]
      %v3062 = vld [vmem:[%s2917 + $0xc2] sm:$0xff]
      %v3063 = vld [vmem:[%s2917 + $0xca] sm:$0xff]
      %v3064 = vld [vmem:[%s2917 + $0xda] sm:$0xff]
      %v3065 = vld [vmem:[%s2917 + $0xe2] sm:$0xff]
      %v3066 = vld [vmem:[%s2917 + $0xf2] sm:$0xff]
      %v3067 = vld [vmem:[%s2917 + $0xfa] sm:$0xff]
      %v3068 = vld [vmem:[%s2917 + $0x10a] sm:$0xff]
      %v3069 = vld [vmem:[%s2917 + $0x112] sm:$0xff]
      %v3070 = vld [vmem:[%s2917 + $0x122] sm:$0xff]
      %v3071 = vld [vmem:[%s2917 + $0x12a] sm:$0xff]
      %v3072 = vld [vmem:[%s2917 + $0x13a] sm:$0xff]
      %v3073 = vld [vmem:[%s2917 + $0x142] sm:$0xff]
      %v3074 = vld [vmem:[%s2917 + $0x152] sm:$0xff]
      %v3075 = vld [vmem:[%s2917 + $0x15a] sm:$0xff]
      %v3076 = vld [vmem:[%s2917 + $0x16a] sm:$0xff]
      %v3077 = vld [vmem:[%s2917 + $0x172] sm:$0xff]
      %3078 = vst [vmem:[#allocation2 + $0x40] sm:$0xff] %v3046
      %3079 = vst [vmem:[#allocation2 + $0x88] sm:$0xff] %v3047
      %3080 = vst [vmem:[#allocation2 + $0xd0] sm:$0xff] %v3048
      %3081 = vst [vmem:[#allocation2 + $0x118] sm:$0xff] %v3049
      %3082 = vst [vmem:[#allocation2 + $0x160] sm:$0xff] %v3050
      %3083 = vst [vmem:[#allocation2 + $0x1a8] sm:$0xff] %v3051
      %3084 = vst [vmem:[#allocation2 + $0x1f0] sm:$0xff] %v3052
      %3085 = vst [vmem:[#allocation2 + $0x238] sm:$0xff] %v3053
      %3086 = vst [vmem:[#allocation2 + $0x280] sm:$0xff] %v3054
      %3087 = vst [vmem:[#allocation2 + $0x2c8] sm:$0xff] %v3055
      %3088 = vst [vmem:[#allocation2 + $0x310] sm:$0xff] %v3056
      %3089 = vst [vmem:[#allocation2 + $0x358] sm:$0xff] %v3057
      %3090 = vst [vmem:[#allocation2 + $0x3a0] sm:$0xff] %v3058
      %3091 = vst [vmem:[#allocation2 + $0x3e8] sm:$0xff] %v3059
      %3092 = vst [vmem:[#allocation2 + $0x430] sm:$0xff] %v3060
      %3093 = vst [vmem:[#allocation2 + $0x478] sm:$0xff] %v3061
      %3094 = vst [vmem:[#allocation2 + $0x4c0] sm:$0xff] %v3062
      %3095 = vst [vmem:[#allocation2 + $0x508] sm:$0xff] %v3063
      %3096 = vst [vmem:[#allocation2 + $0x550] sm:$0xff] %v3064
      %3097 = vst [vmem:[#allocation2 + $0x598] sm:$0xff] %v3065
      %3098 = vst [vmem:[#allocation2 + $0x5e0] sm:$0xff] %v3066
      %3099 = vst [vmem:[#allocation2 + $0x628] sm:$0xff] %v3067
      %3100 = vst [vmem:[#allocation2 + $0x670] sm:$0xff] %v3068
      %3101 = vst [vmem:[#allocation2 + $0x6b8] sm:$0xff] %v3069
      %3102 = vst [vmem:[#allocation2 + $0x700] sm:$0xff] %v3070
      %3103 = vst [vmem:[#allocation2 + $0x748] sm:$0xff] %v3071
      %3104 = vst [vmem:[#allocation2 + $0x790] sm:$0xff] %v3072
      %3105 = vst [vmem:[#allocation2 + $0x7d8] sm:$0xff] %v3073
      %3106 = vst [vmem:[#allocation2 + $0x820] sm:$0xff] %v3074
      %3107 = vst [vmem:[#allocation2 + $0x868] sm:$0xff] %v3075
      %3108 = vst [vmem:[#allocation2 + $0x8b0] sm:$0xff] %v3076
      %3109 = vst [vmem:[#allocation2 + $0x8f8] sm:$0xff] %v3077
      %v3110 = vld [vmem:[#allocation2] sm:$0xff]
      %v3111 = vld [vmem:[#allocation2 + $0x8] sm:$0xff]
      %v3112 = vld [vmem:[#allocation2 + $0x10] sm:$0xff]
      %v3113 = vld [vmem:[#allocation2 + $0x18] sm:$0xff]
      %v3114 = vld [vmem:[#allocation2 + $0x20] sm:$0xff]
      %v3115 = vld [vmem:[#allocation2 + $0x28] sm:$0xff]
      %v3116 = vld [vmem:[#allocation2 + $0x30] sm:$0xff]
      %v3117 = vld [vmem:[#allocation2 + $0x38] sm:$0xff]
      %v3118 = vld [vmem:[#allocation2 + $0x40] sm:$0xff]
      %v3119 = vld [vmem:[#allocation2 + $0x48] sm:$0xff]
      %v3120 = vld [vmem:[#allocation2 + $0x50] sm:$0xff]
      %v3121 = vld [vmem:[#allocation2 + $0x58] sm:$0xff]
      %v3122 = vld [vmem:[#allocation2 + $0x60] sm:$0xff]
      %v3123 = vld [vmem:[#allocation2 + $0x68] sm:$0xff]
      %v3124 = vld [vmem:[#allocation2 + $0x70] sm:$0xff]
      %v3125 = vld [vmem:[#allocation2 + $0x78] sm:$0xff]
      %v3126 = vld [vmem:[#allocation2 + $0x80] sm:$0xff]
      %v3127 = vld [vmem:[#allocation2 + $0x88] sm:$0xff]
      %v3128 = vld [vmem:[#allocation2 + $0x90] sm:$0xff]
      %v3129 = vld [vmem:[#allocation2 + $0x98] sm:$0xff]
      %v3130 = vld [vmem:[#allocation2 + $0xa0] sm:$0xff]
      %v3131 = vld [vmem:[#allocation2 + $0xa8] sm:$0xff]
      %v3132 = vld [vmem:[#allocation2 + $0xb0] sm:$0xff]
      %v3133 = vld [vmem:[#allocation2 + $0xb8] sm:$0xff]
      %v3134 = vld [vmem:[#allocation2 + $0xc0] sm:$0xff]
      %v3135 = vld [vmem:[#allocation2 + $0xc8] sm:$0xff]
      %v3136 = vld [vmem:[#allocation2 + $0xd0] sm:$0xff]
      %v3137 = vld [vmem:[#allocation2 + $0xd8] sm:$0xff]
      %v3138 = vld [vmem:[#allocation2 + $0xe0] sm:$0xff]
      %v3139 = vld [vmem:[#allocation2 + $0xe8] sm:$0xff]
      %v3140 = vld [vmem:[#allocation2 + $0xf0] sm:$0xff]
      %v3141 = vld [vmem:[#allocation2 + $0xf8] sm:$0xff]
      %v3142 = vld [vmem:[#allocation2 + $0x100] sm:$0xff]
      %v3143 = vld [vmem:[#allocation2 + $0x108] sm:$0xff]
      %v3144 = vld [vmem:[#allocation2 + $0x110] sm:$0xff]
      %v3145 = vld [vmem:[#allocation2 + $0x118] sm:$0xff]
      %v3146 = vld [vmem:[#allocation2 + $0x120] sm:$0xff]
      %v3147 = vld [vmem:[#allocation2 + $0x128] sm:$0xff]
      %v3148 = vld [vmem:[#allocation2 + $0x130] sm:$0xff]
      %v3149 = vld [vmem:[#allocation2 + $0x138] sm:$0xff]
      %v3150 = vld [vmem:[#allocation2 + $0x140] sm:$0xff]
      %v3151 = vld [vmem:[#allocation2 + $0x148] sm:$0xff]
      %v3152 = vld [vmem:[#allocation2 + $0x150] sm:$0xff]
      %v3153 = vld [vmem:[#allocation2 + $0x158] sm:$0xff]
      %v3154 = vld [vmem:[#allocation2 + $0x160] sm:$0xff]
      %v3155 = vld [vmem:[#allocation2 + $0x168] sm:$0xff]
      %v3156 = vld [vmem:[#allocation2 + $0x170] sm:$0xff]
      %v3157 = vld [vmem:[#allocation2 + $0x178] sm:$0xff]
      %v3158 = vld [vmem:[#allocation2 + $0x180] sm:$0xff]
      %v3159 = vld [vmem:[#allocation2 + $0x188] sm:$0xff]
      %v3160 = vld [vmem:[#allocation2 + $0x190] sm:$0xff]
      %v3161 = vld [vmem:[#allocation2 + $0x198] sm:$0xff]
      %v3162 = vld [vmem:[#allocation2 + $0x1a0] sm:$0xff]
      %v3163 = vld [vmem:[#allocation2 + $0x1a8] sm:$0xff]
      %v3164 = vld [vmem:[#allocation2 + $0x1b0] sm:$0xff]
      %v3165 = vld [vmem:[#allocation2 + $0x1b8] sm:$0xff]
      %v3166 = vld [vmem:[#allocation2 + $0x1c0] sm:$0xff]
      %v3167 = vld [vmem:[#allocation2 + $0x1c8] sm:$0xff]
      %v3168 = vld [vmem:[#allocation2 + $0x1d0] sm:$0xff]
      %v3169 = vld [vmem:[#allocation2 + $0x1d8] sm:$0xff]
      %v3170 = vld [vmem:[#allocation2 + $0x1e0] sm:$0xff]
      %v3171 = vld [vmem:[#allocation2 + $0x1e8] sm:$0xff]
      %v3172 = vld [vmem:[#allocation2 + $0x1f0] sm:$0xff]
      %v3173 = vld [vmem:[#allocation2 + $0x1f8] sm:$0xff]
      %v3174 = vld [vmem:[#allocation2 + $0x200] sm:$0xff]
      %v3175 = vld [vmem:[#allocation2 + $0x208] sm:$0xff]
      %v3176 = vld [vmem:[#allocation2 + $0x210] sm:$0xff]
      %v3177 = vld [vmem:[#allocation2 + $0x218] sm:$0xff]
      %v3178 = vld [vmem:[#allocation2 + $0x220] sm:$0xff]
      %v3179 = vld [vmem:[#allocation2 + $0x228] sm:$0xff]
      %v3180 = vld [vmem:[#allocation2 + $0x230] sm:$0xff]
      %v3181 = vld [vmem:[#allocation2 + $0x238] sm:$0xff]
      %v3182 = vld [vmem:[#allocation2 + $0x240] sm:$0xff]
      %v3183 = vld [vmem:[#allocation2 + $0x248] sm:$0xff]
      %v3184 = vld [vmem:[#allocation2 + $0x250] sm:$0xff]
      %v3185 = vld [vmem:[#allocation2 + $0x258] sm:$0xff]
      %v3186 = vld [vmem:[#allocation2 + $0x260] sm:$0xff]
      %v3187 = vld [vmem:[#allocation2 + $0x268] sm:$0xff]
      %v3188 = vld [vmem:[#allocation2 + $0x270] sm:$0xff]
      %v3189 = vld [vmem:[#allocation2 + $0x278] sm:$0xff]
      %v3190 = vld [vmem:[#allocation2 + $0x280] sm:$0xff]
      %v3191 = vld [vmem:[#allocation2 + $0x288] sm:$0xff]
      %v3192 = vld [vmem:[#allocation2 + $0x290] sm:$0xff]
      %v3193 = vld [vmem:[#allocation2 + $0x298] sm:$0xff]
      %v3194 = vld [vmem:[#allocation2 + $0x2a0] sm:$0xff]
      %v3195 = vld [vmem:[#allocation2 + $0x2a8] sm:$0xff]
      %v3196 = vld [vmem:[#allocation2 + $0x2b0] sm:$0xff]
      %v3197 = vld [vmem:[#allocation2 + $0x2b8] sm:$0xff]
      %v3198 = vld [vmem:[#allocation2 + $0x2c0] sm:$0xff]
      %v3199 = vld [vmem:[#allocation2 + $0x2c8] sm:$0xff]
      %v3200 = vld [vmem:[#allocation2 + $0x2d0] sm:$0xff]
      %v3201 = vld [vmem:[#allocation2 + $0x2d8] sm:$0xff]
      %v3202 = vld [vmem:[#allocation2 + $0x2e0] sm:$0xff]
      %v3203 = vld [vmem:[#allocation2 + $0x2e8] sm:$0xff]
      %v3204 = vld [vmem:[#allocation2 + $0x2f0] sm:$0xff]
      %v3205 = vld [vmem:[#allocation2 + $0x2f8] sm:$0xff]
      %v3206 = vld [vmem:[#allocation2 + $0x300] sm:$0xff]
      %v3207 = vld [vmem:[#allocation2 + $0x308] sm:$0xff]
      %v3208 = vld [vmem:[#allocation2 + $0x310] sm:$0xff]
      %v3209 = vld [vmem:[#allocation2 + $0x318] sm:$0xff]
      %v3210 = vld [vmem:[#allocation2 + $0x320] sm:$0xff]
      %v3211 = vld [vmem:[#allocation2 + $0x328] sm:$0xff]
      %v3212 = vld [vmem:[#allocation2 + $0x330] sm:$0xff]
      %v3213 = vld [vmem:[#allocation2 + $0x338] sm:$0xff]
      %v3214 = vld [vmem:[#allocation2 + $0x340] sm:$0xff]
      %v3215 = vld [vmem:[#allocation2 + $0x348] sm:$0xff]
      %v3216 = vld [vmem:[#allocation2 + $0x350] sm:$0xff]
      %v3217 = vld [vmem:[#allocation2 + $0x358] sm:$0xff]
      %v3218 = vld [vmem:[#allocation2 + $0x360] sm:$0xff]
      %v3219 = vld [vmem:[#allocation2 + $0x368] sm:$0xff]
      %v3220 = vld [vmem:[#allocation2 + $0x370] sm:$0xff]
      %v3221 = vld [vmem:[#allocation2 + $0x378] sm:$0xff]
      %v3222 = vld [vmem:[#allocation2 + $0x380] sm:$0xff]
      %v3223 = vld [vmem:[#allocation2 + $0x388] sm:$0xff]
      %v3224 = vld [vmem:[#allocation2 + $0x390] sm:$0xff]
      %v3225 = vld [vmem:[#allocation2 + $0x398] sm:$0xff]
      %v3226 = vld [vmem:[#allocation2 + $0x3a0] sm:$0xff]
      %v3227 = vld [vmem:[#allocation2 + $0x3a8] sm:$0xff]
      %v3228 = vld [vmem:[#allocation2 + $0x3b0] sm:$0xff]
      %v3229 = vld [vmem:[#allocation2 + $0x3b8] sm:$0xff]
      %v3230 = vld [vmem:[#allocation2 + $0x3c0] sm:$0xff]
      %v3231 = vld [vmem:[#allocation2 + $0x3c8] sm:$0xff]
      %v3232 = vld [vmem:[#allocation2 + $0x3d0] sm:$0xff]
      %v3233 = vld [vmem:[#allocation2 + $0x3d8] sm:$0xff]
      %v3234 = vld [vmem:[#allocation2 + $0x3e0] sm:$0xff]
      %v3235 = vld [vmem:[#allocation2 + $0x3e8] sm:$0xff]
      %v3236 = vld [vmem:[#allocation2 + $0x3f0] sm:$0xff]
      %v3237 = vld [vmem:[#allocation2 + $0x3f8] sm:$0xff]
      %v3238 = vld [vmem:[#allocation2 + $0x400] sm:$0xff]
      %v3239 = vld [vmem:[#allocation2 + $0x408] sm:$0xff]
      %v3240 = vld [vmem:[#allocation2 + $0x410] sm:$0xff]
      %v3241 = vld [vmem:[#allocation2 + $0x418] sm:$0xff]
      %v3242 = vld [vmem:[#allocation2 + $0x420] sm:$0xff]
      %v3243 = vld [vmem:[#allocation2 + $0x428] sm:$0xff]
      %v3244 = vld [vmem:[#allocation2 + $0x430] sm:$0xff]
      %v3245 = vld [vmem:[#allocation2 + $0x438] sm:$0xff]
      %v3246 = vld [vmem:[#allocation2 + $0x440] sm:$0xff]
      %v3247 = vld [vmem:[#allocation2 + $0x448] sm:$0xff]
      %v3248 = vld [vmem:[#allocation2 + $0x450] sm:$0xff]
      %v3249 = vld [vmem:[#allocation2 + $0x458] sm:$0xff]
      %v3250 = vld [vmem:[#allocation2 + $0x460] sm:$0xff]
      %v3251 = vld [vmem:[#allocation2 + $0x468] sm:$0xff]
      %v3252 = vld [vmem:[#allocation2 + $0x470] sm:$0xff]
      %v3253 = vld [vmem:[#allocation2 + $0x478] sm:$0xff]
      %v3254 = vld [vmem:[#allocation2 + $0x480] sm:$0xff]
      %v3255 = vld [vmem:[#allocation2 + $0x488] sm:$0xff]
      %v3256 = vld [vmem:[#allocation2 + $0x490] sm:$0xff]
      %v3257 = vld [vmem:[#allocation2 + $0x498] sm:$0xff]
      %v3258 = vld [vmem:[#allocation2 + $0x4a0] sm:$0xff]
      %v3259 = vld [vmem:[#allocation2 + $0x4a8] sm:$0xff]
      %v3260 = vld [vmem:[#allocation2 + $0x4b0] sm:$0xff]
      %v3261 = vld [vmem:[#allocation2 + $0x4b8] sm:$0xff]
      %v3262 = vld [vmem:[#allocation2 + $0x4c0] sm:$0xff]
      %v3263 = vld [vmem:[#allocation2 + $0x4c8] sm:$0xff]
      %v3264 = vld [vmem:[#allocation2 + $0x4d0] sm:$0xff]
      %v3265 = vld [vmem:[#allocation2 + $0x4d8] sm:$0xff]
      %v3266 = vld [vmem:[#allocation2 + $0x4e0] sm:$0xff]
      %v3267 = vld [vmem:[#allocation2 + $0x4e8] sm:$0xff]
      %v3268 = vld [vmem:[#allocation2 + $0x4f0] sm:$0xff]
      %v3269 = vld [vmem:[#allocation2 + $0x4f8] sm:$0xff]
      %v3270 = vld [vmem:[#allocation2 + $0x500] sm:$0xff]
      %v3271 = vld [vmem:[#allocation2 + $0x508] sm:$0xff]
      %v3272 = vld [vmem:[#allocation2 + $0x510] sm:$0xff]
      %v3273 = vld [vmem:[#allocation2 + $0x518] sm:$0xff]
      %v3274 = vld [vmem:[#allocation2 + $0x520] sm:$0xff]
      %v3275 = vld [vmem:[#allocation2 + $0x528] sm:$0xff]
      %v3276 = vld [vmem:[#allocation2 + $0x530] sm:$0xff]
      %v3277 = vld [vmem:[#allocation2 + $0x538] sm:$0xff]
      %v3278 = vld [vmem:[#allocation2 + $0x540] sm:$0xff]
      %v3279 = vld [vmem:[#allocation2 + $0x548] sm:$0xff]
      %v3280 = vld [vmem:[#allocation2 + $0x550] sm:$0xff]
      %v3281 = vld [vmem:[#allocation2 + $0x558] sm:$0xff]
      %v3282 = vld [vmem:[#allocation2 + $0x560] sm:$0xff]
      %v3283 = vld [vmem:[#allocation2 + $0x568] sm:$0xff]
      %v3284 = vld [vmem:[#allocation2 + $0x570] sm:$0xff]
      %v3285 = vld [vmem:[#allocation2 + $0x578] sm:$0xff]
      %v3286 = vld [vmem:[#allocation2 + $0x580] sm:$0xff]
      %v3287 = vld [vmem:[#allocation2 + $0x588] sm:$0xff]
      %v3288 = vld [vmem:[#allocation2 + $0x590] sm:$0xff]
      %v3289 = vld [vmem:[#allocation2 + $0x598] sm:$0xff]
      %v3290 = vld [vmem:[#allocation2 + $0x5a0] sm:$0xff]
      %v3291 = vld [vmem:[#allocation2 + $0x5a8] sm:$0xff]
      %v3292 = vld [vmem:[#allocation2 + $0x5b0] sm:$0xff]
      %v3293 = vld [vmem:[#allocation2 + $0x5b8] sm:$0xff]
      %v3294 = vld [vmem:[#allocation2 + $0x5c0] sm:$0xff]
      %v3295 = vld [vmem:[#allocation2 + $0x5c8] sm:$0xff]
      %v3296 = vld [vmem:[#allocation2 + $0x5d0] sm:$0xff]
      %v3297 = vld [vmem:[#allocation2 + $0x5d8] sm:$0xff]
      %v3298 = vld [vmem:[#allocation2 + $0x5e0] sm:$0xff]
      %v3299 = vld [vmem:[#allocation2 + $0x5e8] sm:$0xff]
      %v3300 = vld [vmem:[#allocation2 + $0x5f0] sm:$0xff]
      %v3301 = vld [vmem:[#allocation2 + $0x5f8] sm:$0xff]
      %v3302 = vld [vmem:[#allocation2 + $0x600] sm:$0xff]
      %v3303 = vld [vmem:[#allocation2 + $0x608] sm:$0xff]
      %v3304 = vld [vmem:[#allocation2 + $0x610] sm:$0xff]
      %v3305 = vld [vmem:[#allocation2 + $0x618] sm:$0xff]
      %v3306 = vld [vmem:[#allocation2 + $0x620] sm:$0xff]
      %v3307 = vld [vmem:[#allocation2 + $0x628] sm:$0xff]
      %v3308 = vld [vmem:[#allocation2 + $0x630] sm:$0xff]
      %v3309 = vld [vmem:[#allocation2 + $0x638] sm:$0xff]
      %v3310 = vld [vmem:[#allocation2 + $0x640] sm:$0xff]
      %v3311 = vld [vmem:[#allocation2 + $0x648] sm:$0xff]
      %v3312 = vld [vmem:[#allocation2 + $0x650] sm:$0xff]
      %v3313 = vld [vmem:[#allocation2 + $0x658] sm:$0xff]
      %v3314 = vld [vmem:[#allocation2 + $0x660] sm:$0xff]
      %v3315 = vld [vmem:[#allocation2 + $0x668] sm:$0xff]
      %v3316 = vld [vmem:[#allocation2 + $0x670] sm:$0xff]
      %v3317 = vld [vmem:[#allocation2 + $0x678] sm:$0xff]
      %v3318 = vld [vmem:[#allocation2 + $0x680] sm:$0xff]
      %v3319 = vld [vmem:[#allocation2 + $0x688] sm:$0xff]
      %v3320 = vld [vmem:[#allocation2 + $0x690] sm:$0xff]
      %v3321 = vld [vmem:[#allocation2 + $0x698] sm:$0xff]
      %v3322 = vld [vmem:[#allocation2 + $0x6a0] sm:$0xff]
      %v3323 = vld [vmem:[#allocation2 + $0x6a8] sm:$0xff]
      %v3324 = vld [vmem:[#allocation2 + $0x6b0] sm:$0xff]
      %v3325 = vld [vmem:[#allocation2 + $0x6b8] sm:$0xff]
      %v3326 = vld [vmem:[#allocation2 + $0x6c0] sm:$0xff]
      %v3327 = vld [vmem:[#allocation2 + $0x6c8] sm:$0xff]
      %v3328 = vld [vmem:[#allocation2 + $0x6d0] sm:$0xff]
      %v3329 = vld [vmem:[#allocation2 + $0x6d8] sm:$0xff]
      %v3330 = vld [vmem:[#allocation2 + $0x6e0] sm:$0xff]
      %v3331 = vld [vmem:[#allocation2 + $0x6e8] sm:$0xff]
      %v3332 = vld [vmem:[#allocation2 + $0x6f0] sm:$0xff]
      %v3333 = vld [vmem:[#allocation2 + $0x6f8] sm:$0xff]
      %v3334 = vld [vmem:[#allocation2 + $0x700] sm:$0xff]
      %v3335 = vld [vmem:[#allocation2 + $0x708] sm:$0xff]
      %v3336 = vld [vmem:[#allocation2 + $0x710] sm:$0xff]
      %v3337 = vld [vmem:[#allocation2 + $0x718] sm:$0xff]
      %v3338 = vld [vmem:[#allocation2 + $0x720] sm:$0xff]
      %v3339 = vld [vmem:[#allocation2 + $0x728] sm:$0xff]
      %v3340 = vld [vmem:[#allocation2 + $0x730] sm:$0xff]
      %v3341 = vld [vmem:[#allocation2 + $0x738] sm:$0xff]
      %v3342 = vld [vmem:[#allocation2 + $0x740] sm:$0xff]
      %v3343 = vld [vmem:[#allocation2 + $0x748] sm:$0xff]
      %v3344 = vld [vmem:[#allocation2 + $0x750] sm:$0xff]
      %v3345 = vld [vmem:[#allocation2 + $0x758] sm:$0xff]
      %v3346 = vld [vmem:[#allocation2 + $0x760] sm:$0xff]
      %v3347 = vld [vmem:[#allocation2 + $0x768] sm:$0xff]
      %v3348 = vld [vmem:[#allocation2 + $0x770] sm:$0xff]
      %v3349 = vld [vmem:[#allocation2 + $0x778] sm:$0xff]
      %v3350 = vld [vmem:[#allocation2 + $0x780] sm:$0xff]
      %v3351 = vld [vmem:[#allocation2 + $0x788] sm:$0xff]
      %v3352 = vld [vmem:[#allocation2 + $0x790] sm:$0xff]
      %v3353 = vld [vmem:[#allocation2 + $0x798] sm:$0xff]
      %v3354 = vld [vmem:[#allocation2 + $0x7a0] sm:$0xff]
      %v3355 = vld [vmem:[#allocation2 + $0x7a8] sm:$0xff]
      %v3356 = vld [vmem:[#allocation2 + $0x7b0] sm:$0xff]
      %v3357 = vld [vmem:[#allocation2 + $0x7b8] sm:$0xff]
      %v3358 = vld [vmem:[#allocation2 + $0x7c0] sm:$0xff]
      %v3359 = vld [vmem:[#allocation2 + $0x7c8] sm:$0xff]
      %v3360 = vld [vmem:[#allocation2 + $0x7d0] sm:$0xff]
      %v3361 = vld [vmem:[#allocation2 + $0x7d8] sm:$0xff]
      %v3362 = vld [vmem:[#allocation2 + $0x7e0] sm:$0xff]
      %v3363 = vld [vmem:[#allocation2 + $0x7e8] sm:$0xff]
      %v3364 = vld [vmem:[#allocation2 + $0x7f0] sm:$0xff]
      %v3365 = vld [vmem:[#allocation2 + $0x7f8] sm:$0xff]
      %v3366 = vld [vmem:[#allocation2 + $0x800] sm:$0xff]
      %v3367 = vld [vmem:[#allocation2 + $0x808] sm:$0xff]
      %v3368 = vld [vmem:[#allocation2 + $0x810] sm:$0xff]
      %v3369 = vld [vmem:[#allocation2 + $0x818] sm:$0xff]
      %v3370 = vld [vmem:[#allocation2 + $0x820] sm:$0xff]
      %v3371 = vld [vmem:[#allocation2 + $0x828] sm:$0xff]
      %v3372 = vld [vmem:[#allocation2 + $0x830] sm:$0xff]
      %v3373 = vld [vmem:[#allocation2 + $0x838] sm:$0xff]
      %v3374 = vld [vmem:[#allocation2 + $0x840] sm:$0xff]
      %v3375 = vld [vmem:[#allocation2 + $0x848] sm:$0xff]
      %v3376 = vld [vmem:[#allocation2 + $0x850] sm:$0xff]
      %v3377 = vld [vmem:[#allocation2 + $0x858] sm:$0xff]
      %v3378 = vld [vmem:[#allocation2 + $0x860] sm:$0xff]
      %v3379 = vld [vmem:[#allocation2 + $0x868] sm:$0xff]
      %v3380 = vld [vmem:[#allocation2 + $0x870] sm:$0xff]
      %v3381 = vld [vmem:[#allocation2 + $0x878] sm:$0xff]
      %v3382 = vld [vmem:[#allocation2 + $0x880] sm:$0xff]
      %v3383 = vld [vmem:[#allocation2 + $0x888] sm:$0xff]
      %v3384 = vld [vmem:[#allocation2 + $0x890] sm:$0xff]
      %v3385 = vld [vmem:[#allocation2 + $0x898] sm:$0xff]
      %v3386 = vld [vmem:[#allocation2 + $0x8a0] sm:$0xff]
      %v3387 = vld [vmem:[#allocation2 + $0x8a8] sm:$0xff]
      %v3388 = vld [vmem:[#allocation2 + $0x8b0] sm:$0xff]
      %v3389 = vld [vmem:[#allocation2 + $0x8b8] sm:$0xff]
      %v3390 = vld [vmem:[#allocation2 + $0x8c0] sm:$0xff]
      %v3391 = vld [vmem:[#allocation2 + $0x8c8] sm:$0xff]
      %v3392 = vld [vmem:[#allocation2 + $0x8d0] sm:$0xff]
      %v3393 = vld [vmem:[#allocation2 + $0x8d8] sm:$0xff]
      %v3394 = vld [vmem:[#allocation2 + $0x8e0] sm:$0xff]
      %v3395 = vld [vmem:[#allocation2 + $0x8e8] sm:$0xff]
      %v3396 = vld [vmem:[#allocation2 + $0x8f0] sm:$0xff]
      %v3397 = vld [vmem:[#allocation2 + $0x8f8] sm:$0xff]
      %v3398 = vld [vmem:[%s3] sm:$0xff]
      %v3399 = vld [vmem:[%s3 + $0x8] sm:$0xff]
      %v3400 = vld [vmem:[%s3 + $0x10] sm:$0xff]
      %v3401 = vld [vmem:[%s3 + $0x18] sm:$0xff]
      %v3402 = vld [vmem:[%s3 + $0x20] sm:$0xff]
      %v3403 = vld [vmem:[%s3 + $0x28] sm:$0xff]
      %v3404 = vld [vmem:[%s3 + $0x30] sm:$0xff]
      %v3405 = vld [vmem:[%s3 + $0x38] sm:$0xff]
      %v3406 = vld [vmem:[%s3 + $0x40] sm:$0xff]
      %v3407 = vld [vmem:[%s3 + $0x48] sm:$0xff]
      %v3408 = vld [vmem:[%s3 + $0x50] sm:$0xff]
      %v3409 = vld [vmem:[%s3 + $0x58] sm:$0xff]
      %v3410 = vld [vmem:[%s3 + $0x60] sm:$0xff]
      %v3411 = vld [vmem:[%s3 + $0x68] sm:$0xff]
      %v3412 = vld [vmem:[%s3 + $0x70] sm:$0xff]
      %v3413 = vld [vmem:[%s3 + $0x78] sm:$0xff]
      %v3414 = vld [vmem:[%s3 + $0x80] sm:$0xff]
      %v3415 = vld [vmem:[%s3 + $0x88] sm:$0xff]
      %v3416 = vld [vmem:[%s3 + $0x90] sm:$0xff]
      %v3417 = vld [vmem:[%s3 + $0x98] sm:$0xff]
      %v3418 = vld [vmem:[%s3 + $0xa0] sm:$0xff]
      %v3419 = vld [vmem:[%s3 + $0xa8] sm:$0xff]
      %v3420 = vld [vmem:[%s3 + $0xb0] sm:$0xff]
      %v3421 = vld [vmem:[%s3 + $0xb8] sm:$0xff]
      %v3422 = vld [vmem:[%s3 + $0xc0] sm:$0xff]
      %v3423 = vld [vmem:[%s3 + $0xc8] sm:$0xff]
      %v3424 = vld [vmem:[%s3 + $0xd0] sm:$0xff]
      %v3425 = vld [vmem:[%s3 + $0xd8] sm:$0xff]
      %v3426 = vld [vmem:[%s3 + $0xe0] sm:$0xff]
      %v3427 = vld [vmem:[%s3 + $0xe8] sm:$0xff]
      %v3428 = vld [vmem:[%s3 + $0xf0] sm:$0xff]
      %v3429 = vld [vmem:[%s3 + $0xf8] sm:$0xff]
      %v3430 = vld [vmem:[%s3 + $0x100] sm:$0xff]
      %v3431 = vld [vmem:[%s3 + $0x108] sm:$0xff]
      %v3432 = vld [vmem:[%s3 + $0x110] sm:$0xff]
      %v3433 = vld [vmem:[%s3 + $0x118] sm:$0xff]
      %v3434 = vld [vmem:[%s3 + $0x120] sm:$0xff]
      %v3435 = vld [vmem:[%s3 + $0x128] sm:$0xff]
      %v3436 = vld [vmem:[%s3 + $0x130] sm:$0xff]
      %v3437 = vld [vmem:[%s3 + $0x138] sm:$0xff]
      %v3438 = vld [vmem:[%s3 + $0x140] sm:$0xff]
      %v3439 = vld [vmem:[%s3 + $0x148] sm:$0xff]
      %v3440 = vld [vmem:[%s3 + $0x150] sm:$0xff]
      %v3441 = vld [vmem:[%s3 + $0x158] sm:$0xff]
      %v3442 = vld [vmem:[%s3 + $0x160] sm:$0xff]
      %v3443 = vld [vmem:[%s3 + $0x168] sm:$0xff]
      %v3444 = vld [vmem:[%s3 + $0x170] sm:$0xff]
      %v3445 = vld [vmem:[%s3 + $0x178] sm:$0xff]
      %v3446 = vld [vmem:[%s3 + $0x180] sm:$0xff]
      %v3447 = vld [vmem:[%s3 + $0x188] sm:$0xff]
      %v3448 = vld [vmem:[%s3 + $0x190] sm:$0xff]
      %v3449 = vld [vmem:[%s3 + $0x198] sm:$0xff]
      %v3450 = vld [vmem:[%s3 + $0x1a0] sm:$0xff]
      %v3451 = vld [vmem:[%s3 + $0x1a8] sm:$0xff]
      %v3452 = vld [vmem:[%s3 + $0x1b0] sm:$0xff]
      %v3453 = vld [vmem:[%s3 + $0x1b8] sm:$0xff]
      %v3454 = vld [vmem:[%s3 + $0x1c0] sm:$0xff]
      %v3455 = vld [vmem:[%s3 + $0x1c8] sm:$0xff]
      %v3456 = vld [vmem:[%s3 + $0x1d0] sm:$0xff]
      %v3457 = vld [vmem:[%s3 + $0x1d8] sm:$0xff]
      %v3458 = vld [vmem:[%s3 + $0x1e0] sm:$0xff]
      %v3459 = vld [vmem:[%s3 + $0x1e8] sm:$0xff]
      %v3460 = vld [vmem:[%s3 + $0x1f0] sm:$0xff]
      %v3461 = vld [vmem:[%s3 + $0x1f8] sm:$0xff]
      %v3462 = vld [vmem:[%s3 + $0x200] sm:$0xff]
      %v3463 = vld [vmem:[%s3 + $0x208] sm:$0xff]
      %v3464 = vld [vmem:[%s3 + $0x210] sm:$0xff]
      %v3465 = vld [vmem:[%s3 + $0x218] sm:$0xff]
      %v3466 = vld [vmem:[%s3 + $0x220] sm:$0xff]
      %v3467 = vld [vmem:[%s3 + $0x228] sm:$0xff]
      %v3468 = vld [vmem:[%s3 + $0x230] sm:$0xff]
      %v3469 = vld [vmem:[%s3 + $0x238] sm:$0xff]
      %v3470 = vld [vmem:[%s3 + $0x240] sm:$0xff]
      %v3471 = vld [vmem:[%s3 + $0x248] sm:$0xff]
      %v3472 = vld [vmem:[%s3 + $0x250] sm:$0xff]
      %v3473 = vld [vmem:[%s3 + $0x258] sm:$0xff]
      %v3474 = vld [vmem:[%s3 + $0x260] sm:$0xff]
      %v3475 = vld [vmem:[%s3 + $0x268] sm:$0xff]
      %v3476 = vld [vmem:[%s3 + $0x270] sm:$0xff]
      %v3477 = vld [vmem:[%s3 + $0x278] sm:$0xff]
      %v3478 = vld [vmem:[%s3 + $0x280] sm:$0xff]
      %v3479 = vld [vmem:[%s3 + $0x288] sm:$0xff]
      %v3480 = vld [vmem:[%s3 + $0x290] sm:$0xff]
      %v3481 = vld [vmem:[%s3 + $0x298] sm:$0xff]
      %v3482 = vld [vmem:[%s3 + $0x2a0] sm:$0xff]
      %v3483 = vld [vmem:[%s3 + $0x2a8] sm:$0xff]
      %v3484 = vld [vmem:[%s3 + $0x2b0] sm:$0xff]
      %v3485 = vld [vmem:[%s3 + $0x2b8] sm:$0xff]
      %v3486 = vld [vmem:[%s3 + $0x2c0] sm:$0xff]
      %v3487 = vld [vmem:[%s3 + $0x2c8] sm:$0xff]
      %v3488 = vld [vmem:[%s3 + $0x2d0] sm:$0xff]
      %v3489 = vld [vmem:[%s3 + $0x2d8] sm:$0xff]
      %v3490 = vld [vmem:[%s3 + $0x2e0] sm:$0xff]
      %v3491 = vld [vmem:[%s3 + $0x2e8] sm:$0xff]
      %v3492 = vld [vmem:[%s3 + $0x2f0] sm:$0xff]
      %v3493 = vld [vmem:[%s3 + $0x2f8] sm:$0xff]
      %v3494 = vld [vmem:[%s3 + $0x300] sm:$0xff]
      %v3495 = vld [vmem:[%s3 + $0x308] sm:$0xff]
      %v3496 = vld [vmem:[%s3 + $0x310] sm:$0xff]
      %v3497 = vld [vmem:[%s3 + $0x318] sm:$0xff]
      %v3498 = vld [vmem:[%s3 + $0x320] sm:$0xff]
      %v3499 = vld [vmem:[%s3 + $0x328] sm:$0xff]
      %v3500 = vld [vmem:[%s3 + $0x330] sm:$0xff]
      %v3501 = vld [vmem:[%s3 + $0x338] sm:$0xff]
      %v3502 = vld [vmem:[%s3 + $0x340] sm:$0xff]
      %v3503 = vld [vmem:[%s3 + $0x348] sm:$0xff]
      %v3504 = vld [vmem:[%s3 + $0x350] sm:$0xff]
      %v3505 = vld [vmem:[%s3 + $0x358] sm:$0xff]
      %v3506 = vld [vmem:[%s3 + $0x360] sm:$0xff]
      %v3507 = vld [vmem:[%s3 + $0x368] sm:$0xff]
      %v3508 = vld [vmem:[%s3 + $0x370] sm:$0xff]
      %v3509 = vld [vmem:[%s3 + $0x378] sm:$0xff]
      %v3510 = vld [vmem:[%s3 + $0x380] sm:$0xff]
      %v3511 = vld [vmem:[%s3 + $0x388] sm:$0xff]
      %v3512 = vld [vmem:[%s3 + $0x390] sm:$0xff]
      %v3513 = vld [vmem:[%s3 + $0x398] sm:$0xff]
      %v3514 = vld [vmem:[%s3 + $0x3a0] sm:$0xff]
      %v3515 = vld [vmem:[%s3 + $0x3a8] sm:$0xff]
      %v3516 = vld [vmem:[%s3 + $0x3b0] sm:$0xff]
      %v3517 = vld [vmem:[%s3 + $0x3b8] sm:$0xff]
      %v3518 = vld [vmem:[%s3 + $0x3c0] sm:$0xff]
      %v3519 = vld [vmem:[%s3 + $0x3c8] sm:$0xff]
      %v3520 = vld [vmem:[%s3 + $0x3d0] sm:$0xff]
      %v3521 = vld [vmem:[%s3 + $0x3d8] sm:$0xff]
      %v3522 = vld [vmem:[%s3 + $0x3e0] sm:$0xff]
      %v3523 = vld [vmem:[%s3 + $0x3e8] sm:$0xff]
      %v3524 = vld [vmem:[%s3 + $0x3f0] sm:$0xff]
      %v3525 = vld [vmem:[%s3 + $0x3f8] sm:$0xff]
      %v3526 = vld [vmem:[%s3 + $0x400] sm:$0xff]
      %v3527 = vld [vmem:[%s3 + $0x408] sm:$0xff]
      %v3528 = vld [vmem:[%s3 + $0x410] sm:$0xff]
      %v3529 = vld [vmem:[%s3 + $0x418] sm:$0xff]
      %v3530 = vld [vmem:[%s3 + $0x420] sm:$0xff]
      %v3531 = vld [vmem:[%s3 + $0x428] sm:$0xff]
      %v3532 = vld [vmem:[%s3 + $0x430] sm:$0xff]
      %v3533 = vld [vmem:[%s3 + $0x438] sm:$0xff]
      %v3534 = vld [vmem:[%s3 + $0x440] sm:$0xff]
      %v3535 = vld [vmem:[%s3 + $0x448] sm:$0xff]
      %v3536 = vld [vmem:[%s3 + $0x450] sm:$0xff]
      %v3537 = vld [vmem:[%s3 + $0x458] sm:$0xff]
      %v3538 = vld [vmem:[%s3 + $0x460] sm:$0xff]
      %v3539 = vld [vmem:[%s3 + $0x468] sm:$0xff]
      %v3540 = vld [vmem:[%s3 + $0x470] sm:$0xff]
      %v3541 = vld [vmem:[%s3 + $0x478] sm:$0xff]
      %3542 = vmatpush.msra.mxu0 %v3413
      %3543 = vmatpush.msra.mxu0 %v3412
      %3544 = vmatpush.msra.mxu0 %v3411
      %3545 = vmatpush.msra.mxu0 %v3410
      %3546 = vmatpush.msra.mxu0 %v3409
      %3547 = vmatpush.msra.mxu0 %v3408
      %3548 = vmatpush.msra.mxu0 %v3407
      %3549 = vmatpush.msra.mxu0 %v3406
      %3550 = vmatpush.msra.mxu0 %v3405
      %3551 = vmatpush.msra.mxu0 %v3404
      %3552 = vmatpush.msra.mxu0 %v3403
      %3553 = vmatpush.msra.mxu0 %v3402
      %3554 = vmatpush.msra.mxu0 %v3401
      %3555 = vmatpush.msra.mxu0 %v3400
      %3556 = vmatpush.msra.mxu0 %v3399
      %3557 = vmatpush.msra.mxu0 %v3398
      %3558 = vmatmul.f32.gmra.mxu0 %v3110
      %v3559 = vpop.f32.mrf.mxu0
      %v3560 = vadd.f32 0.0, %v3559
      %3561 = vmatmul.f32.gmra.mxu0 %v3119
      %v3562 = vpop.f32.mrf.mxu0
      %v3563 = vadd.f32 0.0, %v3562
      %3564 = vmatmul.f32.gmra.mxu0 %v3128
      %v3565 = vpop.f32.mrf.mxu0
      %v3566 = vadd.f32 0.0, %v3565
      %3567 = vmatmul.f32.gmra.mxu0 %v3137
      %v3568 = vpop.f32.mrf.mxu0
      %v3569 = vadd.f32 0.0, %v3568
      %3570 = vmatmul.f32.gmra.mxu0 %v3146
      %v3571 = vpop.f32.mrf.mxu0
      %v3572 = vadd.f32 0.0, %v3571
      %3573 = vmatmul.f32.gmra.mxu0 %v3155
      %v3574 = vpop.f32.mrf.mxu0
      %v3575 = vadd.f32 0.0, %v3574
      %3576 = vmatmul.f32.gmra.mxu0 %v3164
      %v3577 = vpop.f32.mrf.mxu0
      %v3578 = vadd.f32 0.0, %v3577
      %3579 = vmatmul.f32.gmra.mxu0 %v3173
      %v3580 = vpop.f32.mrf.mxu0
      %v3581 = vadd.f32 0.0, %v3580
      %3582 = vmatmul.f32.gmra.mxu0 %v3182
      %v3583 = vpop.f32.mrf.mxu0
      %v3584 = vadd.f32 0.0, %v3583
      %3585 = vmatmul.f32.gmra.mxu0 %v3191
      %v3586 = vpop.f32.mrf.mxu0
      %v3587 = vadd.f32 0.0, %v3586
      %3588 = vmatmul.f32.gmra.mxu0 %v3200
      %v3589 = vpop.f32.mrf.mxu0
      %v3590 = vadd.f32 0.0, %v3589
      %3591 = vmatmul.f32.gmra.mxu0 %v3209
      %v3592 = vpop.f32.mrf.mxu0
      %v3593 = vadd.f32 0.0, %v3592
      %3594 = vmatmul.f32.gmra.mxu0 %v3218
      %v3595 = vpop.f32.mrf.mxu0
      %v3596 = vadd.f32 0.0, %v3595
      %3597 = vmatmul.f32.gmra.mxu0 %v3227
      %v3598 = vpop.f32.mrf.mxu0
      %v3599 = vadd.f32 0.0, %v3598
      %3600 = vmatmul.f32.gmra.mxu0 %v3236
      %v3601 = vpop.f32.mrf.mxu0
      %v3602 = vadd.f32 0.0, %v3601
      %3603 = vmatmul.f32.gmra.mxu0 %v3245
      %v3604 = vpop.f32.mrf.mxu0
      %v3605 = vadd.f32 0.0, %v3604
      %3606 = vmatmul.f32.gmra.mxu0 %v3254
      %v3607 = vpop.f32.mrf.mxu0
      %v3608 = vadd.f32 0.0, %v3607
      %3609 = vmatmul.f32.gmra.mxu0 %v3263
      %v3610 = vpop.f32.mrf.mxu0
      %v3611 = vadd.f32 0.0, %v3610
      %3612 = vmatmul.f32.gmra.mxu0 %v3272
      %v3613 = vpop.f32.mrf.mxu0
      %v3614 = vadd.f32 0.0, %v3613
      %3615 = vmatmul.f32.gmra.mxu0 %v3281
      %v3616 = vpop.f32.mrf.mxu0
      %v3617 = vadd.f32 0.0, %v3616
      %3618 = vmatmul.f32.gmra.mxu0 %v3290
      %v3619 = vpop.f32.mrf.mxu0
      %v3620 = vadd.f32 0.0, %v3619
      %3621 = vmatmul.f32.gmra.mxu0 %v3299
      %v3622 = vpop.f32.mrf.mxu0
      %v3623 = vadd.f32 0.0, %v3622
      %3624 = vmatmul.f32.gmra.mxu0 %v3308
      %v3625 = vpop.f32.mrf.mxu0
      %v3626 = vadd.f32 0.0, %v3625
      %3627 = vmatmul.f32.gmra.mxu0 %v3317
      %v3628 = vpop.f32.mrf.mxu0
      %v3629 = vadd.f32 0.0, %v3628
      %3630 = vmatmul.f32.gmra.mxu0 %v3326
      %v3631 = vpop.f32.mrf.mxu0
      %v3632 = vadd.f32 0.0, %v3631
      %3633 = vmatmul.f32.gmra.mxu0 %v3335
      %v3634 = vpop.f32.mrf.mxu0
      %v3635 = vadd.f32 0.0, %v3634
      %3636 = vmatmul.f32.gmra.mxu0 %v3344
      %v3637 = vpop.f32.mrf.mxu0
      %v3638 = vadd.f32 0.0, %v3637
      %3639 = vmatmul.f32.gmra.mxu0 %v3353
      %v3640 = vpop.f32.mrf.mxu0
      %v3641 = vadd.f32 0.0, %v3640
      %3642 = vmatmul.f32.gmra.mxu0 %v3362
      %v3643 = vpop.f32.mrf.mxu0
      %v3644 = vadd.f32 0.0, %v3643
      %3645 = vmatmul.f32.gmra.mxu0 %v3371
      %v3646 = vpop.f32.mrf.mxu0
      %v3647 = vadd.f32 0.0, %v3646
      %3648 = vmatmul.f32.gmra.mxu0 %v3380
      %v3649 = vpop.f32.mrf.mxu0
      %v3650 = vadd.f32 0.0, %v3649
      %3651 = vmatmul.f32.gmra.mxu0 %v3389
      %v3652 = vpop.f32.mrf.mxu0
      %v3653 = vadd.f32 0.0, %v3652
      %3654 = vdwg.mxu0
      %3655 = vmatpush.msra.mxu0 %v3429
      %3656 = vmatpush.msra.mxu0 %v3428
      %3657 = vmatpush.msra.mxu0 %v3427
      %3658 = vmatpush.msra.mxu0 %v3426
      %3659 = vmatpush.msra.mxu0 %v3425
      %3660 = vmatpush.msra.mxu0 %v3424
      %3661 = vmatpush.msra.mxu0 %v3423
      %3662 = vmatpush.msra.mxu0 %v3422
      %3663 = vmatpush.msra.mxu0 %v3421
      %3664 = vmatpush.msra.mxu0 %v3420
      %3665 = vmatpush.msra.mxu0 %v3419
      %3666 = vmatpush.msra.mxu0 %v3418
      %3667 = vmatpush.msra.mxu0 %v3417
      %3668 = vmatpush.msra.mxu0 %v3416
      %3669 = vmatpush.msra.mxu0 %v3415
      %3670 = vmatpush.msra.mxu0 %v3414
      %3671 = vmatmul.f32.gmra.mxu0 %v3111
      %v3672 = vpop.f32.mrf.mxu0
      %v3673 = vadd.f32 %v3560, %v3672
      %3674 = vmatmul.f32.gmra.mxu0 %v3120
      %v3675 = vpop.f32.mrf.mxu0
      %v3676 = vadd.f32 %v3563, %v3675
      %3677 = vmatmul.f32.gmra.mxu0 %v3129
      %v3678 = vpop.f32.mrf.mxu0
      %v3679 = vadd.f32 %v3566, %v3678
      %3680 = vmatmul.f32.gmra.mxu0 %v3138
      %v3681 = vpop.f32.mrf.mxu0
      %v3682 = vadd.f32 %v3569, %v3681
      %3683 = vmatmul.f32.gmra.mxu0 %v3147
      %v3684 = vpop.f32.mrf.mxu0
      %v3685 = vadd.f32 %v3572, %v3684
      %3686 = vmatmul.f32.gmra.mxu0 %v3156
      %v3687 = vpop.f32.mrf.mxu0
      %v3688 = vadd.f32 %v3575, %v3687
      %3689 = vmatmul.f32.gmra.mxu0 %v3165
      %v3690 = vpop.f32.mrf.mxu0
      %v3691 = vadd.f32 %v3578, %v3690
      %3692 = vmatmul.f32.gmra.mxu0 %v3174
      %v3693 = vpop.f32.mrf.mxu0
      %v3694 = vadd.f32 %v3581, %v3693
      %3695 = vmatmul.f32.gmra.mxu0 %v3183
      %v3696 = vpop.f32.mrf.mxu0
      %v3697 = vadd.f32 %v3584, %v3696
      %3698 = vmatmul.f32.gmra.mxu0 %v3192
      %v3699 = vpop.f32.mrf.mxu0
      %v3700 = vadd.f32 %v3587, %v3699
      %3701 = vmatmul.f32.gmra.mxu0 %v3201
      %v3702 = vpop.f32.mrf.mxu0
      %v3703 = vadd.f32 %v3590, %v3702
      %3704 = vmatmul.f32.gmra.mxu0 %v3210
      %v3705 = vpop.f32.mrf.mxu0
      %v3706 = vadd.f32 %v3593, %v3705
      %3707 = vmatmul.f32.gmra.mxu0 %v3219
      %v3708 = vpop.f32.mrf.mxu0
      %v3709 = vadd.f32 %v3596, %v3708
      %3710 = vmatmul.f32.gmra.mxu0 %v3228
      %v3711 = vpop.f32.mrf.mxu0
      %v3712 = vadd.f32 %v3599, %v3711
      %3713 = vmatmul.f32.gmra.mxu0 %v3237
      %v3714 = vpop.f32.mrf.mxu0
      %v3715 = vadd.f32 %v3602, %v3714
      %3716 = vmatmul.f32.gmra.mxu0 %v3246
      %v3717 = vpop.f32.mrf.mxu0
      %v3718 = vadd.f32 %v3605, %v3717
      %3719 = vmatmul.f32.gmra.mxu0 %v3255
      %v3720 = vpop.f32.mrf.mxu0
      %v3721 = vadd.f32 %v3608, %v3720
      %3722 = vmatmul.f32.gmra.mxu0 %v3264
      %v3723 = vpop.f32.mrf.mxu0
      %v3724 = vadd.f32 %v3611, %v3723
      %3725 = vmatmul.f32.gmra.mxu0 %v3273
      %v3726 = vpop.f32.mrf.mxu0
      %v3727 = vadd.f32 %v3614, %v3726
      %3728 = vmatmul.f32.gmra.mxu0 %v3282
      %v3729 = vpop.f32.mrf.mxu0
      %v3730 = vadd.f32 %v3617, %v3729
      %3731 = vmatmul.f32.gmra.mxu0 %v3291
      %v3732 = vpop.f32.mrf.mxu0
      %v3733 = vadd.f32 %v3620, %v3732
      %3734 = vmatmul.f32.gmra.mxu0 %v3300
      %v3735 = vpop.f32.mrf.mxu0
      %v3736 = vadd.f32 %v3623, %v3735
      %3737 = vmatmul.f32.gmra.mxu0 %v3309
      %v3738 = vpop.f32.mrf.mxu0
      %v3739 = vadd.f32 %v3626, %v3738
      %3740 = vmatmul.f32.gmra.mxu0 %v3318
      %v3741 = vpop.f32.mrf.mxu0
      %v3742 = vadd.f32 %v3629, %v3741
      %3743 = vmatmul.f32.gmra.mxu0 %v3327
      %v3744 = vpop.f32.mrf.mxu0
      %v3745 = vadd.f32 %v3632, %v3744
      %3746 = vmatmul.f32.gmra.mxu0 %v3336
      %v3747 = vpop.f32.mrf.mxu0
      %v3748 = vadd.f32 %v3635, %v3747
      %3749 = vmatmul.f32.gmra.mxu0 %v3345
      %v3750 = vpop.f32.mrf.mxu0
      %v3751 = vadd.f32 %v3638, %v3750
      %3752 = vmatmul.f32.gmra.mxu0 %v3354
      %v3753 = vpop.f32.mrf.mxu0
      %v3754 = vadd.f32 %v3641, %v3753
      %3755 = vmatmul.f32.gmra.mxu0 %v3363
      %v3756 = vpop.f32.mrf.mxu0
      %v3757 = vadd.f32 %v3644, %v3756
      %3758 = vmatmul.f32.gmra.mxu0 %v3372
      %v3759 = vpop.f32.mrf.mxu0
      %v3760 = vadd.f32 %v3647, %v3759
      %3761 = vmatmul.f32.gmra.mxu0 %v3381
      %v3762 = vpop.f32.mrf.mxu0
      %v3763 = vadd.f32 %v3650, %v3762
      %3764 = vmatmul.f32.gmra.mxu0 %v3390
      %v3765 = vpop.f32.mrf.mxu0
      %v3766 = vadd.f32 %v3653, %v3765
      %3767 = vdwg.mxu0
      %3768 = vmatpush.msra.mxu0 %v3445
      %3769 = vmatpush.msra.mxu0 %v3444
      %3770 = vmatpush.msra.mxu0 %v3443
      %3771 = vmatpush.msra.mxu0 %v3442
      %3772 = vmatpush.msra.mxu0 %v3441
      %3773 = vmatpush.msra.mxu0 %v3440
      %3774 = vmatpush.msra.mxu0 %v3439
      %3775 = vmatpush.msra.mxu0 %v3438
      %3776 = vmatpush.msra.mxu0 %v3437
      %3777 = vmatpush.msra.mxu0 %v3436
      %3778 = vmatpush.msra.mxu0 %v3435
      %3779 = vmatpush.msra.mxu0 %v3434
      %3780 = vmatpush.msra.mxu0 %v3433
      %3781 = vmatpush.msra.mxu0 %v3432
      %3782 = vmatpush.msra.mxu0 %v3431
      %3783 = vmatpush.msra.mxu0 %v3430
      %3784 = vmatmul.f32.gmra.mxu0 %v3112
      %v3785 = vpop.f32.mrf.mxu0
      %v3786 = vadd.f32 %v3673, %v3785
      %3787 = vmatmul.f32.gmra.mxu0 %v3121
      %v3788 = vpop.f32.mrf.mxu0
      %v3789 = vadd.f32 %v3676, %v3788
      %3790 = vmatmul.f32.gmra.mxu0 %v3130
      %v3791 = vpop.f32.mrf.mxu0
      %v3792 = vadd.f32 %v3679, %v3791
      %3793 = vmatmul.f32.gmra.mxu0 %v3139
      %v3794 = vpop.f32.mrf.mxu0
      %v3795 = vadd.f32 %v3682, %v3794
      %3796 = vmatmul.f32.gmra.mxu0 %v3148
      %v3797 = vpop.f32.mrf.mxu0
      %v3798 = vadd.f32 %v3685, %v3797
      %3799 = vmatmul.f32.gmra.mxu0 %v3157
      %v3800 = vpop.f32.mrf.mxu0
      %v3801 = vadd.f32 %v3688, %v3800
      %3802 = vmatmul.f32.gmra.mxu0 %v3166
      %v3803 = vpop.f32.mrf.mxu0
      %v3804 = vadd.f32 %v3691, %v3803
      %3805 = vmatmul.f32.gmra.mxu0 %v3175
      %v3806 = vpop.f32.mrf.mxu0
      %v3807 = vadd.f32 %v3694, %v3806
      %3808 = vmatmul.f32.gmra.mxu0 %v3184
      %v3809 = vpop.f32.mrf.mxu0
      %v3810 = vadd.f32 %v3697, %v3809
      %3811 = vmatmul.f32.gmra.mxu0 %v3193
      %v3812 = vpop.f32.mrf.mxu0
      %v3813 = vadd.f32 %v3700, %v3812
      %3814 = vmatmul.f32.gmra.mxu0 %v3202
      %v3815 = vpop.f32.mrf.mxu0
      %v3816 = vadd.f32 %v3703, %v3815
      %3817 = vmatmul.f32.gmra.mxu0 %v3211
      %v3818 = vpop.f32.mrf.mxu0
      %v3819 = vadd.f32 %v3706, %v3818
      %3820 = vmatmul.f32.gmra.mxu0 %v3220
      %v3821 = vpop.f32.mrf.mxu0
      %v3822 = vadd.f32 %v3709, %v3821
      %3823 = vmatmul.f32.gmra.mxu0 %v3229
      %v3824 = vpop.f32.mrf.mxu0
      %v3825 = vadd.f32 %v3712, %v3824
      %3826 = vmatmul.f32.gmra.mxu0 %v3238
      %v3827 = vpop.f32.mrf.mxu0
      %v3828 = vadd.f32 %v3715, %v3827
      %3829 = vmatmul.f32.gmra.mxu0 %v3247
      %v3830 = vpop.f32.mrf.mxu0
      %v3831 = vadd.f32 %v3718, %v3830
      %3832 = vmatmul.f32.gmra.mxu0 %v3256
      %v3833 = vpop.f32.mrf.mxu0
      %v3834 = vadd.f32 %v3721, %v3833
      %3835 = vmatmul.f32.gmra.mxu0 %v3265
      %v3836 = vpop.f32.mrf.mxu0
      %v3837 = vadd.f32 %v3724, %v3836
      %3838 = vmatmul.f32.gmra.mxu0 %v3274
      %v3839 = vpop.f32.mrf.mxu0
      %v3840 = vadd.f32 %v3727, %v3839
      %3841 = vmatmul.f32.gmra.mxu0 %v3283
      %v3842 = vpop.f32.mrf.mxu0
      %v3843 = vadd.f32 %v3730, %v3842
      %3844 = vmatmul.f32.gmra.mxu0 %v3292
      %v3845 = vpop.f32.mrf.mxu0
      %v3846 = vadd.f32 %v3733, %v3845
      %3847 = vmatmul.f32.gmra.mxu0 %v3301
      %v3848 = vpop.f32.mrf.mxu0
      %v3849 = vadd.f32 %v3736, %v3848
      %3850 = vmatmul.f32.gmra.mxu0 %v3310
      %v3851 = vpop.f32.mrf.mxu0
      %v3852 = vadd.f32 %v3739, %v3851
      %3853 = vmatmul.f32.gmra.mxu0 %v3319
      %v3854 = vpop.f32.mrf.mxu0
      %v3855 = vadd.f32 %v3742, %v3854
      %3856 = vmatmul.f32.gmra.mxu0 %v3328
      %v3857 = vpop.f32.mrf.mxu0
      %v3858 = vadd.f32 %v3745, %v3857
      %3859 = vmatmul.f32.gmra.mxu0 %v3337
      %v3860 = vpop.f32.mrf.mxu0
      %v3861 = vadd.f32 %v3748, %v3860
      %3862 = vmatmul.f32.gmra.mxu0 %v3346
      %v3863 = vpop.f32.mrf.mxu0
      %v3864 = vadd.f32 %v3751, %v3863
      %3865 = vmatmul.f32.gmra.mxu0 %v3355
      %v3866 = vpop.f32.mrf.mxu0
      %v3867 = vadd.f32 %v3754, %v3866
      %3868 = vmatmul.f32.gmra.mxu0 %v3364
      %v3869 = vpop.f32.mrf.mxu0
      %v3870 = vadd.f32 %v3757, %v3869
      %3871 = vmatmul.f32.gmra.mxu0 %v3373
      %v3872 = vpop.f32.mrf.mxu0
      %v3873 = vadd.f32 %v3760, %v3872
      %3874 = vmatmul.f32.gmra.mxu0 %v3382
      %v3875 = vpop.f32.mrf.mxu0
      %v3876 = vadd.f32 %v3763, %v3875
      %3877 = vmatmul.f32.gmra.mxu0 %v3391
      %v3878 = vpop.f32.mrf.mxu0
      %v3879 = vadd.f32 %v3766, %v3878
      %3880 = vdwg.mxu0
      %3881 = vmatpush.msra.mxu0 %v3461
      %3882 = vmatpush.msra.mxu0 %v3460
      %3883 = vmatpush.msra.mxu0 %v3459
      %3884 = vmatpush.msra.mxu0 %v3458
      %3885 = vmatpush.msra.mxu0 %v3457
      %3886 = vmatpush.msra.mxu0 %v3456
      %3887 = vmatpush.msra.mxu0 %v3455
      %3888 = vmatpush.msra.mxu0 %v3454
      %3889 = vmatpush.msra.mxu0 %v3453
      %3890 = vmatpush.msra.mxu0 %v3452
      %3891 = vmatpush.msra.mxu0 %v3451
      %3892 = vmatpush.msra.mxu0 %v3450
      %3893 = vmatpush.msra.mxu0 %v3449
      %3894 = vmatpush.msra.mxu0 %v3448
      %3895 = vmatpush.msra.mxu0 %v3447
      %3896 = vmatpush.msra.mxu0 %v3446
      %3897 = vmatmul.f32.gmra.mxu0 %v3113
      %v3898 = vpop.f32.mrf.mxu0
      %v3899 = vadd.f32 %v3786, %v3898
      %3900 = vmatmul.f32.gmra.mxu0 %v3122
      %v3901 = vpop.f32.mrf.mxu0
      %v3902 = vadd.f32 %v3789, %v3901
      %3903 = vmatmul.f32.gmra.mxu0 %v3131
      %v3904 = vpop.f32.mrf.mxu0
      %v3905 = vadd.f32 %v3792, %v3904
      %3906 = vmatmul.f32.gmra.mxu0 %v3140
      %v3907 = vpop.f32.mrf.mxu0
      %v3908 = vadd.f32 %v3795, %v3907
      %3909 = vmatmul.f32.gmra.mxu0 %v3149
      %v3910 = vpop.f32.mrf.mxu0
      %v3911 = vadd.f32 %v3798, %v3910
      %3912 = vmatmul.f32.gmra.mxu0 %v3158
      %v3913 = vpop.f32.mrf.mxu0
      %v3914 = vadd.f32 %v3801, %v3913
      %3915 = vmatmul.f32.gmra.mxu0 %v3167
      %v3916 = vpop.f32.mrf.mxu0
      %v3917 = vadd.f32 %v3804, %v3916
      %3918 = vmatmul.f32.gmra.mxu0 %v3176
      %v3919 = vpop.f32.mrf.mxu0
      %v3920 = vadd.f32 %v3807, %v3919
      %3921 = vmatmul.f32.gmra.mxu0 %v3185
      %v3922 = vpop.f32.mrf.mxu0
      %v3923 = vadd.f32 %v3810, %v3922
      %3924 = vmatmul.f32.gmra.mxu0 %v3194
      %v3925 = vpop.f32.mrf.mxu0
      %v3926 = vadd.f32 %v3813, %v3925
      %3927 = vmatmul.f32.gmra.mxu0 %v3203
      %v3928 = vpop.f32.mrf.mxu0
      %v3929 = vadd.f32 %v3816, %v3928
      %3930 = vmatmul.f32.gmra.mxu0 %v3212
      %v3931 = vpop.f32.mrf.mxu0
      %v3932 = vadd.f32 %v3819, %v3931
      %3933 = vmatmul.f32.gmra.mxu0 %v3221
      %v3934 = vpop.f32.mrf.mxu0
      %v3935 = vadd.f32 %v3822, %v3934
      %3936 = vmatmul.f32.gmra.mxu0 %v3230
      %v3937 = vpop.f32.mrf.mxu0
      %v3938 = vadd.f32 %v3825, %v3937
      %3939 = vmatmul.f32.gmra.mxu0 %v3239
      %v3940 = vpop.f32.mrf.mxu0
      %v3941 = vadd.f32 %v3828, %v3940
      %3942 = vmatmul.f32.gmra.mxu0 %v3248
      %v3943 = vpop.f32.mrf.mxu0
      %v3944 = vadd.f32 %v3831, %v3943
      %3945 = vmatmul.f32.gmra.mxu0 %v3257
      %v3946 = vpop.f32.mrf.mxu0
      %v3947 = vadd.f32 %v3834, %v3946
      %3948 = vmatmul.f32.gmra.mxu0 %v3266
      %v3949 = vpop.f32.mrf.mxu0
      %v3950 = vadd.f32 %v3837, %v3949
      %3951 = vmatmul.f32.gmra.mxu0 %v3275
      %v3952 = vpop.f32.mrf.mxu0
      %v3953 = vadd.f32 %v3840, %v3952
      %3954 = vmatmul.f32.gmra.mxu0 %v3284
      %v3955 = vpop.f32.mrf.mxu0
      %v3956 = vadd.f32 %v3843, %v3955
      %3957 = vmatmul.f32.gmra.mxu0 %v3293
      %v3958 = vpop.f32.mrf.mxu0
      %v3959 = vadd.f32 %v3846, %v3958
      %3960 = vmatmul.f32.gmra.mxu0 %v3302
      %v3961 = vpop.f32.mrf.mxu0
      %v3962 = vadd.f32 %v3849, %v3961
      %3963 = vmatmul.f32.gmra.mxu0 %v3311
      %v3964 = vpop.f32.mrf.mxu0
      %v3965 = vadd.f32 %v3852, %v3964
      %3966 = vmatmul.f32.gmra.mxu0 %v3320
      %v3967 = vpop.f32.mrf.mxu0
      %v3968 = vadd.f32 %v3855, %v3967
      %3969 = vmatmul.f32.gmra.mxu0 %v3329
      %v3970 = vpop.f32.mrf.mxu0
      %v3971 = vadd.f32 %v3858, %v3970
      %3972 = vmatmul.f32.gmra.mxu0 %v3338
      %v3973 = vpop.f32.mrf.mxu0
      %v3974 = vadd.f32 %v3861, %v3973
      %3975 = vmatmul.f32.gmra.mxu0 %v3347
      %v3976 = vpop.f32.mrf.mxu0
      %v3977 = vadd.f32 %v3864, %v3976
      %3978 = vmatmul.f32.gmra.mxu0 %v3356
      %v3979 = vpop.f32.mrf.mxu0
      %v3980 = vadd.f32 %v3867, %v3979
      %3981 = vmatmul.f32.gmra.mxu0 %v3365
      %v3982 = vpop.f32.mrf.mxu0
      %v3983 = vadd.f32 %v3870, %v3982
      %3984 = vmatmul.f32.gmra.mxu0 %v3374
      %v3985 = vpop.f32.mrf.mxu0
      %v3986 = vadd.f32 %v3873, %v3985
      %3987 = vmatmul.f32.gmra.mxu0 %v3383
      %v3988 = vpop.f32.mrf.mxu0
      %v3989 = vadd.f32 %v3876, %v3988
      %3990 = vmatmul.f32.gmra.mxu0 %v3392
      %v3991 = vpop.f32.mrf.mxu0
      %v3992 = vadd.f32 %v3879, %v3991
      %3993 = vdwg.mxu0
      %3994 = vmatpush.msra.mxu0 %v3477
      %3995 = vmatpush.msra.mxu0 %v3476
      %3996 = vmatpush.msra.mxu0 %v3475
      %3997 = vmatpush.msra.mxu0 %v3474
      %3998 = vmatpush.msra.mxu0 %v3473
      %3999 = vmatpush.msra.mxu0 %v3472
      %4000 = vmatpush.msra.mxu0 %v3471
      %4001 = vmatpush.msra.mxu0 %v3470
      %4002 = vmatpush.msra.mxu0 %v3469
      %4003 = vmatpush.msra.mxu0 %v3468
      %4004 = vmatpush.msra.mxu0 %v3467
      %4005 = vmatpush.msra.mxu0 %v3466
      %4006 = vmatpush.msra.mxu0 %v3465
      %4007 = vmatpush.msra.mxu0 %v3464
      %4008 = vmatpush.msra.mxu0 %v3463
      %4009 = vmatpush.msra.mxu0 %v3462
      %4010 = vmatmul.f32.gmra.mxu0 %v3114
      %v4011 = vpop.f32.mrf.mxu0
      %v4012 = vadd.f32 %v3899, %v4011
      %4013 = vmatmul.f32.gmra.mxu0 %v3123
      %v4014 = vpop.f32.mrf.mxu0
      %v4015 = vadd.f32 %v3902, %v4014
      %4016 = vmatmul.f32.gmra.mxu0 %v3132
      %v4017 = vpop.f32.mrf.mxu0
      %v4018 = vadd.f32 %v3905, %v4017
      %4019 = vmatmul.f32.gmra.mxu0 %v3141
      %v4020 = vpop.f32.mrf.mxu0
      %v4021 = vadd.f32 %v3908, %v4020
      %4022 = vmatmul.f32.gmra.mxu0 %v3150
      %v4023 = vpop.f32.mrf.mxu0
      %v4024 = vadd.f32 %v3911, %v4023
      %4025 = vmatmul.f32.gmra.mxu0 %v3159
      %v4026 = vpop.f32.mrf.mxu0
      %v4027 = vadd.f32 %v3914, %v4026
      %4028 = vmatmul.f32.gmra.mxu0 %v3168
      %v4029 = vpop.f32.mrf.mxu0
      %v4030 = vadd.f32 %v3917, %v4029
      %4031 = vmatmul.f32.gmra.mxu0 %v3177
      %v4032 = vpop.f32.mrf.mxu0
      %v4033 = vadd.f32 %v3920, %v4032
      %4034 = vmatmul.f32.gmra.mxu0 %v3186
      %v4035 = vpop.f32.mrf.mxu0
      %v4036 = vadd.f32 %v3923, %v4035
      %4037 = vmatmul.f32.gmra.mxu0 %v3195
      %v4038 = vpop.f32.mrf.mxu0
      %v4039 = vadd.f32 %v3926, %v4038
      %4040 = vmatmul.f32.gmra.mxu0 %v3204
      %v4041 = vpop.f32.mrf.mxu0
      %v4042 = vadd.f32 %v3929, %v4041
      %4043 = vmatmul.f32.gmra.mxu0 %v3213
      %v4044 = vpop.f32.mrf.mxu0
      %v4045 = vadd.f32 %v3932, %v4044
      %4046 = vmatmul.f32.gmra.mxu0 %v3222
      %v4047 = vpop.f32.mrf.mxu0
      %v4048 = vadd.f32 %v3935, %v4047
      %4049 = vmatmul.f32.gmra.mxu0 %v3231
      %v4050 = vpop.f32.mrf.mxu0
      %v4051 = vadd.f32 %v3938, %v4050
      %4052 = vmatmul.f32.gmra.mxu0 %v3240
      %v4053 = vpop.f32.mrf.mxu0
      %v4054 = vadd.f32 %v3941, %v4053
      %4055 = vmatmul.f32.gmra.mxu0 %v3249
      %v4056 = vpop.f32.mrf.mxu0
      %v4057 = vadd.f32 %v3944, %v4056
      %4058 = vmatmul.f32.gmra.mxu0 %v3258
      %v4059 = vpop.f32.mrf.mxu0
      %v4060 = vadd.f32 %v3947, %v4059
      %4061 = vmatmul.f32.gmra.mxu0 %v3267
      %v4062 = vpop.f32.mrf.mxu0
      %v4063 = vadd.f32 %v3950, %v4062
      %4064 = vmatmul.f32.gmra.mxu0 %v3276
      %v4065 = vpop.f32.mrf.mxu0
      %v4066 = vadd.f32 %v3953, %v4065
      %4067 = vmatmul.f32.gmra.mxu0 %v3285
      %v4068 = vpop.f32.mrf.mxu0
      %v4069 = vadd.f32 %v3956, %v4068
      %4070 = vmatmul.f32.gmra.mxu0 %v3294
      %v4071 = vpop.f32.mrf.mxu0
      %v4072 = vadd.f32 %v3959, %v4071
      %4073 = vmatmul.f32.gmra.mxu0 %v3303
      %v4074 = vpop.f32.mrf.mxu0
      %v4075 = vadd.f32 %v3962, %v4074
      %4076 = vmatmul.f32.gmra.mxu0 %v3312
      %v4077 = vpop.f32.mrf.mxu0
      %v4078 = vadd.f32 %v3965, %v4077
      %4079 = vmatmul.f32.gmra.mxu0 %v3321
      %v4080 = vpop.f32.mrf.mxu0
      %v4081 = vadd.f32 %v3968, %v4080
      %4082 = vmatmul.f32.gmra.mxu0 %v3330
      %v4083 = vpop.f32.mrf.mxu0
      %v4084 = vadd.f32 %v3971, %v4083
      %4085 = vmatmul.f32.gmra.mxu0 %v3339
      %v4086 = vpop.f32.mrf.mxu0
      %v4087 = vadd.f32 %v3974, %v4086
      %4088 = vmatmul.f32.gmra.mxu0 %v3348
      %v4089 = vpop.f32.mrf.mxu0
      %v4090 = vadd.f32 %v3977, %v4089
      %4091 = vmatmul.f32.gmra.mxu0 %v3357
      %v4092 = vpop.f32.mrf.mxu0
      %v4093 = vadd.f32 %v3980, %v4092
      %4094 = vmatmul.f32.gmra.mxu0 %v3366
      %v4095 = vpop.f32.mrf.mxu0
      %v4096 = vadd.f32 %v3983, %v4095
      %4097 = vmatmul.f32.gmra.mxu0 %v3375
      %v4098 = vpop.f32.mrf.mxu0
      %v4099 = vadd.f32 %v3986, %v4098
      %4100 = vmatmul.f32.gmra.mxu0 %v3384
      %v4101 = vpop.f32.mrf.mxu0
      %v4102 = vadd.f32 %v3989, %v4101
      %4103 = vmatmul.f32.gmra.mxu0 %v3393
      %v4104 = vpop.f32.mrf.mxu0
      %v4105 = vadd.f32 %v3992, %v4104
      %4106 = vdwg.mxu0
      %4107 = vmatpush.msra.mxu0 %v3493
      %4108 = vmatpush.msra.mxu0 %v3492
      %4109 = vmatpush.msra.mxu0 %v3491
      %4110 = vmatpush.msra.mxu0 %v3490
      %4111 = vmatpush.msra.mxu0 %v3489
      %4112 = vmatpush.msra.mxu0 %v3488
      %4113 = vmatpush.msra.mxu0 %v3487
      %4114 = vmatpush.msra.mxu0 %v3486
      %4115 = vmatpush.msra.mxu0 %v3485
      %4116 = vmatpush.msra.mxu0 %v3484
      %4117 = vmatpush.msra.mxu0 %v3483
      %4118 = vmatpush.msra.mxu0 %v3482
      %4119 = vmatpush.msra.mxu0 %v3481
      %4120 = vmatpush.msra.mxu0 %v3480
      %4121 = vmatpush.msra.mxu0 %v3479
      %4122 = vmatpush.msra.mxu0 %v3478
      %4123 = vmatmul.f32.gmra.mxu0 %v3115
      %v4124 = vpop.f32.mrf.mxu0
      %v4125 = vadd.f32 %v4012, %v4124
      %4126 = vmatmul.f32.gmra.mxu0 %v3124
      %v4127 = vpop.f32.mrf.mxu0
      %v4128 = vadd.f32 %v4015, %v4127
      %4129 = vmatmul.f32.gmra.mxu0 %v3133
      %v4130 = vpop.f32.mrf.mxu0
      %v4131 = vadd.f32 %v4018, %v4130
      %4132 = vmatmul.f32.gmra.mxu0 %v3142
      %v4133 = vpop.f32.mrf.mxu0
      %v4134 = vadd.f32 %v4021, %v4133
      %4135 = vmatmul.f32.gmra.mxu0 %v3151
      %v4136 = vpop.f32.mrf.mxu0
      %v4137 = vadd.f32 %v4024, %v4136
      %4138 = vmatmul.f32.gmra.mxu0 %v3160
      %v4139 = vpop.f32.mrf.mxu0
      %v4140 = vadd.f32 %v4027, %v4139
      %4141 = vmatmul.f32.gmra.mxu0 %v3169
      %v4142 = vpop.f32.mrf.mxu0
      %v4143 = vadd.f32 %v4030, %v4142
      %4144 = vmatmul.f32.gmra.mxu0 %v3178
      %v4145 = vpop.f32.mrf.mxu0
      %v4146 = vadd.f32 %v4033, %v4145
      %4147 = vmatmul.f32.gmra.mxu0 %v3187
      %v4148 = vpop.f32.mrf.mxu0
      %v4149 = vadd.f32 %v4036, %v4148
      %4150 = vmatmul.f32.gmra.mxu0 %v3196
      %v4151 = vpop.f32.mrf.mxu0
      %v4152 = vadd.f32 %v4039, %v4151
      %4153 = vmatmul.f32.gmra.mxu0 %v3205
      %v4154 = vpop.f32.mrf.mxu0
      %v4155 = vadd.f32 %v4042, %v4154
      %4156 = vmatmul.f32.gmra.mxu0 %v3214
      %v4157 = vpop.f32.mrf.mxu0
      %v4158 = vadd.f32 %v4045, %v4157
      %4159 = vmatmul.f32.gmra.mxu0 %v3223
      %v4160 = vpop.f32.mrf.mxu0
      %v4161 = vadd.f32 %v4048, %v4160
      %4162 = vmatmul.f32.gmra.mxu0 %v3232
      %v4163 = vpop.f32.mrf.mxu0
      %v4164 = vadd.f32 %v4051, %v4163
      %4165 = vmatmul.f32.gmra.mxu0 %v3241
      %v4166 = vpop.f32.mrf.mxu0
      %v4167 = vadd.f32 %v4054, %v4166
      %4168 = vmatmul.f32.gmra.mxu0 %v3250
      %v4169 = vpop.f32.mrf.mxu0
      %v4170 = vadd.f32 %v4057, %v4169
      %4171 = vmatmul.f32.gmra.mxu0 %v3259
      %v4172 = vpop.f32.mrf.mxu0
      %v4173 = vadd.f32 %v4060, %v4172
      %4174 = vmatmul.f32.gmra.mxu0 %v3268
      %v4175 = vpop.f32.mrf.mxu0
      %v4176 = vadd.f32 %v4063, %v4175
      %4177 = vmatmul.f32.gmra.mxu0 %v3277
      %v4178 = vpop.f32.mrf.mxu0
      %v4179 = vadd.f32 %v4066, %v4178
      %4180 = vmatmul.f32.gmra.mxu0 %v3286
      %v4181 = vpop.f32.mrf.mxu0
      %v4182 = vadd.f32 %v4069, %v4181
      %4183 = vmatmul.f32.gmra.mxu0 %v3295
      %v4184 = vpop.f32.mrf.mxu0
      %v4185 = vadd.f32 %v4072, %v4184
      %4186 = vmatmul.f32.gmra.mxu0 %v3304
      %v4187 = vpop.f32.mrf.mxu0
      %v4188 = vadd.f32 %v4075, %v4187
      %4189 = vmatmul.f32.gmra.mxu0 %v3313
      %v4190 = vpop.f32.mrf.mxu0
      %v4191 = vadd.f32 %v4078, %v4190
      %4192 = vmatmul.f32.gmra.mxu0 %v3322
      %v4193 = vpop.f32.mrf.mxu0
      %v4194 = vadd.f32 %v4081, %v4193
      %4195 = vmatmul.f32.gmra.mxu0 %v3331
      %v4196 = vpop.f32.mrf.mxu0
      %v4197 = vadd.f32 %v4084, %v4196
      %4198 = vmatmul.f32.gmra.mxu0 %v3340
      %v4199 = vpop.f32.mrf.mxu0
      %v4200 = vadd.f32 %v4087, %v4199
      %4201 = vmatmul.f32.gmra.mxu0 %v3349
      %v4202 = vpop.f32.mrf.mxu0
      %v4203 = vadd.f32 %v4090, %v4202
      %4204 = vmatmul.f32.gmra.mxu0 %v3358
      %v4205 = vpop.f32.mrf.mxu0
      %v4206 = vadd.f32 %v4093, %v4205
      %4207 = vmatmul.f32.gmra.mxu0 %v3367
      %v4208 = vpop.f32.mrf.mxu0
      %v4209 = vadd.f32 %v4096, %v4208
      %4210 = vmatmul.f32.gmra.mxu0 %v3376
      %v4211 = vpop.f32.mrf.mxu0
      %v4212 = vadd.f32 %v4099, %v4211
      %4213 = vmatmul.f32.gmra.mxu0 %v3385
      %v4214 = vpop.f32.mrf.mxu0
      %v4215 = vadd.f32 %v4102, %v4214
      %4216 = vmatmul.f32.gmra.mxu0 %v3394
      %v4217 = vpop.f32.mrf.mxu0
      %v4218 = vadd.f32 %v4105, %v4217
      %4219 = vdwg.mxu0
      %4220 = vmatpush.msra.mxu0 %v3509
      %4221 = vmatpush.msra.mxu0 %v3508
      %4222 = vmatpush.msra.mxu0 %v3507
      %4223 = vmatpush.msra.mxu0 %v3506
      %4224 = vmatpush.msra.mxu0 %v3505
      %4225 = vmatpush.msra.mxu0 %v3504
      %4226 = vmatpush.msra.mxu0 %v3503
      %4227 = vmatpush.msra.mxu0 %v3502
      %4228 = vmatpush.msra.mxu0 %v3501
      %4229 = vmatpush.msra.mxu0 %v3500
      %4230 = vmatpush.msra.mxu0 %v3499
      %4231 = vmatpush.msra.mxu0 %v3498
      %4232 = vmatpush.msra.mxu0 %v3497
      %4233 = vmatpush.msra.mxu0 %v3496
      %4234 = vmatpush.msra.mxu0 %v3495
      %4235 = vmatpush.msra.mxu0 %v3494
      %4236 = vmatmul.f32.gmra.mxu0 %v3116
      %v4237 = vpop.f32.mrf.mxu0
      %v4238 = vadd.f32 %v4125, %v4237
      %4239 = vmatmul.f32.gmra.mxu0 %v3125
      %v4240 = vpop.f32.mrf.mxu0
      %v4241 = vadd.f32 %v4128, %v4240
      %4242 = vmatmul.f32.gmra.mxu0 %v3134
      %v4243 = vpop.f32.mrf.mxu0
      %v4244 = vadd.f32 %v4131, %v4243
      %4245 = vmatmul.f32.gmra.mxu0 %v3143
      %v4246 = vpop.f32.mrf.mxu0
      %v4247 = vadd.f32 %v4134, %v4246
      %4248 = vmatmul.f32.gmra.mxu0 %v3152
      %v4249 = vpop.f32.mrf.mxu0
      %v4250 = vadd.f32 %v4137, %v4249
      %4251 = vmatmul.f32.gmra.mxu0 %v3161
      %v4252 = vpop.f32.mrf.mxu0
      %v4253 = vadd.f32 %v4140, %v4252
      %4254 = vmatmul.f32.gmra.mxu0 %v3170
      %v4255 = vpop.f32.mrf.mxu0
      %v4256 = vadd.f32 %v4143, %v4255
      %4257 = vmatmul.f32.gmra.mxu0 %v3179
      %v4258 = vpop.f32.mrf.mxu0
      %v4259 = vadd.f32 %v4146, %v4258
      %4260 = vmatmul.f32.gmra.mxu0 %v3188
      %v4261 = vpop.f32.mrf.mxu0
      %v4262 = vadd.f32 %v4149, %v4261
      %4263 = vmatmul.f32.gmra.mxu0 %v3197
      %v4264 = vpop.f32.mrf.mxu0
      %v4265 = vadd.f32 %v4152, %v4264
      %4266 = vmatmul.f32.gmra.mxu0 %v3206
      %v4267 = vpop.f32.mrf.mxu0
      %v4268 = vadd.f32 %v4155, %v4267
      %4269 = vmatmul.f32.gmra.mxu0 %v3215
      %v4270 = vpop.f32.mrf.mxu0
      %v4271 = vadd.f32 %v4158, %v4270
      %4272 = vmatmul.f32.gmra.mxu0 %v3224
      %v4273 = vpop.f32.mrf.mxu0
      %v4274 = vadd.f32 %v4161, %v4273
      %4275 = vmatmul.f32.gmra.mxu0 %v3233
      %v4276 = vpop.f32.mrf.mxu0
      %v4277 = vadd.f32 %v4164, %v4276
      %4278 = vmatmul.f32.gmra.mxu0 %v3242
      %v4279 = vpop.f32.mrf.mxu0
      %v4280 = vadd.f32 %v4167, %v4279
      %4281 = vmatmul.f32.gmra.mxu0 %v3251
      %v4282 = vpop.f32.mrf.mxu0
      %v4283 = vadd.f32 %v4170, %v4282
      %4284 = vmatmul.f32.gmra.mxu0 %v3260
      %v4285 = vpop.f32.mrf.mxu0
      %v4286 = vadd.f32 %v4173, %v4285
      %4287 = vmatmul.f32.gmra.mxu0 %v3269
      %v4288 = vpop.f32.mrf.mxu0
      %v4289 = vadd.f32 %v4176, %v4288
      %4290 = vmatmul.f32.gmra.mxu0 %v3278
      %v4291 = vpop.f32.mrf.mxu0
      %v4292 = vadd.f32 %v4179, %v4291
      %4293 = vmatmul.f32.gmra.mxu0 %v3287
      %v4294 = vpop.f32.mrf.mxu0
      %v4295 = vadd.f32 %v4182, %v4294
      %4296 = vmatmul.f32.gmra.mxu0 %v3296
      %v4297 = vpop.f32.mrf.mxu0
      %v4298 = vadd.f32 %v4185, %v4297
      %4299 = vmatmul.f32.gmra.mxu0 %v3305
      %v4300 = vpop.f32.mrf.mxu0
      %v4301 = vadd.f32 %v4188, %v4300
      %4302 = vmatmul.f32.gmra.mxu0 %v3314
      %v4303 = vpop.f32.mrf.mxu0
      %v4304 = vadd.f32 %v4191, %v4303
      %4305 = vmatmul.f32.gmra.mxu0 %v3323
      %v4306 = vpop.f32.mrf.mxu0
      %v4307 = vadd.f32 %v4194, %v4306
      %4308 = vmatmul.f32.gmra.mxu0 %v3332
      %v4309 = vpop.f32.mrf.mxu0
      %v4310 = vadd.f32 %v4197, %v4309
      %4311 = vmatmul.f32.gmra.mxu0 %v3341
      %v4312 = vpop.f32.mrf.mxu0
      %v4313 = vadd.f32 %v4200, %v4312
      %4314 = vmatmul.f32.gmra.mxu0 %v3350
      %v4315 = vpop.f32.mrf.mxu0
      %v4316 = vadd.f32 %v4203, %v4315
      %4317 = vmatmul.f32.gmra.mxu0 %v3359
      %v4318 = vpop.f32.mrf.mxu0
      %v4319 = vadd.f32 %v4206, %v4318
      %4320 = vmatmul.f32.gmra.mxu0 %v3368
      %v4321 = vpop.f32.mrf.mxu0
      %v4322 = vadd.f32 %v4209, %v4321
      %4323 = vmatmul.f32.gmra.mxu0 %v3377
      %v4324 = vpop.f32.mrf.mxu0
      %v4325 = vadd.f32 %v4212, %v4324
      %4326 = vmatmul.f32.gmra.mxu0 %v3386
      %v4327 = vpop.f32.mrf.mxu0
      %v4328 = vadd.f32 %v4215, %v4327
      %4329 = vmatmul.f32.gmra.mxu0 %v3395
      %v4330 = vpop.f32.mrf.mxu0
      %v4331 = vadd.f32 %v4218, %v4330
      %4332 = vdwg.mxu0
      %4333 = vmatpush.msra.mxu0 %v3525
      %4334 = vmatpush.msra.mxu0 %v3524
      %4335 = vmatpush.msra.mxu0 %v3523
      %4336 = vmatpush.msra.mxu0 %v3522
      %4337 = vmatpush.msra.mxu0 %v3521
      %4338 = vmatpush.msra.mxu0 %v3520
      %4339 = vmatpush.msra.mxu0 %v3519
      %4340 = vmatpush.msra.mxu0 %v3518
      %4341 = vmatpush.msra.mxu0 %v3517
      %4342 = vmatpush.msra.mxu0 %v3516
      %4343 = vmatpush.msra.mxu0 %v3515
      %4344 = vmatpush.msra.mxu0 %v3514
      %4345 = vmatpush.msra.mxu0 %v3513
      %4346 = vmatpush.msra.mxu0 %v3512
      %4347 = vmatpush.msra.mxu0 %v3511
      %4348 = vmatpush.msra.mxu0 %v3510
      %4349 = vmatmul.f32.gmra.mxu0 %v3117
      %v4350 = vpop.f32.mrf.mxu0
      %v4351 = vadd.f32 %v4238, %v4350
      %4352 = vmatmul.f32.gmra.mxu0 %v3126
      %v4353 = vpop.f32.mrf.mxu0
      %v4354 = vadd.f32 %v4241, %v4353
      %4355 = vmatmul.f32.gmra.mxu0 %v3135
      %v4356 = vpop.f32.mrf.mxu0
      %v4357 = vadd.f32 %v4244, %v4356
      %4358 = vmatmul.f32.gmra.mxu0 %v3144
      %v4359 = vpop.f32.mrf.mxu0
      %v4360 = vadd.f32 %v4247, %v4359
      %4361 = vmatmul.f32.gmra.mxu0 %v3153
      %v4362 = vpop.f32.mrf.mxu0
      %v4363 = vadd.f32 %v4250, %v4362
      %4364 = vmatmul.f32.gmra.mxu0 %v3162
      %v4365 = vpop.f32.mrf.mxu0
      %v4366 = vadd.f32 %v4253, %v4365
      %4367 = vmatmul.f32.gmra.mxu0 %v3171
      %v4368 = vpop.f32.mrf.mxu0
      %v4369 = vadd.f32 %v4256, %v4368
      %4370 = vmatmul.f32.gmra.mxu0 %v3180
      %v4371 = vpop.f32.mrf.mxu0
      %v4372 = vadd.f32 %v4259, %v4371
      %4373 = vmatmul.f32.gmra.mxu0 %v3189
      %v4374 = vpop.f32.mrf.mxu0
      %v4375 = vadd.f32 %v4262, %v4374
      %4376 = vmatmul.f32.gmra.mxu0 %v3198
      %v4377 = vpop.f32.mrf.mxu0
      %v4378 = vadd.f32 %v4265, %v4377
      %4379 = vmatmul.f32.gmra.mxu0 %v3207
      %v4380 = vpop.f32.mrf.mxu0
      %v4381 = vadd.f32 %v4268, %v4380
      %4382 = vmatmul.f32.gmra.mxu0 %v3216
      %v4383 = vpop.f32.mrf.mxu0
      %v4384 = vadd.f32 %v4271, %v4383
      %4385 = vmatmul.f32.gmra.mxu0 %v3225
      %v4386 = vpop.f32.mrf.mxu0
      %v4387 = vadd.f32 %v4274, %v4386
      %4388 = vmatmul.f32.gmra.mxu0 %v3234
      %v4389 = vpop.f32.mrf.mxu0
      %v4390 = vadd.f32 %v4277, %v4389
      %4391 = vmatmul.f32.gmra.mxu0 %v3243
      %v4392 = vpop.f32.mrf.mxu0
      %v4393 = vadd.f32 %v4280, %v4392
      %4394 = vmatmul.f32.gmra.mxu0 %v3252
      %v4395 = vpop.f32.mrf.mxu0
      %v4396 = vadd.f32 %v4283, %v4395
      %4397 = vmatmul.f32.gmra.mxu0 %v3261
      %v4398 = vpop.f32.mrf.mxu0
      %v4399 = vadd.f32 %v4286, %v4398
      %4400 = vmatmul.f32.gmra.mxu0 %v3270
      %v4401 = vpop.f32.mrf.mxu0
      %v4402 = vadd.f32 %v4289, %v4401
      %4403 = vmatmul.f32.gmra.mxu0 %v3279
      %v4404 = vpop.f32.mrf.mxu0
      %v4405 = vadd.f32 %v4292, %v4404
      %4406 = vmatmul.f32.gmra.mxu0 %v3288
      %v4407 = vpop.f32.mrf.mxu0
      %v4408 = vadd.f32 %v4295, %v4407
      %4409 = vmatmul.f32.gmra.mxu0 %v3297
      %v4410 = vpop.f32.mrf.mxu0
      %v4411 = vadd.f32 %v4298, %v4410
      %4412 = vmatmul.f32.gmra.mxu0 %v3306
      %v4413 = vpop.f32.mrf.mxu0
      %v4414 = vadd.f32 %v4301, %v4413
      %4415 = vmatmul.f32.gmra.mxu0 %v3315
      %v4416 = vpop.f32.mrf.mxu0
      %v4417 = vadd.f32 %v4304, %v4416
      %4418 = vmatmul.f32.gmra.mxu0 %v3324
      %v4419 = vpop.f32.mrf.mxu0
      %v4420 = vadd.f32 %v4307, %v4419
      %4421 = vmatmul.f32.gmra.mxu0 %v3333
      %v4422 = vpop.f32.mrf.mxu0
      %v4423 = vadd.f32 %v4310, %v4422
      %4424 = vmatmul.f32.gmra.mxu0 %v3342
      %v4425 = vpop.f32.mrf.mxu0
      %v4426 = vadd.f32 %v4313, %v4425
      %4427 = vmatmul.f32.gmra.mxu0 %v3351
      %v4428 = vpop.f32.mrf.mxu0
      %v4429 = vadd.f32 %v4316, %v4428
      %4430 = vmatmul.f32.gmra.mxu0 %v3360
      %v4431 = vpop.f32.mrf.mxu0
      %v4432 = vadd.f32 %v4319, %v4431
      %4433 = vmatmul.f32.gmra.mxu0 %v3369
      %v4434 = vpop.f32.mrf.mxu0
      %v4435 = vadd.f32 %v4322, %v4434
      %4436 = vmatmul.f32.gmra.mxu0 %v3378
      %v4437 = vpop.f32.mrf.mxu0
      %v4438 = vadd.f32 %v4325, %v4437
      %4439 = vmatmul.f32.gmra.mxu0 %v3387
      %v4440 = vpop.f32.mrf.mxu0
      %v4441 = vadd.f32 %v4328, %v4440
      %4442 = vmatmul.f32.gmra.mxu0 %v3396
      %v4443 = vpop.f32.mrf.mxu0
      %v4444 = vadd.f32 %v4331, %v4443
      %4445 = vdwg.mxu0
      %4446 = vmatpush.msra.mxu0 %v3541
      %4447 = vmatpush.msra.mxu0 %v3540
      %4448 = vmatpush.msra.mxu0 %v3539
      %4449 = vmatpush.msra.mxu0 %v3538
      %4450 = vmatpush.msra.mxu0 %v3537
      %4451 = vmatpush.msra.mxu0 %v3536
      %4452 = vmatpush.msra.mxu0 %v3535
      %4453 = vmatpush.msra.mxu0 %v3534
      %4454 = vmatpush.msra.mxu0 %v3533
      %4455 = vmatpush.msra.mxu0 %v3532
      %4456 = vmatpush.msra.mxu0 %v3531
      %4457 = vmatpush.msra.mxu0 %v3530
      %4458 = vmatpush.msra.mxu0 %v3529
      %4459 = vmatpush.msra.mxu0 %v3528
      %4460 = vmatpush.msra.mxu0 %v3527
      %4461 = vmatpush.msra.mxu0 %v3526
      %4462 = vmatmul.f32.gmra.mxu0 %v3118
      %v4463 = vpop.f32.mrf.mxu0
      %v4464 = vadd.f32 %v4351, %v4463
      %4465 = vmatmul.f32.gmra.mxu0 %v3127
      %v4466 = vpop.f32.mrf.mxu0
      %v4467 = vadd.f32 %v4354, %v4466
      %4468 = vmatmul.f32.gmra.mxu0 %v3136
      %v4469 = vpop.f32.mrf.mxu0
      %v4470 = vadd.f32 %v4357, %v4469
      %4471 = vmatmul.f32.gmra.mxu0 %v3145
      %v4472 = vpop.f32.mrf.mxu0
      %v4473 = vadd.f32 %v4360, %v4472
      %4474 = vmatmul.f32.gmra.mxu0 %v3154
      %v4475 = vpop.f32.mrf.mxu0
      %v4476 = vadd.f32 %v4363, %v4475
      %4477 = vmatmul.f32.gmra.mxu0 %v3163
      %v4478 = vpop.f32.mrf.mxu0
      %v4479 = vadd.f32 %v4366, %v4478
      %4480 = vmatmul.f32.gmra.mxu0 %v3172
      %v4481 = vpop.f32.mrf.mxu0
      %v4482 = vadd.f32 %v4369, %v4481
      %4483 = vmatmul.f32.gmra.mxu0 %v3181
      %v4484 = vpop.f32.mrf.mxu0
      %v4485 = vadd.f32 %v4372, %v4484
      %4486 = vmatmul.f32.gmra.mxu0 %v3190
      %v4487 = vpop.f32.mrf.mxu0
      %v4488 = vadd.f32 %v4375, %v4487
      %4489 = vmatmul.f32.gmra.mxu0 %v3199
      %v4490 = vpop.f32.mrf.mxu0
      %v4491 = vadd.f32 %v4378, %v4490
      %4492 = vmatmul.f32.gmra.mxu0 %v3208
      %v4493 = vpop.f32.mrf.mxu0
      %v4494 = vadd.f32 %v4381, %v4493
      %4495 = vmatmul.f32.gmra.mxu0 %v3217
      %v4496 = vpop.f32.mrf.mxu0
      %v4497 = vadd.f32 %v4384, %v4496
      %4498 = vmatmul.f32.gmra.mxu0 %v3226
      %v4499 = vpop.f32.mrf.mxu0
      %v4500 = vadd.f32 %v4387, %v4499
      %4501 = vmatmul.f32.gmra.mxu0 %v3235
      %v4502 = vpop.f32.mrf.mxu0
      %v4503 = vadd.f32 %v4390, %v4502
      %4504 = vmatmul.f32.gmra.mxu0 %v3244
      %v4505 = vpop.f32.mrf.mxu0
      %v4506 = vadd.f32 %v4393, %v4505
      %4507 = vmatmul.f32.gmra.mxu0 %v3253
      %v4508 = vpop.f32.mrf.mxu0
      %v4509 = vadd.f32 %v4396, %v4508
      %4510 = vmatmul.f32.gmra.mxu0 %v3262
      %v4511 = vpop.f32.mrf.mxu0
      %v4512 = vadd.f32 %v4399, %v4511
      %4513 = vmatmul.f32.gmra.mxu0 %v3271
      %v4514 = vpop.f32.mrf.mxu0
      %v4515 = vadd.f32 %v4402, %v4514
      %4516 = vmatmul.f32.gmra.mxu0 %v3280
      %v4517 = vpop.f32.mrf.mxu0
      %v4518 = vadd.f32 %v4405, %v4517
      %4519 = vmatmul.f32.gmra.mxu0 %v3289
      %v4520 = vpop.f32.mrf.mxu0
      %v4521 = vadd.f32 %v4408, %v4520
      %4522 = vmatmul.f32.gmra.mxu0 %v3298
      %v4523 = vpop.f32.mrf.mxu0
      %v4524 = vadd.f32 %v4411, %v4523
      %4525 = vmatmul.f32.gmra.mxu0 %v3307
      %v4526 = vpop.f32.mrf.mxu0
      %v4527 = vadd.f32 %v4414, %v4526
      %4528 = vmatmul.f32.gmra.mxu0 %v3316
      %v4529 = vpop.f32.mrf.mxu0
      %v4530 = vadd.f32 %v4417, %v4529
      %4531 = vmatmul.f32.gmra.mxu0 %v3325
      %v4532 = vpop.f32.mrf.mxu0
      %v4533 = vadd.f32 %v4420, %v4532
      %4534 = vmatmul.f32.gmra.mxu0 %v3334
      %v4535 = vpop.f32.mrf.mxu0
      %v4536 = vadd.f32 %v4423, %v4535
      %4537 = vmatmul.f32.gmra.mxu0 %v3343
      %v4538 = vpop.f32.mrf.mxu0
      %v4539 = vadd.f32 %v4426, %v4538
      %4540 = vmatmul.f32.gmra.mxu0 %v3352
      %v4541 = vpop.f32.mrf.mxu0
      %v4542 = vadd.f32 %v4429, %v4541
      %4543 = vmatmul.f32.gmra.mxu0 %v3361
      %v4544 = vpop.f32.mrf.mxu0
      %v4545 = vadd.f32 %v4432, %v4544
      %4546 = vmatmul.f32.gmra.mxu0 %v3370
      %v4547 = vpop.f32.mrf.mxu0
      %v4548 = vadd.f32 %v4435, %v4547
      %4549 = vmatmul.f32.gmra.mxu0 %v3379
      %v4550 = vpop.f32.mrf.mxu0
      %v4551 = vadd.f32 %v4438, %v4550
      %4552 = vmatmul.f32.gmra.mxu0 %v3388
      %v4553 = vpop.f32.mrf.mxu0
      %v4554 = vadd.f32 %v4441, %v4553
      %4555 = vmatmul.f32.gmra.mxu0 %v3397
      %v4556 = vpop.f32.mrf.mxu0
      %v4557 = vadd.f32 %v4444, %v4556
      %4558 = vdwg.mxu0
      %v4559 = vld [vmem:[%s6] sm:$0x1]
      %v4561 = vperm.slane %v4559, 0
      %v4563 = vmul.f32 %v4464, %v4561
      %v4564 = vmul.f32 %v4467, %v4561
      %v4565 = vmul.f32 %v4470, %v4561
      %v4566 = vmul.f32 %v4473, %v4561
      %v4567 = vmul.f32 %v4476, %v4561
      %v4568 = vmul.f32 %v4479, %v4561
      %v4569 = vmul.f32 %v4482, %v4561
      %v4570 = vmul.f32 %v4485, %v4561
      %v4571 = vmul.f32 %v4488, %v4561
      %v4572 = vmul.f32 %v4491, %v4561
      %v4573 = vmul.f32 %v4494, %v4561
      %v4574 = vmul.f32 %v4497, %v4561
      %v4575 = vmul.f32 %v4500, %v4561
      %v4576 = vmul.f32 %v4503, %v4561
      %v4577 = vmul.f32 %v4506, %v4561
      %v4578 = vmul.f32 %v4509, %v4561
      %v4579 = vmul.f32 %v4512, %v4561
      %v4580 = vmul.f32 %v4515, %v4561
      %v4581 = vmul.f32 %v4518, %v4561
      %v4582 = vmul.f32 %v4521, %v4561
      %v4583 = vmul.f32 %v4524, %v4561
      %v4584 = vmul.f32 %v4527, %v4561
      %v4585 = vmul.f32 %v4530, %v4561
      %v4586 = vmul.f32 %v4533, %v4561
      %v4587 = vmul.f32 %v4536, %v4561
      %v4588 = vmul.f32 %v4539, %v4561
      %v4589 = vmul.f32 %v4542, %v4561
      %v4590 = vmul.f32 %v4545, %v4561
      %v4591 = vmul.f32 %v4548, %v4561
      %v4592 = vmul.f32 %v4551, %v4561
      %v4593 = vmul.f32 %v4554, %v4561
      %v4594 = vmul.f32 %v4557, %v4561
      %v4595 = vld [vmem:[%s7] sm:$0x1]
      %v4597 = vperm.slane %v4595, 0
      %v4599 = vadd.f32 %v4563, %v4597
      %v4600 = vadd.f32 %v4564, %v4597
      %v4601 = vadd.f32 %v4565, %v4597
      %v4602 = vadd.f32 %v4566, %v4597
      %v4603 = vadd.f32 %v4567, %v4597
      %v4604 = vadd.f32 %v4568, %v4597
      %v4605 = vadd.f32 %v4569, %v4597
      %v4606 = vadd.f32 %v4570, %v4597
      %v4607 = vadd.f32 %v4571, %v4597
      %v4608 = vadd.f32 %v4572, %v4597
      %v4609 = vadd.f32 %v4573, %v4597
      %v4610 = vadd.f32 %v4574, %v4597
      %v4611 = vadd.f32 %v4575, %v4597
      %v4612 = vadd.f32 %v4576, %v4597
      %v4613 = vadd.f32 %v4577, %v4597
      %v4614 = vadd.f32 %v4578, %v4597
      %v4615 = vadd.f32 %v4579, %v4597
      %v4616 = vadd.f32 %v4580, %v4597
      %v4617 = vadd.f32 %v4581, %v4597
      %v4618 = vadd.f32 %v4582, %v4597
      %v4619 = vadd.f32 %v4583, %v4597
      %v4620 = vadd.f32 %v4584, %v4597
      %v4621 = vadd.f32 %v4585, %v4597
      %v4622 = vadd.f32 %v4586, %v4597
      %v4623 = vadd.f32 %v4587, %v4597
      %v4624 = vadd.f32 %v4588, %v4597
      %v4625 = vadd.f32 %v4589, %v4597
      %v4626 = vadd.f32 %v4590, %v4597
      %v4627 = vadd.f32 %v4591, %v4597
      %v4628 = vadd.f32 %v4592, %v4597
      %v4629 = vadd.f32 %v4593, %v4597
      %v4630 = vadd.f32 %v4594, %v4597
      %v4631 = vld [vmem:[%s320] sm:$0xff]
      %v4632 = vld [vmem:[%s320 + $0x8] sm:$0xff]
      %v4633 = vld [vmem:[%s320 + $0x10] sm:$0xff]
      %v4634 = vld [vmem:[%s320 + $0x18] sm:$0xff]
      %v4635 = vld [vmem:[%s320 + $0x20] sm:$0xff]
      %v4636 = vld [vmem:[%s320 + $0x28] sm:$0xff]
      %v4637 = vld [vmem:[%s320 + $0x30] sm:$0xff]
      %v4638 = vld [vmem:[%s320 + $0x38] sm:$0xff]
      %v4639 = vld [vmem:[%s320 + $0x40] sm:$0xff]
      %v4640 = vld [vmem:[%s320 + $0x48] sm:$0xff]
      %v4641 = vld [vmem:[%s320 + $0x50] sm:$0xff]
      %v4642 = vld [vmem:[%s320 + $0x58] sm:$0xff]
      %v4643 = vld [vmem:[%s320 + $0x60] sm:$0xff]
      %v4644 = vld [vmem:[%s320 + $0x68] sm:$0xff]
      %v4645 = vld [vmem:[%s320 + $0x70] sm:$0xff]
      %v4646 = vld [vmem:[%s320 + $0x78] sm:$0xff]
      %v4647 = vld [vmem:[%s320 + $0x80] sm:$0xff]
      %v4648 = vld [vmem:[%s320 + $0x88] sm:$0xff]
      %v4649 = vld [vmem:[%s320 + $0x90] sm:$0xff]
      %v4650 = vld [vmem:[%s320 + $0x98] sm:$0xff]
      %v4651 = vld [vmem:[%s320 + $0xa0] sm:$0xff]
      %v4652 = vld [vmem:[%s320 + $0xa8] sm:$0xff]
      %v4653 = vld [vmem:[%s320 + $0xb0] sm:$0xff]
      %v4654 = vld [vmem:[%s320 + $0xb8] sm:$0xff]
      %v4655 = vld [vmem:[%s320 + $0xc0] sm:$0xff]
      %v4656 = vld [vmem:[%s320 + $0xc8] sm:$0xff]
      %v4657 = vld [vmem:[%s320 + $0xd0] sm:$0xff]
      %v4658 = vld [vmem:[%s320 + $0xd8] sm:$0xff]
      %v4659 = vld [vmem:[%s320 + $0xe0] sm:$0xff]
      %v4660 = vld [vmem:[%s320 + $0xe8] sm:$0xff]
      %v4661 = vld [vmem:[%s320 + $0xf0] sm:$0xff]
      %v4662 = vld [vmem:[%s320 + $0xf8] sm:$0xff]
      %v4663 = vadd.f32 %v4599, %v4631
      %v4664 = vadd.f32 %v4600, %v4632
      %v4665 = vadd.f32 %v4601, %v4633
      %v4666 = vadd.f32 %v4602, %v4634
      %v4667 = vadd.f32 %v4603, %v4635
      %v4668 = vadd.f32 %v4604, %v4636
      %v4669 = vadd.f32 %v4605, %v4637
      %v4670 = vadd.f32 %v4606, %v4638
      %v4671 = vadd.f32 %v4607, %v4639
      %v4672 = vadd.f32 %v4608, %v4640
      %v4673 = vadd.f32 %v4609, %v4641
      %v4674 = vadd.f32 %v4610, %v4642
      %v4675 = vadd.f32 %v4611, %v4643
      %v4676 = vadd.f32 %v4612, %v4644
      %v4677 = vadd.f32 %v4613, %v4645
      %v4678 = vadd.f32 %v4614, %v4646
      %v4679 = vadd.f32 %v4615, %v4647
      %v4680 = vadd.f32 %v4616, %v4648
      %v4681 = vadd.f32 %v4617, %v4649
      %v4682 = vadd.f32 %v4618, %v4650
      %v4683 = vadd.f32 %v4619, %v4651
      %v4684 = vadd.f32 %v4620, %v4652
      %v4685 = vadd.f32 %v4621, %v4653
      %v4686 = vadd.f32 %v4622, %v4654
      %v4687 = vadd.f32 %v4623, %v4655
      %v4688 = vadd.f32 %v4624, %v4656
      %v4689 = vadd.f32 %v4625, %v4657
      %v4690 = vadd.f32 %v4626, %v4658
      %v4691 = vadd.f32 %v4627, %v4659
      %v4692 = vadd.f32 %v4628, %v4660
      %v4693 = vadd.f32 %v4629, %v4661
      %v4694 = vadd.f32 %v4630, %v4662
      %v4695 = vmax.f32 %v4663, 0.0
      %v4696 = vmax.f32 %v4664, 0.0
      %v4697 = vmax.f32 %v4665, 0.0
      %v4698 = vmax.f32 %v4666, 0.0
      %v4699 = vmax.f32 %v4667, 0.0
      %v4700 = vmax.f32 %v4668, 0.0
      %v4701 = vmax.f32 %v4669, 0.0
      %v4702 = vmax.f32 %v4670, 0.0
      %v4703 = vmax.f32 %v4671, 0.0
      %v4704 = vmax.f32 %v4672, 0.0
      %v4705 = vmax.f32 %v4673, 0.0
      %v4706 = vmax.f32 %v4674, 0.0
      %v4707 = vmax.f32 %v4675, 0.0
      %v4708 = vmax.f32 %v4676, 0.0
      %v4709 = vmax.f32 %v4677, 0.0
      %v4710 = vmax.f32 %v4678, 0.0
      %v4711 = vmax.f32 %v4679, 0.0
      %v4712 = vmax.f32 %v4680, 0.0
      %v4713 = vmax.f32 %v4681, 0.0
      %v4714 = vmax.f32 %v4682, 0.0
      %v4715 = vmax.f32 %v4683, 0.0
      %v4716 = vmax.f32 %v4684, 0.0
      %v4717 = vmax.f32 %v4685, 0.0
      %v4718 = vmax.f32 %v4686, 0.0
      %v4719 = vmax.f32 %v4687, 0.0
      %v4720 = vmax.f32 %v4688, 0.0
      %v4721 = vmax.f32 %v4689, 0.0
      %v4722 = vmax.f32 %v4690, 0.0
      %v4723 = vmax.f32 %v4691, 0.0
      %v4724 = vmax.f32 %v4692, 0.0
      %v4725 = vmax.f32 %v4693, 0.0
      %v4726 = vmax.f32 %v4694, 0.0
      %4727 = vst [vmem:[%s325] sm:$0xff] %v4695
      %4728 = vst [vmem:[%s325 + $0x8] sm:$0xff] %v4696
      %4729 = vst [vmem:[%s325 + $0x10] sm:$0xff] %v4697
      %4730 = vst [vmem:[%s325 + $0x18] sm:$0xff] %v4698
      %4731 = vst [vmem:[%s325 + $0x20] sm:$0xff] %v4699
      %4732 = vst [vmem:[%s325 + $0x28] sm:$0xff] %v4700
      %4733 = vst [vmem:[%s325 + $0x30] sm:$0xff] %v4701
      %4734 = vst [vmem:[%s325 + $0x38] sm:$0xff] %v4702
      %4735 = vst [vmem:[%s325 + $0x40] sm:$0xff] %v4703
      %4736 = vst [vmem:[%s325 + $0x48] sm:$0xff] %v4704
      %4737 = vst [vmem:[%s325 + $0x50] sm:$0xff] %v4705
      %4738 = vst [vmem:[%s325 + $0x58] sm:$0xff] %v4706
      %4739 = vst [vmem:[%s325 + $0x60] sm:$0xff] %v4707
      %4740 = vst [vmem:[%s325 + $0x68] sm:$0xff] %v4708
      %4741 = vst [vmem:[%s325 + $0x70] sm:$0xff] %v4709
      %4742 = vst [vmem:[%s325 + $0x78] sm:$0xff] %v4710
      %4743 = vst [vmem:[%s325 + $0x80] sm:$0xff] %v4711
      %4744 = vst [vmem:[%s325 + $0x88] sm:$0xff] %v4712
      %4745 = vst [vmem:[%s325 + $0x90] sm:$0xff] %v4713
      %4746 = vst [vmem:[%s325 + $0x98] sm:$0xff] %v4714
      %4747 = vst [vmem:[%s325 + $0xa0] sm:$0xff] %v4715
      %4748 = vst [vmem:[%s325 + $0xa8] sm:$0xff] %v4716
      %4749 = vst [vmem:[%s325 + $0xb0] sm:$0xff] %v4717
      %4750 = vst [vmem:[%s325 + $0xb8] sm:$0xff] %v4718
      %4751 = vst [vmem:[%s325 + $0xc0] sm:$0xff] %v4719
      %4752 = vst [vmem:[%s325 + $0xc8] sm:$0xff] %v4720
      %4753 = vst [vmem:[%s325 + $0xd0] sm:$0xff] %v4721
      %4754 = vst [vmem:[%s325 + $0xd8] sm:$0xff] %v4722
      %4755 = vst [vmem:[%s325 + $0xe0] sm:$0xff] %v4723
      %4756 = vst [vmem:[%s325 + $0xe8] sm:$0xff] %v4724
      %4757 = vst [vmem:[%s325 + $0xf0] sm:$0xff] %v4725
      %4758 = vst [vmem:[%s325 + $0xf8] sm:$0xff] %v4726
      %p4759 = scmp.lt.s32.totalorder %s19, 1
      %s4760 = scalar_select %p4759, %s19, 1
      %s4761 = smul.addr %s4760, 32
      %s4762 = smul.addr %s4761, 8
      %s4763 = scalar_lea.vmem %s8, %s4762
      // Predicated region
      $region53: #{basic_block_forward.1} parent=51 // pred_check
        %p4764 = pneg %p215
      $region54: #{basic_block_forward.1} parent=51 // pred_check_branch
        %4766 = sbr.rel (%p4764) target = $region56
      $region55: #{basic_block_forward.1} parent=51 // pred_region
        _
      $region56: #{basic_block_forward.1} parent=51 // pred_fallthru
        _
    $region52: #{basic_block_forward.1} parent=5 // pred_fallthru
      _
    %p4767 = scmp.le.s32.totalorder 2, %s14
    // Predicated region
    $region57: #{basic_block_forward.1} parent=5 // pred_check
      %p4768 = pneg %p4767
    $region58: #{basic_block_forward.1} parent=5 // pred_check_branch
      %4770 = sbr.rel (%p4768) target = $region60
    $region59: #{basic_block_forward.1} parent=5 // pred_region
      %s4771 = ssub.s32 %s14, 2
      // Predicated region
      $region61: #{basic_block_forward.1} parent=59 // pred_check
        %p4772 = pneg %p221
      $region62: #{basic_block_forward.1} parent=59 // pred_check_branch
        %4774 = sbr.rel (%p4772) target = $region64
      $region63: #{basic_block_forward.1} parent=59 // pred_region
        %p4775 = scmp.lt.s32.totalorder %s20, 1
        %s4776 = scalar_select %p4775, %s20, 1
        %s4777 = smul.addr %s4776, 32
        %s4778 = smul.addr %s4777, 8
        %s4779 = scalar_lea.vmem %s8, %s4778
      $region64: #{basic_block_forward.1} parent=59 // pred_fallthru
        _
    $region60: #{basic_block_forward.1} parent=5 // pred_fallthru
      _
  $region6: #{basic_block_forward.1} parent=0 // loop_footer
    %s18 = sadd.s32 1, %s14
  $region7: #{basic_block_forward.1} parent=0 // loop_footer_branch
    %13 = sbr.rel target = $region3
  $region8: #{basic_block_forward.1} parent=0 // loop_exit
    _

</llo_original>
